<compile_context>
chip_gen: v7x
topology: tpu7x:2x2x1
jax: 0.10.0
libtpu: 0.0.40
codegen_flags: <defaults>
</compile_context>

<pallas_src>
import jax
import jax.numpy as jnp
from jax import lax
from jax.experimental import pallas as pl
from jax.experimental.pallas import tpu as pltpu

# ---- hyperparameters implied by the module ----
VOCAB_SIZE = 256
EMBED_DIM = 100
HIDDEN_DIM = 128
N_LAYERS = 2
OUTPUT_DIM = 6       # len(label_dict) is data-dependent in the script; fixed small value
DROPOUT = 0.3        # train-only; eval forward -> identity

_LANE = 128
_SUBLANE = 8


def _round_up(x, m):
    return (x + m - 1) // m * m


def _make_lstm_kernel(t_real, t_pad, tc, bp, hidden):
    """Build the kernel closure for static (t_real, t_pad, Tc, Bp, H)."""
    H = hidden
    H4 = 4 * H
    n_chunks = t_pad // tc
    last_steps = t_real - (n_chunks - 1) * tc       # static, >= 1; == tc if no padding

    def kernel(emb_ref,                         # (Tc*Bp, Ep) bf16 time-chunk of embedded seq
               wih0_ref, whh0_ref, b0_ref,      # (Ep,4H) bf16, (H,4H) bf16, (1,4H) f32
               wih1_ref, whh1_ref, b1_ref,      # (H,4H) bf16, (H,4H) bf16, (1,4H) f32
               wfc_ref, bfc_ref,                # (H,Op) bf16, (1,Op) f32
               out_ref,                         # (Bp, Op) f32
               h1_ref, c1_ref, h2_ref, c2_ref,  # (Bp, H) f32 persistent scratch
               x0_ref):                         # (Tc*Bp, 4H) f32 scratch (hoisted projection)
        pid = pl.program_id(0)
        last = pl.num_programs(0) - 1

        @pl.when(pid == 0)
        def _init():
            h1_ref[...] = jnp.zeros_like(h1_ref)
            c1_ref[...] = jnp.zeros_like(c1_ref)
            h2_ref[...] = jnp.zeros_like(h2_ref)
            c2_ref[...] = jnp.zeros_like(c2_ref)

        # ---- hoisted layer-0 input projection: ONE big bf16 MXU matmul per chunk,
        #      f32 accumulation, b0 folded in once ----
        x0_ref[...] = (jnp.dot(emb_ref[...], wih0_ref[...],
                               preferred_element_type=jnp.float32)
                       + b0_ref[...])

        # loop-invariant loads / broadcasts hoisted out of the recurrence
        whh0 = whh0_ref[...]                    # bf16
        wih1 = wih1_ref[...]                    # bf16
        whh1 = whh1_ref[...]                    # bf16
        b1_b = jnp.broadcast_to(b1_ref[...], (bp, H4))   # f32

        def gate_math(gates, c):
            i = jax.nn.sigmoid(gates[:, 0:H])
            f = jax.nn.sigmoid(gates[:, H:2 * H])
            g = jnp.tanh(gates[:, 2 * H:3 * H])
            o = jax.nn.sigmoid(gates[:, 3 * H:4 * H])
            c_new = f * c + i * g
            h_new = o * jnp.tanh(c_new)
            return h_new, c_new

        def step(s, carry):
            h1, c1, h2, c2 = carry
            row = pl.multiple_of(s * bp, bp)
            x0_t = x0_ref[pl.ds(row, bp), :]               # (Bp, 4H) f32, precomputed
            # layer-1 recurrent matmul does NOT depend on h1n -> issue it early,
            # off the serial layer-0 chain (128-deep bf16 push).
            r1 = jnp.dot(h2.astype(jnp.bfloat16), whh1,
                         preferred_element_type=jnp.float32)
            # layer 0: only the recurrent matmul is on the serial chain
            g0 = x0_t + jnp.dot(h1.astype(jnp.bfloat16), whh0,
                                preferred_element_type=jnp.float32)
            h1n, c1n = gate_math(g0, c1)
            # layer 1: input matmul (128-deep), recurrent part already computed
            g1 = (jnp.dot(h1n.astype(jnp.bfloat16), wih1,
                          preferred_element_type=jnp.float32) + r1 + b1_b)
            h2n, c2n = gate_math(g1, c2)
            return h1n, c1n, h2n, c2n

        def run(nsteps):
            # cap unroll at 8: enough overlap, no vreg-spill risk
            h1, c1, h2, c2 = lax.fori_loop(
                0, nsteps, step,
                (h1_ref[...], c1_ref[...], h2_ref[...], c2_ref[...]),
                unroll=min(nsteps, 8))
            h1_ref[...] = h1
            c1_ref[...] = c1
            h2_ref[...] = h2
            c2_ref[...] = c2

        if last_steps == tc:
            # no padded timesteps anywhere: single static-trip-count loop
            run(tc)
        else:
            # skip (don't mask) padded timesteps: full chunks run tc steps,
            # the last chunk runs only the statically-known valid count.
            @pl.when(pid != last)
            def _full_chunk():
                run(tc)

            @pl.when(pid == last)
            def _tail_chunk():
                run(last_steps)

        @pl.when(pid == last)
        def _finalize():
            # fc(dropout(hidden[-1])); dropout is identity at inference.
            # lane-dense (Op=128) output; wrapper slices the real OUTPUT_DIM.
            out_ref[...] = (jnp.dot(h2_ref[...].astype(jnp.bfloat16), wfc_ref[...],
                                    preferred_element_type=jnp.float32)
                            + bfc_ref[...])

    return kernel


def prepare_params(params):
    """One-time weight padding / packing / bf16 casting (hoisted out of the hot path)."""
    H = HIDDEN_DIM
    H4 = 4 * H
    Ep = _round_up(EMBED_DIM, _LANE)
    Op = _round_up(OUTPUT_DIM, _LANE)
    wih0 = jnp.zeros((Ep, H4), jnp.float32).at[:EMBED_DIM].set(params["wih0"])
    wfc = jnp.zeros((H, Op), jnp.float32).at[:, :OUTPUT_DIM].set(params["wfc"])
    bfc = jnp.zeros((1, Op), jnp.float32).at[:, :OUTPUT_DIM].set(params["bfc"])
    return {
        "embedding": params["embedding"].astype(jnp.bfloat16),   # bf16 streamed slab
        "wih0": wih0.astype(jnp.bfloat16),
        "whh0": params["whh0"].astype(jnp.bfloat16),
        "b0": params["b0"],                                      # biases stay f32
        "wih1": params["wih1"].astype(jnp.bfloat16),
        "whh1": params["whh1"].astype(jnp.bfloat16),
        "b1": params["b1"],
        "wfc": wfc.astype(jnp.bfloat16),
        "bfc": bfc,
    }


def lstm_forward(x_tokens, prepared, *, time_chunk=256):
    """x_tokens: (B, T) int32 token ids. Returns (B, OUTPUT_DIM) f32 logits."""
    B, T = x_tokens.shape
    H = HIDDEN_DIM
    H4 = 4 * H
    Ep = _round_up(EMBED_DIM, _LANE)
    Op = _round_up(OUTPUT_DIM, _LANE)

    # ---- pad to (8,128)-dense tiles ----
    Bp = max(_SUBLANE, _round_up(B, _SUBLANE))
    Tc = min(_round_up(T, _SUBLANE), _round_up(time_chunk, _SUBLANE))  # chunk (mult of 8)
    Tp = _round_up(T, Tc)
    n_chunks = Tp // Tc

    # Embedding lookup (gather) is glue, done in plain JAX; slab streamed in bf16.
    emb = prepared["embedding"][x_tokens]                       # (B, T, E) bf16
    emb_tm = jnp.transpose(emb, (1, 0, 2))                      # (T, B, E)
    emb_p = jnp.zeros((Tp, Bp, Ep), jnp.bfloat16)
    emb_p = emb_p.at[:T, :B, :EMBED_DIM].set(emb_tm)
    emb_flat = emb_p.reshape(Tp * Bp, Ep)                       # (Tp*Bp, Ep) bf16

    kernel = _make_lstm_kernel(T, Tp, Tc, Bp, H)
    const2 = lambda t: (0, 0)

    out = pl.pallas_call(
        kernel,
        out_shape=jax.ShapeDtypeStruct((Bp, Op), jnp.float32),
        grid=(n_chunks,),
        in_specs=[
            pl.BlockSpec((Tc * Bp, Ep), lambda t: (t, 0)),   # streamed bf16 time chunks
            pl.BlockSpec((Ep, H4), const2),                  # weights stay resident
            pl.BlockSpec((H, H4), const2),
            pl.BlockSpec((1, H4), const2),
            pl.BlockSpec((H, H4), const2),
            pl.BlockSpec((H, H4), const2),
            pl.BlockSpec((1, H4), const2),
            pl.BlockSpec((H, Op), const2),
            pl.BlockSpec((1, Op), const2),
        ],
        out_specs=pl.BlockSpec((Bp, Op), const2),
        scratch_shapes=[pltpu.VMEM((Bp, H), jnp.float32) for _ in range(4)]
                       + [pltpu.VMEM((Tc * Bp, H4), jnp.float32)],
        compiler_params=pltpu.CompilerParams(
            dimension_semantics=("arbitrary",)),             # time recurrence is serial
    )(emb_flat, prepared["wih0"], prepared["whh0"], prepared["b0"],
      prepared["wih1"], prepared["whh1"], prepared["b1"],
      prepared["wfc"], prepared["bfc"])

    return out[:B, :OUTPUT_DIM]


def reference_forward(x_tokens, p):
    """Pure-JAX f32 reference mirroring PyTorch LSTM semantics (eval mode)."""
    emb = p["embedding"][x_tokens].astype(jnp.float32)   # (B, T, E)
    B, T, _ = emb.shape
    H = HIDDEN_DIM
    h1 = jnp.zeros((B, H), jnp.float32)
    c1 = jnp.zeros((B, H), jnp.float32)
    h2 = jnp.zeros((B, H), jnp.float32)
    c2 = jnp.zeros((B, H), jnp.float32)

    def cell(x_t, h, c, wih, whh, b):
        g = x_t @ wih + h @ whh + b
        i = jax.nn.sigmoid(g[:, :H])
        f = jax.nn.sigmoid(g[:, H:2 * H])
        gg = jnp.tanh(g[:, 2 * H:3 * H])
        o = jax.nn.sigmoid(g[:, 3 * H:4 * H])
        c = f * c + i * gg
        h = o * jnp.tanh(c)
        return h, c

    for t in range(T):
        h1, c1 = cell(emb[:, t], h1, c1, p["wih0"], p["whh0"], p["b0"])
        h2, c2 = cell(h1, h2, c2, p["wih1"], p["whh1"], p["b1"])
    return h2 @ p["wfc"] + p["bfc"]


def init_params(key):
    ks = jax.random.split(key, 11)
    H4 = 4 * HIDDEN_DIM
    scale = 1.0 / jnp.sqrt(HIDDEN_DIM)

    def u(k, shape):
        return jax.random.uniform(k, shape, jnp.float32, -scale, scale)

    return {
        "embedding": jax.random.normal(ks[0], (VOCAB_SIZE, EMBED_DIM), jnp.float32),
        # layer 0 (input = embedding)
        "wih0": u(ks[1], (EMBED_DIM, H4)),
        "whh0": u(ks[2], (HIDDEN_DIM, H4)),
        "b0": u(ks[3], (1, H4)) + u(ks[4], (1, H4)),     # b_ih + b_hh
        # layer 1 (input = hidden of layer 0)
        "wih1": u(ks[5], (HIDDEN_DIM, H4)),
        "whh1": u(ks[6], (HIDDEN_DIM, H4)),
        "b1": u(ks[7], (1, H4)) + u(ks[8], (1, H4)),
        # fc
        "wfc": u(ks[9], (HIDDEN_DIM, OUTPUT_DIM)),
        "bfc": u(ks[10], (1, OUTPUT_DIM)),
    }


if __name__ == "__main__":
    key = jax.random.PRNGKey(0)
    k_param, k_x = jax.random.split(key)

    B, T = 2, 8
    x = jax.random.randint(k_x, (B, T), 0, VOCAB_SIZE, dtype=jnp.int32)
    params = init_params(k_param)
    prepared = prepare_params(params)          # one-time weight padding / bf16 cast

    out = lstm_forward(x, prepared)
    out = jax.block_until_ready(out)

    ref = reference_forward(x, params)
    assert out.shape == (B, OUTPUT_DIM)
    # bf16 MXU operands -> loosened tolerance vs the f32 reference
    assert jnp.allclose(out, ref, atol=2e-2, rtol=2e-2), "mismatch vs pure-JAX reference"

    print("KERNEL_OK")
</pallas_src>

<mosaic_0001>
module attributes {stable_mosaic.version = 11 : i64} {
  func.func @kernel(%arg0: i32, %arg1: memref<64x128xbf16, #tpu.memory_space<vmem>>, %arg2: memref<128x512xbf16, #tpu.memory_space<vmem>>, %arg3: memref<128x512xbf16, #tpu.memory_space<vmem>>, %arg4: memref<1x512xf32, #tpu.memory_space<vmem>>, %arg5: memref<128x512xbf16, #tpu.memory_space<vmem>>, %arg6: memref<128x512xbf16, #tpu.memory_space<vmem>>, %arg7: memref<1x512xf32, #tpu.memory_space<vmem>>, %arg8: memref<128x128xbf16, #tpu.memory_space<vmem>>, %arg9: memref<1x128xf32, #tpu.memory_space<vmem>>, %arg10: memref<8x128xf32, #tpu.memory_space<vmem>>, %arg11: memref<8x128xf32, #tpu.memory_space<vmem>>, %arg12: memref<8x128xf32, #tpu.memory_space<vmem>>, %arg13: memref<8x128xf32, #tpu.memory_space<vmem>>, %arg14: memref<8x128xf32, #tpu.memory_space<vmem>>, %arg15: memref<64x512xf32, #tpu.memory_space<vmem>>) attributes {dimension_semantics = [#tpu.dimension_semantics<arbitrary>], iteration_bounds = array<i64: 1>, scalar_prefetch = 0 : i64, scratch_operands = 5 : i64, tpu.core_type = #tpu.core_type<tc>, window_params = [{transform_indices = @transform_0, window_bounds = array<i64: 64, 128>}, {pipeline_mode = #tpu.pipeline_mode<synchronous>, transform_indices = @transform_1, window_bounds = array<i64: 128, 512>}, {pipeline_mode = #tpu.pipeline_mode<synchronous>, transform_indices = @transform_2, window_bounds = array<i64: 128, 512>}, {pipeline_mode = #tpu.pipeline_mode<synchronous>, transform_indices = @transform_3, window_bounds = array<i64: 1, 512>}, {pipeline_mode = #tpu.pipeline_mode<synchronous>, transform_indices = @transform_4, window_bounds = array<i64: 128, 512>}, {pipeline_mode = #tpu.pipeline_mode<synchronous>, transform_indices = @transform_5, window_bounds = array<i64: 128, 512>}, {pipeline_mode = #tpu.pipeline_mode<synchronous>, transform_indices = @transform_6, window_bounds = array<i64: 1, 512>}, {pipeline_mode = #tpu.pipeline_mode<synchronous>, transform_indices = @transform_7, window_bounds = array<i64: 128, 128>}, {pipeline_mode = #tpu.pipeline_mode<synchronous>, transform_indices = @transform_8, window_bounds = array<i64: 1, 128>}, {pipeline_mode = #tpu.pipeline_mode<synchronous>, transform_indices = @transform_9, window_bounds = array<i64: 8, 128>}]} {
    %c0_i32 = arith.constant 0 : i32
    %0 = arith.cmpi eq, %arg0, %c0_i32 : i32
    %1 = arith.extui %0 : i1 to i32
    %c0_i32_0 = arith.constant 0 : i32
    %2 = arith.cmpi ne, %1, %c0_i32_0 : i32
    scf.if %2 {
      %cst_123 = arith.constant 0.000000e+00 : f32
      %531 = vector.broadcast %cst_123 : f32 to vector<8x128xf32>
      %c0_124 = arith.constant 0 : index
      %c0_125 = arith.constant 0 : index
      %532 = vector.load %arg11[%c0_124, %c0_125] : memref<8x128xf32, #tpu.memory_space<vmem>>, vector<8x128xf32>
      tpu.vector_store %arg11[%c0_124, %c0_125], %531 {strides = array<i32>} : memref<8x128xf32, #tpu.memory_space<vmem>>, vector<8x128xf32>,
      %cst_126 = arith.constant 0.000000e+00 : f32
      %533 = vector.broadcast %cst_126 : f32 to vector<8x128xf32>
      %c0_127 = arith.constant 0 : index
      %c0_128 = arith.constant 0 : index
      %534 = vector.load %arg12[%c0_127, %c0_128] : memref<8x128xf32, #tpu.memory_space<vmem>>, vector<8x128xf32>
      tpu.vector_store %arg12[%c0_127, %c0_128], %533 {strides = array<i32>} : memref<8x128xf32, #tpu.memory_space<vmem>>, vector<8x128xf32>,
      %cst_129 = arith.constant 0.000000e+00 : f32
      %535 = vector.broadcast %cst_129 : f32 to vector<8x128xf32>
      %c0_130 = arith.constant 0 : index
      %c0_131 = arith.constant 0 : index
      %536 = vector.load %arg13[%c0_130, %c0_131] : memref<8x128xf32, #tpu.memory_space<vmem>>, vector<8x128xf32>
      tpu.vector_store %arg13[%c0_130, %c0_131], %535 {strides = array<i32>} : memref<8x128xf32, #tpu.memory_space<vmem>>, vector<8x128xf32>,
      %cst_132 = arith.constant 0.000000e+00 : f32
      %537 = vector.broadcast %cst_132 : f32 to vector<8x128xf32>
      %c0_133 = arith.constant 0 : index
      %c0_134 = arith.constant 0 : index
      %538 = vector.load %arg14[%c0_133, %c0_134] : memref<8x128xf32, #tpu.memory_space<vmem>>, vector<8x128xf32>
      tpu.vector_store %arg14[%c0_133, %c0_134], %537 {strides = array<i32>} : memref<8x128xf32, #tpu.memory_space<vmem>>, vector<8x128xf32>,
    } else {
    }
    %c0 = arith.constant 0 : index
    %c0_1 = arith.constant 0 : index
    %3 = vector.load %arg1[%c0, %c0_1] : memref<64x128xbf16, #tpu.memory_space<vmem>>, vector<64x128xbf16>
    %c0_2 = arith.constant 0 : index
    %c0_3 = arith.constant 0 : index
    %4 = vector.load %arg2[%c0_2, %c0_3] : memref<128x512xbf16, #tpu.memory_space<vmem>>, vector<128x512xbf16>
    %cst = arith.constant dense<0.000000e+00> : vector<64x512xf32>
    %5 = tpu.matmul %3, %4, %cst {dimension_numbers = #tpu.dot_dimension_numbers<[1], [0], [0], [1], [0, 0, 1, 1], [], []>} : vector<64x128xbf16>, vector<128x512xbf16>, vector<64x512xf32> -> vector<64x512xf32>
    %c0_4 = arith.constant 0 : index
    %c0_5 = arith.constant 0 : index
    %6 = vector.load %arg4[%c0_4, %c0_5] : memref<1x512xf32, #tpu.memory_space<vmem>>, vector<1x512xf32>
    %7 = vector.broadcast %6 : vector<1x512xf32> to vector<64x512xf32>
    %8 = arith.addf %5, %7 : vector<64x512xf32>
    %c0_6 = arith.constant 0 : index
    %c0_7 = arith.constant 0 : index
    %9 = vector.load %arg15[%c0_6, %c0_7] : memref<64x512xf32, #tpu.memory_space<vmem>>, vector<64x512xf32>
    tpu.vector_store %arg15[%c0_6, %c0_7], %8 {strides = array<i32>} : memref<64x512xf32, #tpu.memory_space<vmem>>, vector<64x512xf32>,
    %c0_8 = arith.constant 0 : index
    %c0_9 = arith.constant 0 : index
    %10 = vector.load %arg3[%c0_8, %c0_9] : memref<128x512xbf16, #tpu.memory_space<vmem>>, vector<128x512xbf16>
    %c0_10 = arith.constant 0 : index
    %c0_11 = arith.constant 0 : index
    %11 = vector.load %arg5[%c0_10, %c0_11] : memref<128x512xbf16, #tpu.memory_space<vmem>>, vector<128x512xbf16>
    %c0_12 = arith.constant 0 : index
    %c0_13 = arith.constant 0 : index
    %12 = vector.load %arg6[%c0_12, %c0_13] : memref<128x512xbf16, #tpu.memory_space<vmem>>, vector<128x512xbf16>
    %c0_14 = arith.constant 0 : index
    %c0_15 = arith.constant 0 : index
    %13 = vector.load %arg7[%c0_14, %c0_15] : memref<1x512xf32, #tpu.memory_space<vmem>>, vector<1x512xf32>
    %14 = vector.shape_cast %13 : vector<1x512xf32> to vector<1x512xf32>
    %15 = vector.broadcast %14 : vector<1x512xf32> to vector<8x512xf32>
    %c0_16 = arith.constant 0 : index
    %c0_17 = arith.constant 0 : index
    %16 = vector.load %arg11[%c0_16, %c0_17] : memref<8x128xf32, #tpu.memory_space<vmem>>, vector<8x128xf32>
    %c0_18 = arith.constant 0 : index
    %c0_19 = arith.constant 0 : index
    %17 = vector.load %arg12[%c0_18, %c0_19] : memref<8x128xf32, #tpu.memory_space<vmem>>, vector<8x128xf32>
    %c0_20 = arith.constant 0 : index
    %c0_21 = arith.constant 0 : index
    %18 = vector.load %arg13[%c0_20, %c0_21] : memref<8x128xf32, #tpu.memory_space<vmem>>, vector<8x128xf32>
    %c0_22 = arith.constant 0 : index
    %c0_23 = arith.constant 0 : index
    %19 = vector.load %arg14[%c0_22, %c0_23] : memref<8x128xf32, #tpu.memory_space<vmem>>, vector<8x128xf32>
    %c0_i32_24 = arith.constant 0 : i32
    %c8_i32 = arith.constant 8 : i32
    %20 = arith.muli %c0_i32_24, %c8_i32 : i32
    %21 = tpu.assume_multiple %20, 8 : i32
    %22 = arith.index_cast %21 : i32 to index
    %c0_25 = arith.constant 0 : index
    %23 = vector.load %arg15[%22, %c0_25] : memref<64x512xf32, #tpu.memory_space<vmem>>, vector<8x512xf32>
    %24 = arith.truncf %18 : vector<8x128xf32> to vector<8x128xbf16>
    %cst_26 = arith.constant dense<0.000000e+00> : vector<8x512xf32>
    %25 = tpu.matmul %24, %12, %cst_26 {dimension_numbers = #tpu.dot_dimension_numbers<[1], [0], [0], [1], [0, 0, 1, 1], [], []>} : vector<8x128xbf16>, vector<128x512xbf16>, vector<8x512xf32> -> vector<8x512xf32>
    %26 = arith.truncf %16 : vector<8x128xf32> to vector<8x128xbf16>
    %cst_27 = arith.constant dense<0.000000e+00> : vector<8x512xf32>
    %27 = tpu.matmul %26, %10, %cst_27 {dimension_numbers = #tpu.dot_dimension_numbers<[1], [0], [0], [1], [0, 0, 1, 1], [], []>} : vector<8x128xbf16>, vector<128x512xbf16>, vector<8x512xf32> -> vector<8x512xf32>
    %28 = arith.addf %23, %27 : vector<8x512xf32>
    %29 = vector.extract_strided_slice %28 {offsets = [0, 0], sizes = [8, 128], strides = [1, 1]} : vector<8x512xf32> to vector<8x128xf32>
    %30 = arith.negf %29 : vector<8x128xf32>
    %31 = math.exp %30 : vector<8x128xf32>
    %cst_28 = arith.constant 1.000000e+00 : f32
    %32 = vector.broadcast %cst_28 : f32 to vector<8x128xf32>
    %33 = arith.addf %32, %31 : vector<8x128xf32>
    %34 = arith.divf %32, %33 : vector<8x128xf32>
    %35 = vector.extract_strided_slice %28 {offsets = [0, 128], sizes = [8, 128], strides = [1, 1]} : vector<8x512xf32> to vector<8x128xf32>
    %36 = arith.negf %35 : vector<8x128xf32>
    %37 = math.exp %36 : vector<8x128xf32>
    %cst_29 = arith.constant 1.000000e+00 : f32
    %38 = vector.broadcast %cst_29 : f32 to vector<8x128xf32>
    %39 = arith.addf %38, %37 : vector<8x128xf32>
    %40 = arith.divf %38, %39 : vector<8x128xf32>
    %41 = vector.extract_strided_slice %28 {offsets = [0, 256], sizes = [8, 128], strides = [1, 1]} : vector<8x512xf32> to vector<8x128xf32>
    %42 = math.tanh %41 : vector<8x128xf32>
    %43 = vector.extract_strided_slice %28 {offsets = [0, 384], sizes = [8, 128], strides = [1, 1]} : vector<8x512xf32> to vector<8x128xf32>
    %44 = arith.negf %43 : vector<8x128xf32>
    %45 = math.exp %44 : vector<8x128xf32>
    %cst_30 = arith.constant 1.000000e+00 : f32
    %46 = vector.broadcast %cst_30 : f32 to vector<8x128xf32>
    %47 = arith.addf %46, %45 : vector<8x128xf32>
    %48 = arith.divf %46, %47 : vector<8x128xf32>
    %49 = arith.mulf %40, %17 : vector<8x128xf32>
    %50 = arith.mulf %34, %42 : vector<8x128xf32>
    %51 = arith.addf %49, %50 : vector<8x128xf32>
    %52 = math.tanh %51 : vector<8x128xf32>
    %53 = arith.mulf %48, %52 : vector<8x128xf32>
    %54 = arith.truncf %53 : vector<8x128xf32> to vector<8x128xbf16>
    %cst_31 = arith.constant dense<0.000000e+00> : vector<8x512xf32>
    %55 = tpu.matmul %54, %11, %cst_31 {dimension_numbers = #tpu.dot_dimension_numbers<[1], [0], [0], [1], [0, 0, 1, 1], [], []>} : vector<8x128xbf16>, vector<128x512xbf16>, vector<8x512xf32> -> vector<8x512xf32>
    %56 = arith.addf %55, %25 : vector<8x512xf32>
    %57 = arith.addf %56, %15 : vector<8x512xf32>
    %58 = vector.extract_strided_slice %57 {offsets = [0, 0], sizes = [8, 128], strides = [1, 1]} : vector<8x512xf32> to vector<8x128xf32>
    %59 = arith.negf %58 : vector<8x128xf32>
    %60 = math.exp %59 : vector<8x128xf32>
    %cst_32 = arith.constant 1.000000e+00 : f32
    %61 = vector.broadcast %cst_32 : f32 to vector<8x128xf32>
    %62 = arith.addf %61, %60 : vector<8x128xf32>
    %63 = arith.divf %61, %62 : vector<8x128xf32>
    %64 = vector.extract_strided_slice %57 {offsets = [0, 128], sizes = [8, 128], strides = [1, 1]} : vector<8x512xf32> to vector<8x128xf32>
    %65 = arith.negf %64 : vector<8x128xf32>
    %66 = math.exp %65 : vector<8x128xf32>
    %cst_33 = arith.constant 1.000000e+00 : f32
    %67 = vector.broadcast %cst_33 : f32 to vector<8x128xf32>
    %68 = arith.addf %67, %66 : vector<8x128xf32>
    %69 = arith.divf %67, %68 : vector<8x128xf32>
    %70 = vector.extract_strided_slice %57 {offsets = [0, 256], sizes = [8, 128], strides = [1, 1]} : vector<8x512xf32> to vector<8x128xf32>
    %71 = math.tanh %70 : vector<8x128xf32>
    %72 = vector.extract_strided_slice %57 {offsets = [0, 384], sizes = [8, 128], strides = [1, 1]} : vector<8x512xf32> to vector<8x128xf32>
    %73 = arith.negf %72 : vector<8x128xf32>
    %74 = math.exp %73 : vector<8x128xf32>
    %cst_34 = arith.constant 1.000000e+00 : f32
    %75 = vector.broadcast %cst_34 : f32 to vector<8x128xf32>
    %76 = arith.addf %75, %74 : vector<8x128xf32>
    %77 = arith.divf %75, %76 : vector<8x128xf32>
    %78 = arith.mulf %69, %19 : vector<8x128xf32>
    %79 = arith.mulf %63, %71 : vector<8x128xf32>
    %80 = arith.addf %78, %79 : vector<8x128xf32>
    %81 = math.tanh %80 : vector<8x128xf32>
    %82 = arith.mulf %77, %81 : vector<8x128xf32>
    %c1_i32 = arith.constant 1 : i32
    %c8_i32_35 = arith.constant 8 : i32
    %83 = arith.muli %c1_i32, %c8_i32_35 : i32
    %84 = tpu.assume_multiple %83, 8 : i32
    %85 = arith.index_cast %84 : i32 to index
    %c0_36 = arith.constant 0 : index
    %86 = vector.load %arg15[%85, %c0_36] : memref<64x512xf32, #tpu.memory_space<vmem>>, vector<8x512xf32>
    %87 = arith.truncf %82 : vector<8x128xf32> to vector<8x128xbf16>
    %cst_37 = arith.constant dense<0.000000e+00> : vector<8x512xf32>
    %88 = tpu.matmul %87, %12, %cst_37 {dimension_numbers = #tpu.dot_dimension_numbers<[1], [0], [0], [1], [0, 0, 1, 1], [], []>} : vector<8x128xbf16>, vector<128x512xbf16>, vector<8x512xf32> -> vector<8x512xf32>
    %89 = arith.truncf %53 : vector<8x128xf32> to vector<8x128xbf16>
    %cst_38 = arith.constant dense<0.000000e+00> : vector<8x512xf32>
    %90 = tpu.matmul %89, %10, %cst_38 {dimension_numbers = #tpu.dot_dimension_numbers<[1], [0], [0], [1], [0, 0, 1, 1], [], []>} : vector<8x128xbf16>, vector<128x512xbf16>, vector<8x512xf32> -> vector<8x512xf32>
    %91 = arith.addf %86, %90 : vector<8x512xf32>
    %92 = vector.extract_strided_slice %91 {offsets = [0, 0], sizes = [8, 128], strides = [1, 1]} : vector<8x512xf32> to vector<8x128xf32>
    %93 = arith.negf %92 : vector<8x128xf32>
    %94 = math.exp %93 : vector<8x128xf32>
    %cst_39 = arith.constant 1.000000e+00 : f32
    %95 = vector.broadcast %cst_39 : f32 to vector<8x128xf32>
    %96 = arith.addf %95, %94 : vector<8x128xf32>
    %97 = arith.divf %95, %96 : vector<8x128xf32>
    %98 = vector.extract_strided_slice %91 {offsets = [0, 128], sizes = [8, 128], strides = [1, 1]} : vector<8x512xf32> to vector<8x128xf32>
    %99 = arith.negf %98 : vector<8x128xf32>
    %100 = math.exp %99 : vector<8x128xf32>
    %cst_40 = arith.constant 1.000000e+00 : f32
    %101 = vector.broadcast %cst_40 : f32 to vector<8x128xf32>
    %102 = arith.addf %101, %100 : vector<8x128xf32>
    %103 = arith.divf %101, %102 : vector<8x128xf32>
    %104 = vector.extract_strided_slice %91 {offsets = [0, 256], sizes = [8, 128], strides = [1, 1]} : vector<8x512xf32> to vector<8x128xf32>
    %105 = math.tanh %104 : vector<8x128xf32>
    %106 = vector.extract_strided_slice %91 {offsets = [0, 384], sizes = [8, 128], strides = [1, 1]} : vector<8x512xf32> to vector<8x128xf32>
    %107 = arith.negf %106 : vector<8x128xf32>
    %108 = math.exp %107 : vector<8x128xf32>
    %cst_41 = arith.constant 1.000000e+00 : f32
    %109 = vector.broadcast %cst_41 : f32 to vector<8x128xf32>
    %110 = arith.addf %109, %108 : vector<8x128xf32>
    %111 = arith.divf %109, %110 : vector<8x128xf32>
    %112 = arith.mulf %103, %51 : vector<8x128xf32>
    %113 = arith.mulf %97, %105 : vector<8x128xf32>
    %114 = arith.addf %112, %113 : vector<8x128xf32>
    %115 = math.tanh %114 : vector<8x128xf32>
    %116 = arith.mulf %111, %115 : vector<8x128xf32>
    %117 = arith.truncf %116 : vector<8x128xf32> to vector<8x128xbf16>
    %cst_42 = arith.constant dense<0.000000e+00> : vector<8x512xf32>
    %118 = tpu.matmul %117, %11, %cst_42 {dimension_numbers = #tpu.dot_dimension_numbers<[1], [0], [0], [1], [0, 0, 1, 1], [], []>} : vector<8x128xbf16>, vector<128x512xbf16>, vector<8x512xf32> -> vector<8x512xf32>
    %119 = arith.addf %118, %88 : vector<8x512xf32>
    %120 = arith.addf %119, %15 : vector<8x512xf32>
    %121 = vector.extract_strided_slice %120 {offsets = [0, 0], sizes = [8, 128], strides = [1, 1]} : vector<8x512xf32> to vector<8x128xf32>
    %122 = arith.negf %121 : vector<8x128xf32>
    %123 = math.exp %122 : vector<8x128xf32>
    %cst_43 = arith.constant 1.000000e+00 : f32
    %124 = vector.broadcast %cst_43 : f32 to vector<8x128xf32>
    %125 = arith.addf %124, %123 : vector<8x128xf32>
    %126 = arith.divf %124, %125 : vector<8x128xf32>
    %127 = vector.extract_strided_slice %120 {offsets = [0, 128], sizes = [8, 128], strides = [1, 1]} : vector<8x512xf32> to vector<8x128xf32>
    %128 = arith.negf %127 : vector<8x128xf32>
    %129 = math.exp %128 : vector<8x128xf32>
    %cst_44 = arith.constant 1.000000e+00 : f32
    %130 = vector.broadcast %cst_44 : f32 to vector<8x128xf32>
    %131 = arith.addf %130, %129 : vector<8x128xf32>
    %132 = arith.divf %130, %131 : vector<8x128xf32>
    %133 = vector.extract_strided_slice %120 {offsets = [0, 256], sizes = [8, 128], strides = [1, 1]} : vector<8x512xf32> to vector<8x128xf32>
    %134 = math.tanh %133 : vector<8x128xf32>
    %135 = vector.extract_strided_slice %120 {offsets = [0, 384], sizes = [8, 128], strides = [1, 1]} : vector<8x512xf32> to vector<8x128xf32>
    %136 = arith.negf %135 : vector<8x128xf32>
    %137 = math.exp %136 : vector<8x128xf32>
    %cst_45 = arith.constant 1.000000e+00 : f32
    %138 = vector.broadcast %cst_45 : f32 to vector<8x128xf32>
    %139 = arith.addf %138, %137 : vector<8x128xf32>
    %140 = arith.divf %138, %139 : vector<8x128xf32>
    %141 = arith.mulf %132, %80 : vector<8x128xf32>
    %142 = arith.mulf %126, %134 : vector<8x128xf32>
    %143 = arith.addf %141, %142 : vector<8x128xf32>
    %144 = math.tanh %143 : vector<8x128xf32>
    %145 = arith.mulf %140, %144 : vector<8x128xf32>
    %c2_i32 = arith.constant 2 : i32
    %c8_i32_46 = arith.constant 8 : i32
    %146 = arith.muli %c2_i32, %c8_i32_46 : i32
    %147 = tpu.assume_multiple %146, 8 : i32
    %148 = arith.index_cast %147 : i32 to index
    %c0_47 = arith.constant 0 : index
    %149 = vector.load %arg15[%148, %c0_47] : memref<64x512xf32, #tpu.memory_space<vmem>>, vector<8x512xf32>
    %150 = arith.truncf %145 : vector<8x128xf32> to vector<8x128xbf16>
    %cst_48 = arith.constant dense<0.000000e+00> : vector<8x512xf32>
    %151 = tpu.matmul %150, %12, %cst_48 {dimension_numbers = #tpu.dot_dimension_numbers<[1], [0], [0], [1], [0, 0, 1, 1], [], []>} : vector<8x128xbf16>, vector<128x512xbf16>, vector<8x512xf32> -> vector<8x512xf32>
    %152 = arith.truncf %116 : vector<8x128xf32> to vector<8x128xbf16>
    %cst_49 = arith.constant dense<0.000000e+00> : vector<8x512xf32>
    %153 = tpu.matmul %152, %10, %cst_49 {dimension_numbers = #tpu.dot_dimension_numbers<[1], [0], [0], [1], [0, 0, 1, 1], [], []>} : vector<8x128xbf16>, vector<128x512xbf16>, vector<8x512xf32> -> vector<8x512xf32>
    %154 = arith.addf %149, %153 : vector<8x512xf32>
    %155 = vector.extract_strided_slice %154 {offsets = [0, 0], sizes = [8, 128], strides = [1, 1]} : vector<8x512xf32> to vector<8x128xf32>
    %156 = arith.negf %155 : vector<8x128xf32>
    %157 = math.exp %156 : vector<8x128xf32>
    %cst_50 = arith.constant 1.000000e+00 : f32
    %158 = vector.broadcast %cst_50 : f32 to vector<8x128xf32>
    %159 = arith.addf %158, %157 : vector<8x128xf32>
    %160 = arith.divf %158, %159 : vector<8x128xf32>
    %161 = vector.extract_strided_slice %154 {offsets = [0, 128], sizes = [8, 128], strides = [1, 1]} : vector<8x512xf32> to vector<8x128xf32>
    %162 = arith.negf %161 : vector<8x128xf32>
    %163 = math.exp %162 : vector<8x128xf32>
    %cst_51 = arith.constant 1.000000e+00 : f32
    %164 = vector.broadcast %cst_51 : f32 to vector<8x128xf32>
    %165 = arith.addf %164, %163 : vector<8x128xf32>
    %166 = arith.divf %164, %165 : vector<8x128xf32>
    %167 = vector.extract_strided_slice %154 {offsets = [0, 256], sizes = [8, 128], strides = [1, 1]} : vector<8x512xf32> to vector<8x128xf32>
    %168 = math.tanh %167 : vector<8x128xf32>
    %169 = vector.extract_strided_slice %154 {offsets = [0, 384], sizes = [8, 128], strides = [1, 1]} : vector<8x512xf32> to vector<8x128xf32>
    %170 = arith.negf %169 : vector<8x128xf32>
    %171 = math.exp %170 : vector<8x128xf32>
    %cst_52 = arith.constant 1.000000e+00 : f32
    %172 = vector.broadcast %cst_52 : f32 to vector<8x128xf32>
    %173 = arith.addf %172, %171 : vector<8x128xf32>
    %174 = arith.divf %172, %173 : vector<8x128xf32>
    %175 = arith.mulf %166, %114 : vector<8x128xf32>
    %176 = arith.mulf %160, %168 : vector<8x128xf32>
    %177 = arith.addf %175, %176 : vector<8x128xf32>
    %178 = math.tanh %177 : vector<8x128xf32>
    %179 = arith.mulf %174, %178 : vector<8x128xf32>
    %180 = arith.truncf %179 : vector<8x128xf32> to vector<8x128xbf16>
    %cst_53 = arith.constant dense<0.000000e+00> : vector<8x512xf32>
    %181 = tpu.matmul %180, %11, %cst_53 {dimension_numbers = #tpu.dot_dimension_numbers<[1], [0], [0], [1], [0, 0, 1, 1], [], []>} : vector<8x128xbf16>, vector<128x512xbf16>, vector<8x512xf32> -> vector<8x512xf32>
    %182 = arith.addf %181, %151 : vector<8x512xf32>
    %183 = arith.addf %182, %15 : vector<8x512xf32>
    %184 = vector.extract_strided_slice %183 {offsets = [0, 0], sizes = [8, 128], strides = [1, 1]} : vector<8x512xf32> to vector<8x128xf32>
    %185 = arith.negf %184 : vector<8x128xf32>
    %186 = math.exp %185 : vector<8x128xf32>
    %cst_54 = arith.constant 1.000000e+00 : f32
    %187 = vector.broadcast %cst_54 : f32 to vector<8x128xf32>
    %188 = arith.addf %187, %186 : vector<8x128xf32>
    %189 = arith.divf %187, %188 : vector<8x128xf32>
    %190 = vector.extract_strided_slice %183 {offsets = [0, 128], sizes = [8, 128], strides = [1, 1]} : vector<8x512xf32> to vector<8x128xf32>
    %191 = arith.negf %190 : vector<8x128xf32>
    %192 = math.exp %191 : vector<8x128xf32>
    %cst_55 = arith.constant 1.000000e+00 : f32
    %193 = vector.broadcast %cst_55 : f32 to vector<8x128xf32>
    %194 = arith.addf %193, %192 : vector<8x128xf32>
    %195 = arith.divf %193, %194 : vector<8x128xf32>
    %196 = vector.extract_strided_slice %183 {offsets = [0, 256], sizes = [8, 128], strides = [1, 1]} : vector<8x512xf32> to vector<8x128xf32>
    %197 = math.tanh %196 : vector<8x128xf32>
    %198 = vector.extract_strided_slice %183 {offsets = [0, 384], sizes = [8, 128], strides = [1, 1]} : vector<8x512xf32> to vector<8x128xf32>
    %199 = arith.negf %198 : vector<8x128xf32>
    %200 = math.exp %199 : vector<8x128xf32>
    %cst_56 = arith.constant 1.000000e+00 : f32
    %201 = vector.broadcast %cst_56 : f32 to vector<8x128xf32>
    %202 = arith.addf %201, %200 : vector<8x128xf32>
    %203 = arith.divf %201, %202 : vector<8x128xf32>
    %204 = arith.mulf %195, %143 : vector<8x128xf32>
    %205 = arith.mulf %189, %197 : vector<8x128xf32>
    %206 = arith.addf %204, %205 : vector<8x128xf32>
    %207 = math.tanh %206 : vector<8x128xf32>
    %208 = arith.mulf %203, %207 : vector<8x128xf32>
    %c3_i32 = arith.constant 3 : i32
    %c8_i32_57 = arith.constant 8 : i32
    %209 = arith.muli %c3_i32, %c8_i32_57 : i32
    %210 = tpu.assume_multiple %209, 8 : i32
    %211 = arith.index_cast %210 : i32 to index
    %c0_58 = arith.constant 0 : index
    %212 = vector.load %arg15[%211, %c0_58] : memref<64x512xf32, #tpu.memory_space<vmem>>, vector<8x512xf32>
    %213 = arith.truncf %208 : vector<8x128xf32> to vector<8x128xbf16>
    %cst_59 = arith.constant dense<0.000000e+00> : vector<8x512xf32>
    %214 = tpu.matmul %213, %12, %cst_59 {dimension_numbers = #tpu.dot_dimension_numbers<[1], [0], [0], [1], [0, 0, 1, 1], [], []>} : vector<8x128xbf16>, vector<128x512xbf16>, vector<8x512xf32> -> vector<8x512xf32>
    %215 = arith.truncf %179 : vector<8x128xf32> to vector<8x128xbf16>
    %cst_60 = arith.constant dense<0.000000e+00> : vector<8x512xf32>
    %216 = tpu.matmul %215, %10, %cst_60 {dimension_numbers = #tpu.dot_dimension_numbers<[1], [0], [0], [1], [0, 0, 1, 1], [], []>} : vector<8x128xbf16>, vector<128x512xbf16>, vector<8x512xf32> -> vector<8x512xf32>
    %217 = arith.addf %212, %216 : vector<8x512xf32>
    %218 = vector.extract_strided_slice %217 {offsets = [0, 0], sizes = [8, 128], strides = [1, 1]} : vector<8x512xf32> to vector<8x128xf32>
    %219 = arith.negf %218 : vector<8x128xf32>
    %220 = math.exp %219 : vector<8x128xf32>
    %cst_61 = arith.constant 1.000000e+00 : f32
    %221 = vector.broadcast %cst_61 : f32 to vector<8x128xf32>
    %222 = arith.addf %221, %220 : vector<8x128xf32>
    %223 = arith.divf %221, %222 : vector<8x128xf32>
    %224 = vector.extract_strided_slice %217 {offsets = [0, 128], sizes = [8, 128], strides = [1, 1]} : vector<8x512xf32> to vector<8x128xf32>
    %225 = arith.negf %224 : vector<8x128xf32>
    %226 = math.exp %225 : vector<8x128xf32>
    %cst_62 = arith.constant 1.000000e+00 : f32
    %227 = vector.broadcast %cst_62 : f32 to vector<8x128xf32>
    %228 = arith.addf %227, %226 : vector<8x128xf32>
    %229 = arith.divf %227, %228 : vector<8x128xf32>
    %230 = vector.extract_strided_slice %217 {offsets = [0, 256], sizes = [8, 128], strides = [1, 1]} : vector<8x512xf32> to vector<8x128xf32>
    %231 = math.tanh %230 : vector<8x128xf32>
    %232 = vector.extract_strided_slice %217 {offsets = [0, 384], sizes = [8, 128], strides = [1, 1]} : vector<8x512xf32> to vector<8x128xf32>
    %233 = arith.negf %232 : vector<8x128xf32>
    %234 = math.exp %233 : vector<8x128xf32>
    %cst_63 = arith.constant 1.000000e+00 : f32
    %235 = vector.broadcast %cst_63 : f32 to vector<8x128xf32>
    %236 = arith.addf %235, %234 : vector<8x128xf32>
    %237 = arith.divf %235, %236 : vector<8x128xf32>
    %238 = arith.mulf %229, %177 : vector<8x128xf32>
    %239 = arith.mulf %223, %231 : vector<8x128xf32>
    %240 = arith.addf %238, %239 : vector<8x128xf32>
    %241 = math.tanh %240 : vector<8x128xf32>
    %242 = arith.mulf %237, %241 : vector<8x128xf32>
    %243 = arith.truncf %242 : vector<8x128xf32> to vector<8x128xbf16>
    %cst_64 = arith.constant dense<0.000000e+00> : vector<8x512xf32>
    %244 = tpu.matmul %243, %11, %cst_64 {dimension_numbers = #tpu.dot_dimension_numbers<[1], [0], [0], [1], [0, 0, 1, 1], [], []>} : vector<8x128xbf16>, vector<128x512xbf16>, vector<8x512xf32> -> vector<8x512xf32>
    %245 = arith.addf %244, %214 : vector<8x512xf32>
    %246 = arith.addf %245, %15 : vector<8x512xf32>
    %247 = vector.extract_strided_slice %246 {offsets = [0, 0], sizes = [8, 128], strides = [1, 1]} : vector<8x512xf32> to vector<8x128xf32>
    %248 = arith.negf %247 : vector<8x128xf32>
    %249 = math.exp %248 : vector<8x128xf32>
    %cst_65 = arith.constant 1.000000e+00 : f32
    %250 = vector.broadcast %cst_65 : f32 to vector<8x128xf32>
    %251 = arith.addf %250, %249 : vector<8x128xf32>
    %252 = arith.divf %250, %251 : vector<8x128xf32>
    %253 = vector.extract_strided_slice %246 {offsets = [0, 128], sizes = [8, 128], strides = [1, 1]} : vector<8x512xf32> to vector<8x128xf32>
    %254 = arith.negf %253 : vector<8x128xf32>
    %255 = math.exp %254 : vector<8x128xf32>
    %cst_66 = arith.constant 1.000000e+00 : f32
    %256 = vector.broadcast %cst_66 : f32 to vector<8x128xf32>
    %257 = arith.addf %256, %255 : vector<8x128xf32>
    %258 = arith.divf %256, %257 : vector<8x128xf32>
    %259 = vector.extract_strided_slice %246 {offsets = [0, 256], sizes = [8, 128], strides = [1, 1]} : vector<8x512xf32> to vector<8x128xf32>
    %260 = math.tanh %259 : vector<8x128xf32>
    %261 = vector.extract_strided_slice %246 {offsets = [0, 384], sizes = [8, 128], strides = [1, 1]} : vector<8x512xf32> to vector<8x128xf32>
    %262 = arith.negf %261 : vector<8x128xf32>
    %263 = math.exp %262 : vector<8x128xf32>
    %cst_67 = arith.constant 1.000000e+00 : f32
    %264 = vector.broadcast %cst_67 : f32 to vector<8x128xf32>
    %265 = arith.addf %264, %263 : vector<8x128xf32>
    %266 = arith.divf %264, %265 : vector<8x128xf32>
    %267 = arith.mulf %258, %206 : vector<8x128xf32>
    %268 = arith.mulf %252, %260 : vector<8x128xf32>
    %269 = arith.addf %267, %268 : vector<8x128xf32>
    %270 = math.tanh %269 : vector<8x128xf32>
    %271 = arith.mulf %266, %270 : vector<8x128xf32>
    %c4_i32 = arith.constant 4 : i32
    %c8_i32_68 = arith.constant 8 : i32
    %272 = arith.muli %c4_i32, %c8_i32_68 : i32
    %273 = tpu.assume_multiple %272, 8 : i32
    %274 = arith.index_cast %273 : i32 to index
    %c0_69 = arith.constant 0 : index
    %275 = vector.load %arg15[%274, %c0_69] : memref<64x512xf32, #tpu.memory_space<vmem>>, vector<8x512xf32>
    %276 = arith.truncf %271 : vector<8x128xf32> to vector<8x128xbf16>
    %cst_70 = arith.constant dense<0.000000e+00> : vector<8x512xf32>
    %277 = tpu.matmul %276, %12, %cst_70 {dimension_numbers = #tpu.dot_dimension_numbers<[1], [0], [0], [1], [0, 0, 1, 1], [], []>} : vector<8x128xbf16>, vector<128x512xbf16>, vector<8x512xf32> -> vector<8x512xf32>
    %278 = arith.truncf %242 : vector<8x128xf32> to vector<8x128xbf16>
    %cst_71 = arith.constant dense<0.000000e+00> : vector<8x512xf32>
    %279 = tpu.matmul %278, %10, %cst_71 {dimension_numbers = #tpu.dot_dimension_numbers<[1], [0], [0], [1], [0, 0, 1, 1], [], []>} : vector<8x128xbf16>, vector<128x512xbf16>, vector<8x512xf32> -> vector<8x512xf32>
    %280 = arith.addf %275, %279 : vector<8x512xf32>
    %281 = vector.extract_strided_slice %280 {offsets = [0, 0], sizes = [8, 128], strides = [1, 1]} : vector<8x512xf32> to vector<8x128xf32>
    %282 = arith.negf %281 : vector<8x128xf32>
    %283 = math.exp %282 : vector<8x128xf32>
    %cst_72 = arith.constant 1.000000e+00 : f32
    %284 = vector.broadcast %cst_72 : f32 to vector<8x128xf32>
    %285 = arith.addf %284, %283 : vector<8x128xf32>
    %286 = arith.divf %284, %285 : vector<8x128xf32>
    %287 = vector.extract_strided_slice %280 {offsets = [0, 128], sizes = [8, 128], strides = [1, 1]} : vector<8x512xf32> to vector<8x128xf32>
    %288 = arith.negf %287 : vector<8x128xf32>
    %289 = math.exp %288 : vector<8x128xf32>
    %cst_73 = arith.constant 1.000000e+00 : f32
    %290 = vector.broadcast %cst_73 : f32 to vector<8x128xf32>
    %291 = arith.addf %290, %289 : vector<8x128xf32>
    %292 = arith.divf %290, %291 : vector<8x128xf32>
    %293 = vector.extract_strided_slice %280 {offsets = [0, 256], sizes = [8, 128], strides = [1, 1]} : vector<8x512xf32> to vector<8x128xf32>
    %294 = math.tanh %293 : vector<8x128xf32>
    %295 = vector.extract_strided_slice %280 {offsets = [0, 384], sizes = [8, 128], strides = [1, 1]} : vector<8x512xf32> to vector<8x128xf32>
    %296 = arith.negf %295 : vector<8x128xf32>
    %297 = math.exp %296 : vector<8x128xf32>
    %cst_74 = arith.constant 1.000000e+00 : f32
    %298 = vector.broadcast %cst_74 : f32 to vector<8x128xf32>
    %299 = arith.addf %298, %297 : vector<8x128xf32>
    %300 = arith.divf %298, %299 : vector<8x128xf32>
    %301 = arith.mulf %292, %240 : vector<8x128xf32>
    %302 = arith.mulf %286, %294 : vector<8x128xf32>
    %303 = arith.addf %301, %302 : vector<8x128xf32>
    %304 = math.tanh %303 : vector<8x128xf32>
    %305 = arith.mulf %300, %304 : vector<8x128xf32>
    %306 = arith.truncf %305 : vector<8x128xf32> to vector<8x128xbf16>
    %cst_75 = arith.constant dense<0.000000e+00> : vector<8x512xf32>
    %307 = tpu.matmul %306, %11, %cst_75 {dimension_numbers = #tpu.dot_dimension_numbers<[1], [0], [0], [1], [0, 0, 1, 1], [], []>} : vector<8x128xbf16>, vector<128x512xbf16>, vector<8x512xf32> -> vector<8x512xf32>
    %308 = arith.addf %307, %277 : vector<8x512xf32>
    %309 = arith.addf %308, %15 : vector<8x512xf32>
    %310 = vector.extract_strided_slice %309 {offsets = [0, 0], sizes = [8, 128], strides = [1, 1]} : vector<8x512xf32> to vector<8x128xf32>
    %311 = arith.negf %310 : vector<8x128xf32>
    %312 = math.exp %311 : vector<8x128xf32>
    %cst_76 = arith.constant 1.000000e+00 : f32
    %313 = vector.broadcast %cst_76 : f32 to vector<8x128xf32>
    %314 = arith.addf %313, %312 : vector<8x128xf32>
    %315 = arith.divf %313, %314 : vector<8x128xf32>
    %316 = vector.extract_strided_slice %309 {offsets = [0, 128], sizes = [8, 128], strides = [1, 1]} : vector<8x512xf32> to vector<8x128xf32>
    %317 = arith.negf %316 : vector<8x128xf32>
    %318 = math.exp %317 : vector<8x128xf32>
    %cst_77 = arith.constant 1.000000e+00 : f32
    %319 = vector.broadcast %cst_77 : f32 to vector<8x128xf32>
    %320 = arith.addf %319, %318 : vector<8x128xf32>
    %321 = arith.divf %319, %320 : vector<8x128xf32>
    %322 = vector.extract_strided_slice %309 {offsets = [0, 256], sizes = [8, 128], strides = [1, 1]} : vector<8x512xf32> to vector<8x128xf32>
    %323 = math.tanh %322 : vector<8x128xf32>
    %324 = vector.extract_strided_slice %309 {offsets = [0, 384], sizes = [8, 128], strides = [1, 1]} : vector<8x512xf32> to vector<8x128xf32>
    %325 = arith.negf %324 : vector<8x128xf32>
    %326 = math.exp %325 : vector<8x128xf32>
    %cst_78 = arith.constant 1.000000e+00 : f32
    %327 = vector.broadcast %cst_78 : f32 to vector<8x128xf32>
    %328 = arith.addf %327, %326 : vector<8x128xf32>
    %329 = arith.divf %327, %328 : vector<8x128xf32>
    %330 = arith.mulf %321, %269 : vector<8x128xf32>
    %331 = arith.mulf %315, %323 : vector<8x128xf32>
    %332 = arith.addf %330, %331 : vector<8x128xf32>
    %333 = math.tanh %332 : vector<8x128xf32>
    %334 = arith.mulf %329, %333 : vector<8x128xf32>
    %c5_i32 = arith.constant 5 : i32
    %c8_i32_79 = arith.constant 8 : i32
    %335 = arith.muli %c5_i32, %c8_i32_79 : i32
    %336 = tpu.assume_multiple %335, 8 : i32
    %337 = arith.index_cast %336 : i32 to index
    %c0_80 = arith.constant 0 : index
    %338 = vector.load %arg15[%337, %c0_80] : memref<64x512xf32, #tpu.memory_space<vmem>>, vector<8x512xf32>
    %339 = arith.truncf %334 : vector<8x128xf32> to vector<8x128xbf16>
    %cst_81 = arith.constant dense<0.000000e+00> : vector<8x512xf32>
    %340 = tpu.matmul %339, %12, %cst_81 {dimension_numbers = #tpu.dot_dimension_numbers<[1], [0], [0], [1], [0, 0, 1, 1], [], []>} : vector<8x128xbf16>, vector<128x512xbf16>, vector<8x512xf32> -> vector<8x512xf32>
    %341 = arith.truncf %305 : vector<8x128xf32> to vector<8x128xbf16>
    %cst_82 = arith.constant dense<0.000000e+00> : vector<8x512xf32>
    %342 = tpu.matmul %341, %10, %cst_82 {dimension_numbers = #tpu.dot_dimension_numbers<[1], [0], [0], [1], [0, 0, 1, 1], [], []>} : vector<8x128xbf16>, vector<128x512xbf16>, vector<8x512xf32> -> vector<8x512xf32>
    %343 = arith.addf %338, %342 : vector<8x512xf32>
    %344 = vector.extract_strided_slice %343 {offsets = [0, 0], sizes = [8, 128], strides = [1, 1]} : vector<8x512xf32> to vector<8x128xf32>
    %345 = arith.negf %344 : vector<8x128xf32>
    %346 = math.exp %345 : vector<8x128xf32>
    %cst_83 = arith.constant 1.000000e+00 : f32
    %347 = vector.broadcast %cst_83 : f32 to vector<8x128xf32>
    %348 = arith.addf %347, %346 : vector<8x128xf32>
    %349 = arith.divf %347, %348 : vector<8x128xf32>
    %350 = vector.extract_strided_slice %343 {offsets = [0, 128], sizes = [8, 128], strides = [1, 1]} : vector<8x512xf32> to vector<8x128xf32>
    %351 = arith.negf %350 : vector<8x128xf32>
    %352 = math.exp %351 : vector<8x128xf32>
    %cst_84 = arith.constant 1.000000e+00 : f32
    %353 = vector.broadcast %cst_84 : f32 to vector<8x128xf32>
    %354 = arith.addf %353, %352 : vector<8x128xf32>
    %355 = arith.divf %353, %354 : vector<8x128xf32>
    %356 = vector.extract_strided_slice %343 {offsets = [0, 256], sizes = [8, 128], strides = [1, 1]} : vector<8x512xf32> to vector<8x128xf32>
    %357 = math.tanh %356 : vector<8x128xf32>
    %358 = vector.extract_strided_slice %343 {offsets = [0, 384], sizes = [8, 128], strides = [1, 1]} : vector<8x512xf32> to vector<8x128xf32>
    %359 = arith.negf %358 : vector<8x128xf32>
    %360 = math.exp %359 : vector<8x128xf32>
    %cst_85 = arith.constant 1.000000e+00 : f32
    %361 = vector.broadcast %cst_85 : f32 to vector<8x128xf32>
    %362 = arith.addf %361, %360 : vector<8x128xf32>
    %363 = arith.divf %361, %362 : vector<8x128xf32>
    %364 = arith.mulf %355, %303 : vector<8x128xf32>
    %365 = arith.mulf %349, %357 : vector<8x128xf32>
    %366 = arith.addf %364, %365 : vector<8x128xf32>
    %367 = math.tanh %366 : vector<8x128xf32>
    %368 = arith.mulf %363, %367 : vector<8x128xf32>
    %369 = arith.truncf %368 : vector<8x128xf32> to vector<8x128xbf16>
    %cst_86 = arith.constant dense<0.000000e+00> : vector<8x512xf32>
    %370 = tpu.matmul %369, %11, %cst_86 {dimension_numbers = #tpu.dot_dimension_numbers<[1], [0], [0], [1], [0, 0, 1, 1], [], []>} : vector<8x128xbf16>, vector<128x512xbf16>, vector<8x512xf32> -> vector<8x512xf32>
    %371 = arith.addf %370, %340 : vector<8x512xf32>
    %372 = arith.addf %371, %15 : vector<8x512xf32>
    %373 = vector.extract_strided_slice %372 {offsets = [0, 0], sizes = [8, 128], strides = [1, 1]} : vector<8x512xf32> to vector<8x128xf32>
    %374 = arith.negf %373 : vector<8x128xf32>
    %375 = math.exp %374 : vector<8x128xf32>
    %cst_87 = arith.constant 1.000000e+00 : f32
    %376 = vector.broadcast %cst_87 : f32 to vector<8x128xf32>
    %377 = arith.addf %376, %375 : vector<8x128xf32>
    %378 = arith.divf %376, %377 : vector<8x128xf32>
    %379 = vector.extract_strided_slice %372 {offsets = [0, 128], sizes = [8, 128], strides = [1, 1]} : vector<8x512xf32> to vector<8x128xf32>
    %380 = arith.negf %379 : vector<8x128xf32>
    %381 = math.exp %380 : vector<8x128xf32>
    %cst_88 = arith.constant 1.000000e+00 : f32
    %382 = vector.broadcast %cst_88 : f32 to vector<8x128xf32>
    %383 = arith.addf %382, %381 : vector<8x128xf32>
    %384 = arith.divf %382, %383 : vector<8x128xf32>
    %385 = vector.extract_strided_slice %372 {offsets = [0, 256], sizes = [8, 128], strides = [1, 1]} : vector<8x512xf32> to vector<8x128xf32>
    %386 = math.tanh %385 : vector<8x128xf32>
    %387 = vector.extract_strided_slice %372 {offsets = [0, 384], sizes = [8, 128], strides = [1, 1]} : vector<8x512xf32> to vector<8x128xf32>
    %388 = arith.negf %387 : vector<8x128xf32>
    %389 = math.exp %388 : vector<8x128xf32>
    %cst_89 = arith.constant 1.000000e+00 : f32
    %390 = vector.broadcast %cst_89 : f32 to vector<8x128xf32>
    %391 = arith.addf %390, %389 : vector<8x128xf32>
    %392 = arith.divf %390, %391 : vector<8x128xf32>
    %393 = arith.mulf %384, %332 : vector<8x128xf32>
    %394 = arith.mulf %378, %386 : vector<8x128xf32>
    %395 = arith.addf %393, %394 : vector<8x128xf32>
    %396 = math.tanh %395 : vector<8x128xf32>
    %397 = arith.mulf %392, %396 : vector<8x128xf32>
    %c6_i32 = arith.constant 6 : i32
    %c8_i32_90 = arith.constant 8 : i32
    %398 = arith.muli %c6_i32, %c8_i32_90 : i32
    %399 = tpu.assume_multiple %398, 8 : i32
    %400 = arith.index_cast %399 : i32 to index
    %c0_91 = arith.constant 0 : index
    %401 = vector.load %arg15[%400, %c0_91] : memref<64x512xf32, #tpu.memory_space<vmem>>, vector<8x512xf32>
    %402 = arith.truncf %397 : vector<8x128xf32> to vector<8x128xbf16>
    %cst_92 = arith.constant dense<0.000000e+00> : vector<8x512xf32>
    %403 = tpu.matmul %402, %12, %cst_92 {dimension_numbers = #tpu.dot_dimension_numbers<[1], [0], [0], [1], [0, 0, 1, 1], [], []>} : vector<8x128xbf16>, vector<128x512xbf16>, vector<8x512xf32> -> vector<8x512xf32>
    %404 = arith.truncf %368 : vector<8x128xf32> to vector<8x128xbf16>
    %cst_93 = arith.constant dense<0.000000e+00> : vector<8x512xf32>
    %405 = tpu.matmul %404, %10, %cst_93 {dimension_numbers = #tpu.dot_dimension_numbers<[1], [0], [0], [1], [0, 0, 1, 1], [], []>} : vector<8x128xbf16>, vector<128x512xbf16>, vector<8x512xf32> -> vector<8x512xf32>
    %406 = arith.addf %401, %405 : vector<8x512xf32>
    %407 = vector.extract_strided_slice %406 {offsets = [0, 0], sizes = [8, 128], strides = [1, 1]} : vector<8x512xf32> to vector<8x128xf32>
    %408 = arith.negf %407 : vector<8x128xf32>
    %409 = math.exp %408 : vector<8x128xf32>
    %cst_94 = arith.constant 1.000000e+00 : f32
    %410 = vector.broadcast %cst_94 : f32 to vector<8x128xf32>
    %411 = arith.addf %410, %409 : vector<8x128xf32>
    %412 = arith.divf %410, %411 : vector<8x128xf32>
    %413 = vector.extract_strided_slice %406 {offsets = [0, 128], sizes = [8, 128], strides = [1, 1]} : vector<8x512xf32> to vector<8x128xf32>
    %414 = arith.negf %413 : vector<8x128xf32>
    %415 = math.exp %414 : vector<8x128xf32>
    %cst_95 = arith.constant 1.000000e+00 : f32
    %416 = vector.broadcast %cst_95 : f32 to vector<8x128xf32>
    %417 = arith.addf %416, %415 : vector<8x128xf32>
    %418 = arith.divf %416, %417 : vector<8x128xf32>
    %419 = vector.extract_strided_slice %406 {offsets = [0, 256], sizes = [8, 128], strides = [1, 1]} : vector<8x512xf32> to vector<8x128xf32>
    %420 = math.tanh %419 : vector<8x128xf32>
    %421 = vector.extract_strided_slice %406 {offsets = [0, 384], sizes = [8, 128], strides = [1, 1]} : vector<8x512xf32> to vector<8x128xf32>
    %422 = arith.negf %421 : vector<8x128xf32>
    %423 = math.exp %422 : vector<8x128xf32>
    %cst_96 = arith.constant 1.000000e+00 : f32
    %424 = vector.broadcast %cst_96 : f32 to vector<8x128xf32>
    %425 = arith.addf %424, %423 : vector<8x128xf32>
    %426 = arith.divf %424, %425 : vector<8x128xf32>
    %427 = arith.mulf %418, %366 : vector<8x128xf32>
    %428 = arith.mulf %412, %420 : vector<8x128xf32>
    %429 = arith.addf %427, %428 : vector<8x128xf32>
    %430 = math.tanh %429 : vector<8x128xf32>
    %431 = arith.mulf %426, %430 : vector<8x128xf32>
    %432 = arith.truncf %431 : vector<8x128xf32> to vector<8x128xbf16>
    %cst_97 = arith.constant dense<0.000000e+00> : vector<8x512xf32>
    %433 = tpu.matmul %432, %11, %cst_97 {dimension_numbers = #tpu.dot_dimension_numbers<[1], [0], [0], [1], [0, 0, 1, 1], [], []>} : vector<8x128xbf16>, vector<128x512xbf16>, vector<8x512xf32> -> vector<8x512xf32>
    %434 = arith.addf %433, %403 : vector<8x512xf32>
    %435 = arith.addf %434, %15 : vector<8x512xf32>
    %436 = vector.extract_strided_slice %435 {offsets = [0, 0], sizes = [8, 128], strides = [1, 1]} : vector<8x512xf32> to vector<8x128xf32>
    %437 = arith.negf %436 : vector<8x128xf32>
    %438 = math.exp %437 : vector<8x128xf32>
    %cst_98 = arith.constant 1.000000e+00 : f32
    %439 = vector.broadcast %cst_98 : f32 to vector<8x128xf32>
    %440 = arith.addf %439, %438 : vector<8x128xf32>
    %441 = arith.divf %439, %440 : vector<8x128xf32>
    %442 = vector.extract_strided_slice %435 {offsets = [0, 128], sizes = [8, 128], strides = [1, 1]} : vector<8x512xf32> to vector<8x128xf32>
    %443 = arith.negf %442 : vector<8x128xf32>
    %444 = math.exp %443 : vector<8x128xf32>
    %cst_99 = arith.constant 1.000000e+00 : f32
    %445 = vector.broadcast %cst_99 : f32 to vector<8x128xf32>
    %446 = arith.addf %445, %444 : vector<8x128xf32>
    %447 = arith.divf %445, %446 : vector<8x128xf32>
    %448 = vector.extract_strided_slice %435 {offsets = [0, 256], sizes = [8, 128], strides = [1, 1]} : vector<8x512xf32> to vector<8x128xf32>
    %449 = math.tanh %448 : vector<8x128xf32>
    %450 = vector.extract_strided_slice %435 {offsets = [0, 384], sizes = [8, 128], strides = [1, 1]} : vector<8x512xf32> to vector<8x128xf32>
    %451 = arith.negf %450 : vector<8x128xf32>
    %452 = math.exp %451 : vector<8x128xf32>
    %cst_100 = arith.constant 1.000000e+00 : f32
    %453 = vector.broadcast %cst_100 : f32 to vector<8x128xf32>
    %454 = arith.addf %453, %452 : vector<8x128xf32>
    %455 = arith.divf %453, %454 : vector<8x128xf32>
    %456 = arith.mulf %447, %395 : vector<8x128xf32>
    %457 = arith.mulf %441, %449 : vector<8x128xf32>
    %458 = arith.addf %456, %457 : vector<8x128xf32>
    %459 = math.tanh %458 : vector<8x128xf32>
    %460 = arith.mulf %455, %459 : vector<8x128xf32>
    %c7_i32 = arith.constant 7 : i32
    %c8_i32_101 = arith.constant 8 : i32
    %461 = arith.muli %c7_i32, %c8_i32_101 : i32
    %462 = tpu.assume_multiple %461, 8 : i32
    %463 = arith.index_cast %462 : i32 to index
    %c0_102 = arith.constant 0 : index
    %464 = vector.load %arg15[%463, %c0_102] : memref<64x512xf32, #tpu.memory_space<vmem>>, vector<8x512xf32>
    %465 = arith.truncf %460 : vector<8x128xf32> to vector<8x128xbf16>
    %cst_103 = arith.constant dense<0.000000e+00> : vector<8x512xf32>
    %466 = tpu.matmul %465, %12, %cst_103 {dimension_numbers = #tpu.dot_dimension_numbers<[1], [0], [0], [1], [0, 0, 1, 1], [], []>} : vector<8x128xbf16>, vector<128x512xbf16>, vector<8x512xf32> -> vector<8x512xf32>
    %467 = arith.truncf %431 : vector<8x128xf32> to vector<8x128xbf16>
    %cst_104 = arith.constant dense<0.000000e+00> : vector<8x512xf32>
    %468 = tpu.matmul %467, %10, %cst_104 {dimension_numbers = #tpu.dot_dimension_numbers<[1], [0], [0], [1], [0, 0, 1, 1], [], []>} : vector<8x128xbf16>, vector<128x512xbf16>, vector<8x512xf32> -> vector<8x512xf32>
    %469 = arith.addf %464, %468 : vector<8x512xf32>
    %470 = vector.extract_strided_slice %469 {offsets = [0, 0], sizes = [8, 128], strides = [1, 1]} : vector<8x512xf32> to vector<8x128xf32>
    %471 = arith.negf %470 : vector<8x128xf32>
    %472 = math.exp %471 : vector<8x128xf32>
    %cst_105 = arith.constant 1.000000e+00 : f32
    %473 = vector.broadcast %cst_105 : f32 to vector<8x128xf32>
    %474 = arith.addf %473, %472 : vector<8x128xf32>
    %475 = arith.divf %473, %474 : vector<8x128xf32>
    %476 = vector.extract_strided_slice %469 {offsets = [0, 128], sizes = [8, 128], strides = [1, 1]} : vector<8x512xf32> to vector<8x128xf32>
    %477 = arith.negf %476 : vector<8x128xf32>
    %478 = math.exp %477 : vector<8x128xf32>
    %cst_106 = arith.constant 1.000000e+00 : f32
    %479 = vector.broadcast %cst_106 : f32 to vector<8x128xf32>
    %480 = arith.addf %479, %478 : vector<8x128xf32>
    %481 = arith.divf %479, %480 : vector<8x128xf32>
    %482 = vector.extract_strided_slice %469 {offsets = [0, 256], sizes = [8, 128], strides = [1, 1]} : vector<8x512xf32> to vector<8x128xf32>
    %483 = math.tanh %482 : vector<8x128xf32>
    %484 = vector.extract_strided_slice %469 {offsets = [0, 384], sizes = [8, 128], strides = [1, 1]} : vector<8x512xf32> to vector<8x128xf32>
    %485 = arith.negf %484 : vector<8x128xf32>
    %486 = math.exp %485 : vector<8x128xf32>
    %cst_107 = arith.constant 1.000000e+00 : f32
    %487 = vector.broadcast %cst_107 : f32 to vector<8x128xf32>
    %488 = arith.addf %487, %486 : vector<8x128xf32>
    %489 = arith.divf %487, %488 : vector<8x128xf32>
    %490 = arith.mulf %481, %429 : vector<8x128xf32>
    %491 = arith.mulf %475, %483 : vector<8x128xf32>
    %492 = arith.addf %490, %491 : vector<8x128xf32>
    %493 = math.tanh %492 : vector<8x128xf32>
    %494 = arith.mulf %489, %493 : vector<8x128xf32>
    %495 = arith.truncf %494 : vector<8x128xf32> to vector<8x128xbf16>
    %cst_108 = arith.constant dense<0.000000e+00> : vector<8x512xf32>
    %496 = tpu.matmul %495, %11, %cst_108 {dimension_numbers = #tpu.dot_dimension_numbers<[1], [0], [0], [1], [0, 0, 1, 1], [], []>} : vector<8x128xbf16>, vector<128x512xbf16>, vector<8x512xf32> -> vector<8x512xf32>
    %497 = arith.addf %496, %466 : vector<8x512xf32>
    %498 = arith.addf %497, %15 : vector<8x512xf32>
    %499 = vector.extract_strided_slice %498 {offsets = [0, 0], sizes = [8, 128], strides = [1, 1]} : vector<8x512xf32> to vector<8x128xf32>
    %500 = arith.negf %499 : vector<8x128xf32>
    %501 = math.exp %500 : vector<8x128xf32>
    %cst_109 = arith.constant 1.000000e+00 : f32
    %502 = vector.broadcast %cst_109 : f32 to vector<8x128xf32>
    %503 = arith.addf %502, %501 : vector<8x128xf32>
    %504 = arith.divf %502, %503 : vector<8x128xf32>
    %505 = vector.extract_strided_slice %498 {offsets = [0, 128], sizes = [8, 128], strides = [1, 1]} : vector<8x512xf32> to vector<8x128xf32>
    %506 = arith.negf %505 : vector<8x128xf32>
    %507 = math.exp %506 : vector<8x128xf32>
    %cst_110 = arith.constant 1.000000e+00 : f32
    %508 = vector.broadcast %cst_110 : f32 to vector<8x128xf32>
    %509 = arith.addf %508, %507 : vector<8x128xf32>
    %510 = arith.divf %508, %509 : vector<8x128xf32>
    %511 = vector.extract_strided_slice %498 {offsets = [0, 256], sizes = [8, 128], strides = [1, 1]} : vector<8x512xf32> to vector<8x128xf32>
    %512 = math.tanh %511 : vector<8x128xf32>
    %513 = vector.extract_strided_slice %498 {offsets = [0, 384], sizes = [8, 128], strides = [1, 1]} : vector<8x512xf32> to vector<8x128xf32>
    %514 = arith.negf %513 : vector<8x128xf32>
    %515 = math.exp %514 : vector<8x128xf32>
    %cst_111 = arith.constant 1.000000e+00 : f32
    %516 = vector.broadcast %cst_111 : f32 to vector<8x128xf32>
    %517 = arith.addf %516, %515 : vector<8x128xf32>
    %518 = arith.divf %516, %517 : vector<8x128xf32>
    %519 = arith.mulf %510, %458 : vector<8x128xf32>
    %520 = arith.mulf %504, %512 : vector<8x128xf32>
    %521 = arith.addf %519, %520 : vector<8x128xf32>
    %522 = math.tanh %521 : vector<8x128xf32>
    %523 = arith.mulf %518, %522 : vector<8x128xf32>
    %c8_i32_112 = arith.constant 8 : i32
    %c0_113 = arith.constant 0 : index
    %c0_114 = arith.constant 0 : index
    %524 = vector.load %arg11[%c0_113, %c0_114] : memref<8x128xf32, #tpu.memory_space<vmem>>, vector<8x128xf32>
    tpu.vector_store %arg11[%c0_113, %c0_114], %494 {strides = array<i32>} : memref<8x128xf32, #tpu.memory_space<vmem>>, vector<8x128xf32>,
    %c0_115 = arith.constant 0 : index
    %c0_116 = arith.constant 0 : index
    %525 = vector.load %arg12[%c0_115, %c0_116] : memref<8x128xf32, #tpu.memory_space<vmem>>, vector<8x128xf32>
    tpu.vector_store %arg12[%c0_115, %c0_116], %492 {strides = array<i32>} : memref<8x128xf32, #tpu.memory_space<vmem>>, vector<8x128xf32>,
    %c0_117 = arith.constant 0 : index
    %c0_118 = arith.constant 0 : index
    %526 = vector.load %arg13[%c0_117, %c0_118] : memref<8x128xf32, #tpu.memory_space<vmem>>, vector<8x128xf32>
    tpu.vector_store %arg13[%c0_117, %c0_118], %523 {strides = array<i32>} : memref<8x128xf32, #tpu.memory_space<vmem>>, vector<8x128xf32>,
    %c0_119 = arith.constant 0 : index
    %c0_120 = arith.constant 0 : index
    %527 = vector.load %arg14[%c0_119, %c0_120] : memref<8x128xf32, #tpu.memory_space<vmem>>, vector<8x128xf32>
    tpu.vector_store %arg14[%c0_119, %c0_120], %521 {strides = array<i32>} : memref<8x128xf32, #tpu.memory_space<vmem>>, vector<8x128xf32>,
    %c0_i32_121 = arith.constant 0 : i32
    %528 = arith.cmpi eq, %arg0, %c0_i32_121 : i32
    %529 = arith.extui %528 : i1 to i32
    %c0_i32_122 = arith.constant 0 : i32
    %530 = arith.cmpi ne, %529, %c0_i32_122 : i32
    scf.if %530 {
      %c0_123 = arith.constant 0 : index
      %c0_124 = arith.constant 0 : index
      %531 = vector.load %arg13[%c0_123, %c0_124] : memref<8x128xf32, #tpu.memory_space<vmem>>, vector<8x128xf32>
      %532 = arith.truncf %531 : vector<8x128xf32> to vector<8x128xbf16>
      %c0_125 = arith.constant 0 : index
      %c0_126 = arith.constant 0 : index
      %533 = vector.load %arg8[%c0_125, %c0_126] : memref<128x128xbf16, #tpu.memory_space<vmem>>, vector<128x128xbf16>
      %cst_127 = arith.constant dense<0.000000e+00> : vector<8x128xf32>
      %534 = tpu.matmul %532, %533, %cst_127 {dimension_numbers = #tpu.dot_dimension_numbers<[1], [0], [0], [1], [0, 0, 1, 1], [], []>} : vector<8x128xbf16>, vector<128x128xbf16>, vector<8x128xf32> -> vector<8x128xf32>
      %c0_128 = arith.constant 0 : index
      %c0_129 = arith.constant 0 : index
      %535 = vector.load %arg9[%c0_128, %c0_129] : memref<1x128xf32, #tpu.memory_space<vmem>>, vector<1x128xf32>
      %536 = vector.broadcast %535 : vector<1x128xf32> to vector<8x128xf32>
      %537 = arith.addf %534, %536 : vector<8x128xf32>
      %c0_130 = arith.constant 0 : index
      %c0_131 = arith.constant 0 : index
      %538 = vector.load %arg10[%c0_130, %c0_131] : memref<8x128xf32, #tpu.memory_space<vmem>>, vector<8x128xf32>
      tpu.vector_store %arg10[%c0_130, %c0_131], %537 {strides = array<i32>} : memref<8x128xf32, #tpu.memory_space<vmem>>, vector<8x128xf32>,
    } else {
    }
    return
  }
  func.func @transform_0(%arg0: i32) -> (i32, i32) {
    %c0_i32 = arith.constant 0 : i32
    %c0_i32_0 = arith.constant 0 : i32
    return %arg0, %c0_i32 : i32, i32
  }
  func.func @transform_1(%arg0: i32) -> (i32, i32) {
    %c0_i32 = arith.constant 0 : i32
    %c0_i32_0 = arith.constant 0 : i32
    %c0_i32_1 = arith.constant 0 : i32
    return %c0_i32, %c0_i32_0 : i32, i32
  }
  func.func @transform_2(%arg0: i32) -> (i32, i32) {
    %c0_i32 = arith.constant 0 : i32
    %c0_i32_0 = arith.constant 0 : i32
    %c0_i32_1 = arith.constant 0 : i32
    return %c0_i32, %c0_i32_0 : i32, i32
  }
  func.func @transform_3(%arg0: i32) -> (i32, i32) {
    %c0_i32 = arith.constant 0 : i32
    %c0_i32_0 = arith.constant 0 : i32
    %c0_i32_1 = arith.constant 0 : i32
    return %c0_i32, %c0_i32_0 : i32, i32
  }
  func.func @transform_4(%arg0: i32) -> (i32, i32) {
    %c0_i32 = arith.constant 0 : i32
    %c0_i32_0 = arith.constant 0 : i32
    %c0_i32_1 = arith.constant 0 : i32
    return %c0_i32, %c0_i32_0 : i32, i32
  }
  func.func @transform_5(%arg0: i32) -> (i32, i32) {
    %c0_i32 = arith.constant 0 : i32
    %c0_i32_0 = arith.constant 0 : i32
    %c0_i32_1 = arith.constant 0 : i32
    return %c0_i32, %c0_i32_0 : i32, i32
  }
  func.func @transform_6(%arg0: i32) -> (i32, i32) {
    %c0_i32 = arith.constant 0 : i32
    %c0_i32_0 = arith.constant 0 : i32
    %c0_i32_1 = arith.constant 0 : i32
    return %c0_i32, %c0_i32_0 : i32, i32
  }
  func.func @transform_7(%arg0: i32) -> (i32, i32) {
    %c0_i32 = arith.constant 0 : i32
    %c0_i32_0 = arith.constant 0 : i32
    %c0_i32_1 = arith.constant 0 : i32
    return %c0_i32, %c0_i32_0 : i32, i32
  }
  func.func @transform_8(%arg0: i32) -> (i32, i32) {
    %c0_i32 = arith.constant 0 : i32
    %c0_i32_0 = arith.constant 0 : i32
    %c0_i32_1 = arith.constant 0 : i32
    return %c0_i32, %c0_i32_0 : i32, i32
  }
  func.func @transform_9(%arg0: i32) -> (i32, i32) {
    %c0_i32 = arith.constant 0 : i32
    %c0_i32_0 = arith.constant 0 : i32
    %c0_i32_1 = arith.constant 0 : i32
    return %c0_i32, %c0_i32_0 : i32, i32
  }
}

</mosaic_0001>

<llo_original>
// kernel: tpu_custom_call.1
$region0: #{tpu_custom_call.1}
  #allocation0 [shape = 'u32[]', space=smem, size = 0x4, offset = 0x4, fixed_abs, tag = 'smem constant byte address 0x4 - core index']
  #allocation1 [shape = 'u32[144,128]{1,0:T(1,128)}', space=vmem, size = 0x12000, scoped, tag = 'internal scratch']
  #allocation2 [shape = 'f32[8,128]{1,0:T(8,128)}', space=vmem, size = 0x1000, scoped, tag = 'scratch operand']
  #allocation3 [shape = 'f32[8,128]{1,0:T(8,128)}', space=vmem, size = 0x1000, scoped, tag = 'scratch operand']
  #allocation4 [shape = 'f32[8,128]{1,0:T(8,128)}', space=vmem, size = 0x1000, scoped, tag = 'scratch operand']
  #allocation5 [shape = 'f32[8,128]{1,0:T(8,128)}', space=vmem, size = 0x1000, scoped, tag = 'scratch operand']
  #allocation6 [shape = 'f32[64,512]{1,0:T(8,128)}', space=vmem, size = 0x20000, scoped, tag = 'scratch operand']
  %s0 = inlined_call_operand.hbm [shape: bf16[64,128], index: 0, kind: input, shape index: {}]
  %s1 = inlined_call_operand.hbm [shape: bf16[128,512], index: 1, kind: input, shape index: {}]
  %s2 = inlined_call_operand.hbm [shape: bf16[128,512], index: 2, kind: input, shape index: {}]
  %s3 = inlined_call_operand.vmem [shape: f32[1,512], index: 3, kind: input, shape index: {}]
  %s4 = inlined_call_operand.hbm [shape: bf16[128,512], index: 4, kind: input, shape index: {}]
  %s5 = inlined_call_operand.hbm [shape: bf16[128,512], index: 5, kind: input, shape index: {}]
  %s6 = inlined_call_operand.vmem [shape: f32[1,512], index: 6, kind: input, shape index: {}]
  %s7 = inlined_call_operand.hbm [shape: bf16[128,128], index: 7, kind: input, shape index: {}]
  %s8 = inlined_call_operand.vmem [shape: f32[1,128], index: 8, kind: input, shape index: {}]
  %s9 = inlined_call_operand.hbm [shape: f32[8,128], index: 9, kind: output, shape index: {}]
  %s10 = sld [smem:[#allocation0]]
  $region78: #{tpu_custom_call.1} parent=0
    _
  %s12 = ssub.s32 1, %s10
  %s13 = scalar_select 0, %s12, %s10
  $region1: #{tpu_custom_call.1} parent=0
    #allocation7 [shape = 'u8[16384]{0}', space=vmem, size = 0x4000, scoped, tag = 'input window, operand 0, single buffered']
    #allocation8 [shape = 's32[1]{0}', space=sflag, size = 0x4, scoped, tag = 'scoped memory for tpu_custom_call.1']
    #allocation9 [shape = 's32[1]{0}', space=sflag, size = 0x4, scoped, tag = 'scoped memory for tpu_custom_call.1']
    #allocation10 [shape = 'u8[131072]{0}', space=vmem, size = 0x20000, scoped, tag = 'input window, operand 1, single buffered']
    #allocation11 [shape = 's32[1]{0}', space=sflag, size = 0x4, scoped, tag = 'scoped memory for tpu_custom_call.1']
    #allocation12 [shape = 'u8[131072]{0}', space=vmem, size = 0x20000, scoped, tag = 'input window, operand 2, single buffered']
    #allocation13 [shape = 'u8[131072]{0}', space=vmem, size = 0x20000, scoped, tag = 'input window, operand 4, single buffered']
    #allocation14 [shape = 's32[1]{0}', space=sflag, size = 0x4, scoped, tag = 'scoped memory for tpu_custom_call.1']
    #allocation15 [shape = 'u8[131072]{0}', space=vmem, size = 0x20000, scoped, tag = 'input window, operand 5, single buffered']
    #allocation16 [shape = 'u8[32768]{0}', space=vmem, size = 0x8000, scoped, tag = 'input window, operand 7, single buffered']
    #allocation17 [shape = 's32[1]{0}', space=sflag, size = 0x4, scoped, tag = 'scoped memory for tpu_custom_call.1']
    #allocation18 [shape = 'u8[4096]{0}', space=vmem, size = 0x1000, scoped, tag = 'output window, operand 0, single buffered']
    %14 = vsyncpa [#allocation8], 0
    %15 = vsyncpa [#allocation11], 0
    %16 = vsyncpa [#allocation14], 0
    %17 = vsyncpa [#allocation17], 0
    %18 = vsyncpa [#allocation9], 0
    // Predicated region
    $region2: #{tpu_custom_call.1} parent=1 // pred_check
      _
    $region3: #{tpu_custom_call.1} parent=1 // pred_check_branch
      %20 = sbr.rel (0) target = $region5
    $region4: #{tpu_custom_call.1} parent=1 // pred_region
      %s22 = ssub.s32 512, 512
      %23 = vsyncadd [#allocation8], %s22
      %s24 = sshll.u32 [#allocation7], 4
      %s25 = int_to_ptr.vmem [resolvable:$true] %s24
      %30 = dma.hbm_to_vmem [thread:$0]  %s0, 512, %s25, [#allocation8], 64, 64, 4
    $region5: #{tpu_custom_call.1} parent=1 // pred_fallthru
      _
    // Predicated region
    $region6: #{tpu_custom_call.1} parent=1 // pred_check
      _
    $region7: #{tpu_custom_call.1} parent=1 // pred_check_branch
      %32 = sbr.rel (0) target = $region9
    $region8: #{tpu_custom_call.1} parent=1 // pred_region
      %s34 = ssub.s32 4096, 4096
      %35 = vsyncadd [#allocation11], %s34
      %s36 = sshll.u32 [#allocation10], 4
      %s37 = int_to_ptr.vmem [resolvable:$true] %s36
      %42 = dma.hbm_to_vmem [thread:$0]  %s1, 4096, %s37, [#allocation11], 256, 256, 16
    $region9: #{tpu_custom_call.1} parent=1 // pred_fallthru
      _
    // Predicated region
    $region10: #{tpu_custom_call.1} parent=1 // pred_check
      _
    $region11: #{tpu_custom_call.1} parent=1 // pred_check_branch
      %44 = sbr.rel (0) target = $region13
    $region12: #{tpu_custom_call.1} parent=1 // pred_region
      %s46 = ssub.s32 4096, 4096
      %47 = vsyncadd [#allocation11], %s46
      %s48 = sshll.u32 [#allocation12], 4
      %s49 = int_to_ptr.vmem [resolvable:$true] %s48
      %54 = dma.hbm_to_vmem [thread:$0]  %s2, 4096, %s49, [#allocation11], 256, 256, 16
    $region13: #{tpu_custom_call.1} parent=1 // pred_fallthru
      _
    // Predicated region
    $region14: #{tpu_custom_call.1} parent=1 // pred_check
      _
    $region15: #{tpu_custom_call.1} parent=1 // pred_check_branch
      %56 = sbr.rel (0) target = $region17
    $region16: #{tpu_custom_call.1} parent=1 // pred_region
      _
    $region17: #{tpu_custom_call.1} parent=1 // pred_fallthru
      _
    // Predicated region
    $region18: #{tpu_custom_call.1} parent=1 // pred_check
      _
    $region19: #{tpu_custom_call.1} parent=1 // pred_check_branch
      %58 = sbr.rel (0) target = $region21
    $region20: #{tpu_custom_call.1} parent=1 // pred_region
      %s60 = ssub.s32 4096, 4096
      %61 = vsyncadd [#allocation14], %s60
      %s62 = sshll.u32 [#allocation13], 4
      %s63 = int_to_ptr.vmem [resolvable:$true] %s62
      %68 = dma.hbm_to_vmem [thread:$0]  %s4, 4096, %s63, [#allocation14], 256, 256, 16
    $region21: #{tpu_custom_call.1} parent=1 // pred_fallthru
      _
    // Predicated region
    $region22: #{tpu_custom_call.1} parent=1 // pred_check
      _
    $region23: #{tpu_custom_call.1} parent=1 // pred_check_branch
      %70 = sbr.rel (0) target = $region25
    $region24: #{tpu_custom_call.1} parent=1 // pred_region
      %s72 = ssub.s32 4096, 4096
      %73 = vsyncadd [#allocation14], %s72
      %s74 = sshll.u32 [#allocation15], 4
      %s75 = int_to_ptr.vmem [resolvable:$true] %s74
      %80 = dma.hbm_to_vmem [thread:$0]  %s5, 4096, %s75, [#allocation14], 256, 256, 16
    $region25: #{tpu_custom_call.1} parent=1 // pred_fallthru
      _
    // Predicated region
    $region26: #{tpu_custom_call.1} parent=1 // pred_check
      _
    $region27: #{tpu_custom_call.1} parent=1 // pred_check_branch
      %82 = sbr.rel (0) target = $region29
    $region28: #{tpu_custom_call.1} parent=1 // pred_region
      _
    $region29: #{tpu_custom_call.1} parent=1 // pred_fallthru
      _
    // Predicated region
    $region30: #{tpu_custom_call.1} parent=1 // pred_check
      _
    $region31: #{tpu_custom_call.1} parent=1 // pred_check_branch
      %84 = sbr.rel (0) target = $region33
    $region32: #{tpu_custom_call.1} parent=1 // pred_region
      %s86 = ssub.s32 1024, 1024
      %87 = vsyncadd [#allocation17], %s86
      %s88 = sshll.u32 [#allocation16], 4
      %s89 = int_to_ptr.vmem [resolvable:$true] %s88
      %94 = dma.hbm_to_vmem [thread:$0]  %s7, 1024, %s89, [#allocation17], 64, 64, 4
    $region33: #{tpu_custom_call.1} parent=1 // pred_fallthru
      _
    // Predicated region
    $region34: #{tpu_custom_call.1} parent=1 // pred_check
      _
    $region35: #{tpu_custom_call.1} parent=1 // pred_check_branch
      %96 = sbr.rel (0) target = $region37
    $region36: #{tpu_custom_call.1} parent=1 // pred_region
      _
    $region37: #{tpu_custom_call.1} parent=1 // pred_fallthru
      _
    // Predicated region
    $region38: #{tpu_custom_call.1} parent=1 // pred_check
      _
    $region39: #{tpu_custom_call.1} parent=1 // pred_check_branch
      %98 = sbr.rel (0) target = $region41
    $region40: #{tpu_custom_call.1} parent=1 // pred_region
      %99 = dma.done [#allocation8], 512
    $region41: #{tpu_custom_call.1} parent=1 // pred_fallthru
      _
    // Predicated region
    $region42: #{tpu_custom_call.1} parent=1 // pred_check
      _
    $region43: #{tpu_custom_call.1} parent=1 // pred_check_branch
      %101 = sbr.rel (0) target = $region45
    $region44: #{tpu_custom_call.1} parent=1 // pred_region
      %102 = dma.done [#allocation11], 4096
    $region45: #{tpu_custom_call.1} parent=1 // pred_fallthru
      _
    // Predicated region
    $region46: #{tpu_custom_call.1} parent=1 // pred_check
      _
    $region47: #{tpu_custom_call.1} parent=1 // pred_check_branch
      %104 = sbr.rel (0) target = $region49
    $region48: #{tpu_custom_call.1} parent=1 // pred_region
      %105 = dma.done [#allocation11], 4096
    $region49: #{tpu_custom_call.1} parent=1 // pred_fallthru
      _
    // Predicated region
    $region50: #{tpu_custom_call.1} parent=1 // pred_check
      _
    $region51: #{tpu_custom_call.1} parent=1 // pred_check_branch
      %107 = sbr.rel (0) target = $region53
    $region52: #{tpu_custom_call.1} parent=1 // pred_region
      %108 = dma.done [#allocation14], 4096
    $region53: #{tpu_custom_call.1} parent=1 // pred_fallthru
      _
    // Predicated region
    $region54: #{tpu_custom_call.1} parent=1 // pred_check
      _
    $region55: #{tpu_custom_call.1} parent=1 // pred_check_branch
      %110 = sbr.rel (0) target = $region57
    $region56: #{tpu_custom_call.1} parent=1 // pred_region
      %111 = dma.done [#allocation14], 4096
    $region57: #{tpu_custom_call.1} parent=1 // pred_fallthru
      _
    // Predicated region
    $region58: #{tpu_custom_call.1} parent=1 // pred_check
      _
    $region59: #{tpu_custom_call.1} parent=1 // pred_check_branch
      %113 = sbr.rel (0) target = $region61
    $region60: #{tpu_custom_call.1} parent=1 // pred_region
      %114 = dma.done [#allocation17], 1024
    $region61: #{tpu_custom_call.1} parent=1 // pred_fallthru
      _
    %p116 = scmp.eq.s32.totalorder 0, 0
    // Predicated region
    $region62: #{tpu_custom_call.1} parent=1 // pred_check
      %p117 = pneg %p116
    $region63: #{tpu_custom_call.1} parent=1 // pred_check_branch
      %119 = sbr.rel (%p117) target = $region65
    $region64: #{tpu_custom_call.1} parent=1 // pred_region
      %120 = vst [vmem:[#allocation2] sm:$0xff] 0.0
      %121 = vst [vmem:[#allocation3] sm:$0xff] 0.0
      %122 = vst [vmem:[#allocation4] sm:$0xff] 0.0
      %123 = vst [vmem:[#allocation5] sm:$0xff] 0.0
    $region65: #{tpu_custom_call.1} parent=1 // pred_fallthru
      _
    %v124 = vld [vmem:[#allocation7] sm:$0xf]
    %v125 = vld [vmem:[#allocation7 + $0x4] sm:$0xf]
    %v126 = vld [vmem:[#allocation7 + $0x8] sm:$0xf]
    %v127 = vld [vmem:[#allocation7 + $0xc] sm:$0xf]
    %v128 = vld [vmem:[#allocation7 + $0x10] sm:$0xf]
    %v129 = vld [vmem:[#allocation7 + $0x14] sm:$0xf]
    %v130 = vld [vmem:[#allocation7 + $0x18] sm:$0xf]
    %v131 = vld [vmem:[#allocation7 + $0x1c] sm:$0xf]
    %v132 = vld [vmem:[#allocation10] sm:$0xff]
    %v133 = vld [vmem:[#allocation10 + $0x8] sm:$0xff]
    %v134 = vld [vmem:[#allocation10 + $0x10] sm:$0xff]
    %v135 = vld [vmem:[#allocation10 + $0x18] sm:$0xff]
    %v136 = vld [vmem:[#allocation10 + $0x20] sm:$0xff]
    %v137 = vld [vmem:[#allocation10 + $0x28] sm:$0xff]
    %v138 = vld [vmem:[#allocation10 + $0x30] sm:$0xff]
    %v139 = vld [vmem:[#allocation10 + $0x38] sm:$0xff]
    %v140 = vld [vmem:[#allocation10 + $0x40] sm:$0xff]
    %v141 = vld [vmem:[#allocation10 + $0x48] sm:$0xff]
    %v142 = vld [vmem:[#allocation10 + $0x50] sm:$0xff]
    %v143 = vld [vmem:[#allocation10 + $0x58] sm:$0xff]
    %v144 = vld [vmem:[#allocation10 + $0x60] sm:$0xff]
    %v145 = vld [vmem:[#allocation10 + $0x68] sm:$0xff]
    %v146 = vld [vmem:[#allocation10 + $0x70] sm:$0xff]
    %v147 = vld [vmem:[#allocation10 + $0x78] sm:$0xff]
    %v148 = vld [vmem:[#allocation10 + $0x80] sm:$0xff]
    %v149 = vld [vmem:[#allocation10 + $0x88] sm:$0xff]
    %v150 = vld [vmem:[#allocation10 + $0x90] sm:$0xff]
    %v151 = vld [vmem:[#allocation10 + $0x98] sm:$0xff]
    %v152 = vld [vmem:[#allocation10 + $0xa0] sm:$0xff]
    %v153 = vld [vmem:[#allocation10 + $0xa8] sm:$0xff]
    %v154 = vld [vmem:[#allocation10 + $0xb0] sm:$0xff]
    %v155 = vld [vmem:[#allocation10 + $0xb8] sm:$0xff]
    %v156 = vld [vmem:[#allocation10 + $0xc0] sm:$0xff]
    %v157 = vld [vmem:[#allocation10 + $0xc8] sm:$0xff]
    %v158 = vld [vmem:[#allocation10 + $0xd0] sm:$0xff]
    %v159 = vld [vmem:[#allocation10 + $0xd8] sm:$0xff]
    %v160 = vld [vmem:[#allocation10 + $0xe0] sm:$0xff]
    %v161 = vld [vmem:[#allocation10 + $0xe8] sm:$0xff]
    %v162 = vld [vmem:[#allocation10 + $0xf0] sm:$0xff]
    %v163 = vld [vmem:[#allocation10 + $0xf8] sm:$0xff]
    %v164 = vld [vmem:[%s3] sm:$0xf]
    %v166 = vlaneseq
    %v167 = vshrl.u32 %v166, 7
    %v168 = vsub.s32 0, %v167
    %v169 = vrot.slane %v164, %v168
    %v170 = vlaneseq
    %v171 = vshrl.u32 %v170, 7
    %v172 = vsub.s32 1, %v171
    %v173 = vrot.slane %v164, %v172
    %v174 = vlaneseq
    %v175 = vshrl.u32 %v174, 7
    %v176 = vsub.s32 2, %v175
    %v177 = vrot.slane %v164, %v176
    %v178 = vlaneseq
    %v179 = vshrl.u32 %v178, 7
    %v180 = vsub.s32 3, %v179
    %v181 = vrot.slane %v164, %v180
    %v194 = vunpack.c.l.b16 %v124
    %v195 = vunpack.c.l.b16 %v125
    %v196 = vunpack.c.l.b16 %v126
    %v197 = vunpack.c.l.b16 %v127
    %v198 = vunpack.c.l.b16 %v128
    %v199 = vunpack.c.l.b16 %v129
    %v200 = vunpack.c.l.b16 %v130
    %v201 = vunpack.c.l.b16 %v131
    %v202 = vpack.c.b16 %v195, %v194
    %v203 = vpack.c.b16 %v197, %v196
    %v204 = vpack.c.b16 %v199, %v198
    %v205 = vpack.c.b16 %v201, %v200
    %v242 = vunpack.c.l.b16 %v132
    %v243 = vunpack.c.h.b16 %v132
    %v244 = vunpack.c.l.b16 %v133
    %v245 = vunpack.c.h.b16 %v133
    %v246 = vunpack.c.l.b16 %v134
    %v247 = vunpack.c.h.b16 %v134
    %v248 = vunpack.c.l.b16 %v135
    %v249 = vunpack.c.h.b16 %v135
    %v250 = vunpack.c.l.b16 %v136
    %v251 = vunpack.c.h.b16 %v136
    %v252 = vunpack.c.l.b16 %v137
    %v253 = vunpack.c.h.b16 %v137
    %v254 = vunpack.c.l.b16 %v138
    %v255 = vunpack.c.h.b16 %v138
    %v256 = vunpack.c.l.b16 %v139
    %v257 = vunpack.c.h.b16 %v139
    %v258 = vunpack.c.l.b16 %v140
    %v259 = vunpack.c.h.b16 %v140
    %v260 = vunpack.c.l.b16 %v141
    %v261 = vunpack.c.h.b16 %v141
    %v262 = vunpack.c.l.b16 %v142
    %v263 = vunpack.c.h.b16 %v142
    %v264 = vunpack.c.l.b16 %v143
    %v265 = vunpack.c.h.b16 %v143
    %v266 = vunpack.c.l.b16 %v144
    %v267 = vunpack.c.h.b16 %v144
    %v268 = vunpack.c.l.b16 %v145
    %v269 = vunpack.c.h.b16 %v145
    %v270 = vunpack.c.l.b16 %v146
    %v271 = vunpack.c.h.b16 %v146
    %v272 = vunpack.c.l.b16 %v147
    %v273 = vunpack.c.h.b16 %v147
    %v274 = vunpack.c.l.b16 %v148
    %v275 = vunpack.c.h.b16 %v148
    %v276 = vunpack.c.l.b16 %v149
    %v277 = vunpack.c.h.b16 %v149
    %v278 = vunpack.c.l.b16 %v150
    %v279 = vunpack.c.h.b16 %v150
    %v280 = vunpack.c.l.b16 %v151
    %v281 = vunpack.c.h.b16 %v151
    %v282 = vunpack.c.l.b16 %v152
    %v283 = vunpack.c.h.b16 %v152
    %v284 = vunpack.c.l.b16 %v153
    %v285 = vunpack.c.h.b16 %v153
    %v286 = vunpack.c.l.b16 %v154
    %v287 = vunpack.c.h.b16 %v154
    %v288 = vunpack.c.l.b16 %v155
    %v289 = vunpack.c.h.b16 %v155
    %v290 = vunpack.c.l.b16 %v156
    %v291 = vunpack.c.h.b16 %v156
    %v292 = vunpack.c.l.b16 %v157
    %v293 = vunpack.c.h.b16 %v157
    %v294 = vunpack.c.l.b16 %v158
    %v295 = vunpack.c.h.b16 %v158
    %v296 = vunpack.c.l.b16 %v159
    %v297 = vunpack.c.h.b16 %v159
    %v298 = vunpack.c.l.b16 %v160
    %v299 = vunpack.c.h.b16 %v160
    %v300 = vunpack.c.l.b16 %v161
    %v301 = vunpack.c.h.b16 %v161
    %v302 = vunpack.c.l.b16 %v162
    %v303 = vunpack.c.h.b16 %v162
    %v304 = vunpack.c.l.b16 %v163
    %v305 = vunpack.c.h.b16 %v163
    %v306 = vpack.c.b16 %v246, %v242
    %v307 = vpack.c.b16 %v247, %v243
    %v308 = vpack.c.b16 %v248, %v244
    %v309 = vpack.c.b16 %v249, %v245
    %v310 = vpack.c.b16 %v254, %v250
    %v311 = vpack.c.b16 %v255, %v251
    %v312 = vpack.c.b16 %v256, %v252
    %v313 = vpack.c.b16 %v257, %v253
    %v314 = vpack.c.b16 %v262, %v258
    %v315 = vpack.c.b16 %v263, %v259
    %v316 = vpack.c.b16 %v264, %v260
    %v317 = vpack.c.b16 %v265, %v261
    %v318 = vpack.c.b16 %v270, %v266
    %v319 = vpack.c.b16 %v271, %v267
    %v320 = vpack.c.b16 %v272, %v268
    %v321 = vpack.c.b16 %v273, %v269
    %v322 = vpack.c.b16 %v278, %v274
    %v323 = vpack.c.b16 %v279, %v275
    %v324 = vpack.c.b16 %v280, %v276
    %v325 = vpack.c.b16 %v281, %v277
    %v326 = vpack.c.b16 %v286, %v282
    %v327 = vpack.c.b16 %v287, %v283
    %v328 = vpack.c.b16 %v288, %v284
    %v329 = vpack.c.b16 %v289, %v285
    %v330 = vpack.c.b16 %v294, %v290
    %v331 = vpack.c.b16 %v295, %v291
    %v332 = vpack.c.b16 %v296, %v292
    %v333 = vpack.c.b16 %v297, %v293
    %v334 = vpack.c.b16 %v302, %v298
    %v335 = vpack.c.b16 %v303, %v299
    %v336 = vpack.c.b16 %v304, %v300
    %v337 = vpack.c.b16 %v305, %v301
    %370 = vmatprep.subr.bf16.mxu0 %v307
    %371 = vmatpush1.bf16.msra.mxu0 %v306
    %372 = vmatprep.subr.bf16.mxu0 %v311
    %373 = vmatpush1.bf16.msra.mxu0 %v310
    %374 = vmatprep.subr.bf16.mxu0 %v315
    %375 = vmatpush1.bf16.msra.mxu0 %v314
    %376 = vmatprep.subr.bf16.mxu0 %v319
    %377 = vmatpush1.bf16.msra.mxu0 %v318
    %378 = vmatprep.subr.bf16.mxu0 %v323
    %379 = vmatpush1.bf16.msra.mxu0 %v322
    %380 = vmatprep.subr.bf16.mxu0 %v327
    %381 = vmatpush1.bf16.msra.mxu0 %v326
    %382 = vmatprep.subr.bf16.mxu0 %v331
    %383 = vmatpush1.bf16.msra.mxu0 %v330
    %384 = vmatprep.subr.bf16.mxu0 %v335
    %385 = vmatpush1.bf16.msra.mxu0 %v334
    %386 = vmatprep.subr.bf16.mxu0 0
    %387 = vmatpush1.bf16.msra.mxu0 0
    %388 = vmatprep.subr.bf16.mxu0 0
    %389 = vmatpush1.bf16.msra.mxu0 0
    %390 = vmatprep.subr.bf16.mxu0 0
    %391 = vmatpush1.bf16.msra.mxu0 0
    %392 = vmatprep.subr.bf16.mxu0 0
    %393 = vmatpush1.bf16.msra.mxu0 0
    %394 = vmatprep.subr.bf16.mxu0 0
    %395 = vmatpush1.bf16.msra.mxu0 0
    %396 = vmatprep.subr.bf16.mxu0 0
    %397 = vmatpush1.bf16.msra.mxu0 0
    %398 = vmatprep.subr.bf16.mxu0 0
    %399 = vmatpush1.bf16.msra.mxu0 0
    %400 = vmatprep.subr.bf16.mxu0 0
    %401 = vmatpush1.bf16.msra.mxu0 0
    %402 = vmatprep.mubr.bf16.mxu0 0
    %403 = vmatmul.mubr.bf16.gmra.mrb[0].mxu0 %v202
    %v404 = vpop.f32.mrb[0].mxu0
    %v405 = vadd.f32 %v169, %v404
    %v406 = vpop.f32.mrb[0].mxu0
    %v407 = vadd.f32 %v173, %v406
    %v408 = vpop.f32.mrb[0].mxu0
    %v409 = vadd.f32 %v169, %v408
    %v410 = vpop.f32.mrb[0].mxu0
    %v411 = vadd.f32 %v173, %v410
    %412 = vmatprep.mubr.bf16.mxu0 0
    %413 = vmatmul.mubr.bf16.gmra.mrb[0].mxu0 %v203
    %v414 = vpop.f32.mrb[0].mxu0
    %v415 = vadd.f32 %v169, %v414
    %v416 = vpop.f32.mrb[0].mxu0
    %v417 = vadd.f32 %v173, %v416
    %v418 = vpop.f32.mrb[0].mxu0
    %v419 = vadd.f32 %v169, %v418
    %v420 = vpop.f32.mrb[0].mxu0
    %v421 = vadd.f32 %v173, %v420
    %422 = vmatprep.mubr.bf16.mxu0 0
    %423 = vmatmul.mubr.bf16.gmra.mrb[0].mxu0 %v204
    %v424 = vpop.f32.mrb[0].mxu0
    %v425 = vadd.f32 %v169, %v424
    %v426 = vpop.f32.mrb[0].mxu0
    %v427 = vadd.f32 %v173, %v426
    %v428 = vpop.f32.mrb[0].mxu0
    %v429 = vadd.f32 %v169, %v428
    %v430 = vpop.f32.mrb[0].mxu0
    %v431 = vadd.f32 %v173, %v430
    %432 = vmatprep.mubr.bf16.mxu0 0
    %433 = vmatmul.mubr.bf16.gmra.mrb[0].mxu0 %v205
    %v434 = vpop.f32.mrb[0].mxu0
    %v435 = vadd.f32 %v169, %v434
    %v436 = vpop.f32.mrb[0].mxu0
    %v437 = vadd.f32 %v173, %v436
    %v438 = vpop.f32.mrb[0].mxu0
    %v439 = vadd.f32 %v169, %v438
    %v440 = vpop.f32.mrb[0].mxu0
    %v441 = vadd.f32 %v173, %v440
    %442 = vdwg.mxu0
    %443 = vmatprep.subr.bf16.mxu0 %v309
    %444 = vmatpush1.bf16.msra.mxu0 %v308
    %445 = vmatprep.subr.bf16.mxu0 %v313
    %446 = vmatpush1.bf16.msra.mxu0 %v312
    %447 = vmatprep.subr.bf16.mxu0 %v317
    %448 = vmatpush1.bf16.msra.mxu0 %v316
    %449 = vmatprep.subr.bf16.mxu0 %v321
    %450 = vmatpush1.bf16.msra.mxu0 %v320
    %451 = vmatprep.subr.bf16.mxu0 %v325
    %452 = vmatpush1.bf16.msra.mxu0 %v324
    %453 = vmatprep.subr.bf16.mxu0 %v329
    %454 = vmatpush1.bf16.msra.mxu0 %v328
    %455 = vmatprep.subr.bf16.mxu0 %v333
    %456 = vmatpush1.bf16.msra.mxu0 %v332
    %457 = vmatprep.subr.bf16.mxu0 %v337
    %458 = vmatpush1.bf16.msra.mxu0 %v336
    %459 = vmatprep.subr.bf16.mxu0 0
    %460 = vmatpush1.bf16.msra.mxu0 0
    %461 = vmatprep.subr.bf16.mxu0 0
    %462 = vmatpush1.bf16.msra.mxu0 0
    %463 = vmatprep.subr.bf16.mxu0 0
    %464 = vmatpush1.bf16.msra.mxu0 0
    %465 = vmatprep.subr.bf16.mxu0 0
    %466 = vmatpush1.bf16.msra.mxu0 0
    %467 = vmatprep.subr.bf16.mxu0 0
    %468 = vmatpush1.bf16.msra.mxu0 0
    %469 = vmatprep.subr.bf16.mxu0 0
    %470 = vmatpush1.bf16.msra.mxu0 0
    %471 = vmatprep.subr.bf16.mxu0 0
    %472 = vmatpush1.bf16.msra.mxu0 0
    %473 = vmatprep.subr.bf16.mxu0 0
    %474 = vmatpush1.bf16.msra.mxu0 0
    %475 = vmatprep.mubr.bf16.mxu0 0
    %476 = vmatmul.mubr.bf16.gmra.mrb[0].mxu0 %v202
    %v477 = vpop.f32.mrb[0].mxu0
    %v478 = vadd.f32 %v177, %v477
    %v479 = vpop.f32.mrb[0].mxu0
    %v480 = vadd.f32 %v181, %v479
    %v481 = vpop.f32.mrb[0].mxu0
    %v482 = vadd.f32 %v177, %v481
    %v483 = vpop.f32.mrb[0].mxu0
    %v484 = vadd.f32 %v181, %v483
    %485 = vmatprep.mubr.bf16.mxu0 0
    %486 = vmatmul.mubr.bf16.gmra.mrb[0].mxu0 %v203
    %v487 = vpop.f32.mrb[0].mxu0
    %v488 = vadd.f32 %v177, %v487
    %v489 = vpop.f32.mrb[0].mxu0
    %v490 = vadd.f32 %v181, %v489
    %v491 = vpop.f32.mrb[0].mxu0
    %v492 = vadd.f32 %v177, %v491
    %v493 = vpop.f32.mrb[0].mxu0
    %v494 = vadd.f32 %v181, %v493
    %495 = vmatprep.mubr.bf16.mxu0 0
    %496 = vmatmul.mubr.bf16.gmra.mrb[0].mxu0 %v204
    %v497 = vpop.f32.mrb[0].mxu0
    %v498 = vadd.f32 %v177, %v497
    %v499 = vpop.f32.mrb[0].mxu0
    %v500 = vadd.f32 %v181, %v499
    %v501 = vpop.f32.mrb[0].mxu0
    %v502 = vadd.f32 %v177, %v501
    %v503 = vpop.f32.mrb[0].mxu0
    %v504 = vadd.f32 %v181, %v503
    %505 = vmatprep.mubr.bf16.mxu0 0
    %506 = vmatmul.mubr.bf16.gmra.mrb[0].mxu0 %v205
    %v507 = vpop.f32.mrb[0].mxu0
    %v508 = vadd.f32 %v177, %v507
    %v509 = vpop.f32.mrb[0].mxu0
    %v510 = vadd.f32 %v181, %v509
    %v511 = vpop.f32.mrb[0].mxu0
    %v512 = vadd.f32 %v177, %v511
    %v513 = vpop.f32.mrb[0].mxu0
    %v514 = vadd.f32 %v181, %v513
    %515 = vdwg.mxu0
    %516 = vst [vmem:[#allocation6] sm:$0xff] %v405
    %517 = vst [vmem:[#allocation6 + $0x8] sm:$0xff] %v407
    %518 = vst [vmem:[#allocation6 + $0x10] sm:$0xff] %v478
    %519 = vst [vmem:[#allocation6 + $0x18] sm:$0xff] %v480
    %520 = vst [vmem:[#allocation6 + $0x20] sm:$0xff] %v409
    %521 = vst [vmem:[#allocation6 + $0x28] sm:$0xff] %v411
    %522 = vst [vmem:[#allocation6 + $0x30] sm:$0xff] %v482
    %523 = vst [vmem:[#allocation6 + $0x38] sm:$0xff] %v484
    %524 = vst [vmem:[#allocation6 + $0x40] sm:$0xff] %v415
    %525 = vst [vmem:[#allocation6 + $0x48] sm:$0xff] %v417
    %526 = vst [vmem:[#allocation6 + $0x50] sm:$0xff] %v488
    %527 = vst [vmem:[#allocation6 + $0x58] sm:$0xff] %v490
    %528 = vst [vmem:[#allocation6 + $0x60] sm:$0xff] %v419
    %529 = vst [vmem:[#allocation6 + $0x68] sm:$0xff] %v421
    %530 = vst [vmem:[#allocation6 + $0x70] sm:$0xff] %v492
    %531 = vst [vmem:[#allocation6 + $0x78] sm:$0xff] %v494
    %532 = vst [vmem:[#allocation6 + $0x80] sm:$0xff] %v425
    %533 = vst [vmem:[#allocation6 + $0x88] sm:$0xff] %v427
    %534 = vst [vmem:[#allocation6 + $0x90] sm:$0xff] %v498
    %535 = vst [vmem:[#allocation6 + $0x98] sm:$0xff] %v500
    %536 = vst [vmem:[#allocation6 + $0xa0] sm:$0xff] %v429
    %537 = vst [vmem:[#allocation6 + $0xa8] sm:$0xff] %v431
    %538 = vst [vmem:[#allocation6 + $0xb0] sm:$0xff] %v502
    %539 = vst [vmem:[#allocation6 + $0xb8] sm:$0xff] %v504
    %540 = vst [vmem:[#allocation6 + $0xc0] sm:$0xff] %v435
    %541 = vst [vmem:[#allocation6 + $0xc8] sm:$0xff] %v437
    %542 = vst [vmem:[#allocation6 + $0xd0] sm:$0xff] %v508
    %543 = vst [vmem:[#allocation6 + $0xd8] sm:$0xff] %v510
    %544 = vst [vmem:[#allocation6 + $0xe0] sm:$0xff] %v439
    %545 = vst [vmem:[#allocation6 + $0xe8] sm:$0xff] %v441
    %546 = vst [vmem:[#allocation6 + $0xf0] sm:$0xff] %v512
    %547 = vst [vmem:[#allocation6 + $0xf8] sm:$0xff] %v514
    %v548 = vld [vmem:[#allocation12] sm:$0xff]
    %v549 = vld [vmem:[#allocation12 + $0x8] sm:$0xff]
    %v550 = vld [vmem:[#allocation12 + $0x10] sm:$0xff]
    %v551 = vld [vmem:[#allocation12 + $0x18] sm:$0xff]
    %v552 = vld [vmem:[#allocation12 + $0x20] sm:$0xff]
    %v553 = vld [vmem:[#allocation12 + $0x28] sm:$0xff]
    %v554 = vld [vmem:[#allocation12 + $0x30] sm:$0xff]
    %v555 = vld [vmem:[#allocation12 + $0x38] sm:$0xff]
    %v556 = vld [vmem:[#allocation12 + $0x40] sm:$0xff]
    %v557 = vld [vmem:[#allocation12 + $0x48] sm:$0xff]
    %v558 = vld [vmem:[#allocation12 + $0x50] sm:$0xff]
    %v559 = vld [vmem:[#allocation12 + $0x58] sm:$0xff]
    %v560 = vld [vmem:[#allocation12 + $0x60] sm:$0xff]
    %v561 = vld [vmem:[#allocation12 + $0x68] sm:$0xff]
    %v562 = vld [vmem:[#allocation12 + $0x70] sm:$0xff]
    %v563 = vld [vmem:[#allocation12 + $0x78] sm:$0xff]
    %v564 = vld [vmem:[#allocation12 + $0x80] sm:$0xff]
    %v565 = vld [vmem:[#allocation12 + $0x88] sm:$0xff]
    %v566 = vld [vmem:[#allocation12 + $0x90] sm:$0xff]
    %v567 = vld [vmem:[#allocation12 + $0x98] sm:$0xff]
    %v568 = vld [vmem:[#allocation12 + $0xa0] sm:$0xff]
    %v569 = vld [vmem:[#allocation12 + $0xa8] sm:$0xff]
    %v570 = vld [vmem:[#allocation12 + $0xb0] sm:$0xff]
    %v571 = vld [vmem:[#allocation12 + $0xb8] sm:$0xff]
    %v572 = vld [vmem:[#allocation12 + $0xc0] sm:$0xff]
    %v573 = vld [vmem:[#allocation12 + $0xc8] sm:$0xff]
    %v574 = vld [vmem:[#allocation12 + $0xd0] sm:$0xff]
    %v575 = vld [vmem:[#allocation12 + $0xd8] sm:$0xff]
    %v576 = vld [vmem:[#allocation12 + $0xe0] sm:$0xff]
    %v577 = vld [vmem:[#allocation12 + $0xe8] sm:$0xff]
    %v578 = vld [vmem:[#allocation12 + $0xf0] sm:$0xff]
    %v579 = vld [vmem:[#allocation12 + $0xf8] sm:$0xff]
    %v580 = vld [vmem:[#allocation13] sm:$0xff]
    %v581 = vld [vmem:[#allocation13 + $0x8] sm:$0xff]
    %v582 = vld [vmem:[#allocation13 + $0x10] sm:$0xff]
    %v583 = vld [vmem:[#allocation13 + $0x18] sm:$0xff]
    %v584 = vld [vmem:[#allocation13 + $0x20] sm:$0xff]
    %v585 = vld [vmem:[#allocation13 + $0x28] sm:$0xff]
    %v586 = vld [vmem:[#allocation13 + $0x30] sm:$0xff]
    %v587 = vld [vmem:[#allocation13 + $0x38] sm:$0xff]
    %v588 = vld [vmem:[#allocation13 + $0x40] sm:$0xff]
    %v589 = vld [vmem:[#allocation13 + $0x48] sm:$0xff]
    %v590 = vld [vmem:[#allocation13 + $0x50] sm:$0xff]
    %v591 = vld [vmem:[#allocation13 + $0x58] sm:$0xff]
    %v592 = vld [vmem:[#allocation13 + $0x60] sm:$0xff]
    %v593 = vld [vmem:[#allocation13 + $0x68] sm:$0xff]
    %v594 = vld [vmem:[#allocation13 + $0x70] sm:$0xff]
    %v595 = vld [vmem:[#allocation13 + $0x78] sm:$0xff]
    %v596 = vld [vmem:[#allocation13 + $0x80] sm:$0xff]
    %v597 = vld [vmem:[#allocation13 + $0x88] sm:$0xff]
    %v598 = vld [vmem:[#allocation13 + $0x90] sm:$0xff]
    %v599 = vld [vmem:[#allocation13 + $0x98] sm:$0xff]
    %v600 = vld [vmem:[#allocation13 + $0xa0] sm:$0xff]
    %v601 = vld [vmem:[#allocation13 + $0xa8] sm:$0xff]
    %v602 = vld [vmem:[#allocation13 + $0xb0] sm:$0xff]
    %v603 = vld [vmem:[#allocation13 + $0xb8] sm:$0xff]
    %v604 = vld [vmem:[#allocation13 + $0xc0] sm:$0xff]
    %v605 = vld [vmem:[#allocation13 + $0xc8] sm:$0xff]
    %v606 = vld [vmem:[#allocation13 + $0xd0] sm:$0xff]
    %v607 = vld [vmem:[#allocation13 + $0xd8] sm:$0xff]
    %v608 = vld [vmem:[#allocation13 + $0xe0] sm:$0xff]
    %v609 = vld [vmem:[#allocation13 + $0xe8] sm:$0xff]
    %v610 = vld [vmem:[#allocation13 + $0xf0] sm:$0xff]
    %v611 = vld [vmem:[#allocation13 + $0xf8] sm:$0xff]
    %v612 = vld [vmem:[#allocation15] sm:$0xff]
    %v613 = vld [vmem:[#allocation15 + $0x8] sm:$0xff]
    %v614 = vld [vmem:[#allocation15 + $0x10] sm:$0xff]
    %v615 = vld [vmem:[#allocation15 + $0x18] sm:$0xff]
    %v616 = vld [vmem:[#allocation15 + $0x20] sm:$0xff]
    %v617 = vld [vmem:[#allocation15 + $0x28] sm:$0xff]
    %v618 = vld [vmem:[#allocation15 + $0x30] sm:$0xff]
    %v619 = vld [vmem:[#allocation15 + $0x38] sm:$0xff]
    %v620 = vld [vmem:[#allocation15 + $0x40] sm:$0xff]
    %v621 = vld [vmem:[#allocation15 + $0x48] sm:$0xff]
    %v622 = vld [vmem:[#allocation15 + $0x50] sm:$0xff]
    %v623 = vld [vmem:[#allocation15 + $0x58] sm:$0xff]
    %v624 = vld [vmem:[#allocation15 + $0x60] sm:$0xff]
    %v625 = vld [vmem:[#allocation15 + $0x68] sm:$0xff]
    %v626 = vld [vmem:[#allocation15 + $0x70] sm:$0xff]
    %v627 = vld [vmem:[#allocation15 + $0x78] sm:$0xff]
    %v628 = vld [vmem:[#allocation15 + $0x80] sm:$0xff]
    %v629 = vld [vmem:[#allocation15 + $0x88] sm:$0xff]
    %v630 = vld [vmem:[#allocation15 + $0x90] sm:$0xff]
    %v631 = vld [vmem:[#allocation15 + $0x98] sm:$0xff]
    %v632 = vld [vmem:[#allocation15 + $0xa0] sm:$0xff]
    %v633 = vld [vmem:[#allocation15 + $0xa8] sm:$0xff]
    %v634 = vld [vmem:[#allocation15 + $0xb0] sm:$0xff]
    %v635 = vld [vmem:[#allocation15 + $0xb8] sm:$0xff]
    %v636 = vld [vmem:[#allocation15 + $0xc0] sm:$0xff]
    %v637 = vld [vmem:[#allocation15 + $0xc8] sm:$0xff]
    %v638 = vld [vmem:[#allocation15 + $0xd0] sm:$0xff]
    %v639 = vld [vmem:[#allocation15 + $0xd8] sm:$0xff]
    %v640 = vld [vmem:[#allocation15 + $0xe0] sm:$0xff]
    %v641 = vld [vmem:[#allocation15 + $0xe8] sm:$0xff]
    %v642 = vld [vmem:[#allocation15 + $0xf0] sm:$0xff]
    %v643 = vld [vmem:[#allocation15 + $0xf8] sm:$0xff]
    %v644 = vld [vmem:[%s6] sm:$0xf]
    %v646 = vlaneseq
    %v647 = vshrl.u32 %v646, 7
    %v648 = vsub.s32 0, %v647
    %v649 = vrot.slane %v644, %v648
    %v650 = vlaneseq
    %v651 = vshrl.u32 %v650, 7
    %v652 = vsub.s32 1, %v651
    %v653 = vrot.slane %v644, %v652
    %v654 = vlaneseq
    %v655 = vshrl.u32 %v654, 7
    %v656 = vsub.s32 2, %v655
    %v657 = vrot.slane %v644, %v656
    %v658 = vlaneseq
    %v659 = vshrl.u32 %v658, 7
    %v660 = vsub.s32 3, %v659
    %v661 = vrot.slane %v644, %v660
    %v666 = vld [vmem:[#allocation2] sm:$0xff]
    %v667 = vld [vmem:[#allocation3] sm:$0xff]
    %v668 = vld [vmem:[#allocation4] sm:$0xff]
    %v669 = vld [vmem:[#allocation5] sm:$0xff]
    %s670 = smul.u32 0, 4
    %s671 = smul.addr %s670, 8
    %s672 = scalar_lea.vmem [#allocation6], %s671
    %v673 = vld [vmem:[%s672] sm:$0xff]
    %v674 = vld [vmem:[%s672 + $0x8] sm:$0xff]
    %v675 = vld [vmem:[%s672 + $0x10] sm:$0xff]
    %v676 = vld [vmem:[%s672 + $0x18] sm:$0xff]
    %v677 = vpack.c.bf16 %v668, %v668
    %v710 = vunpack.c.l.b16 %v612
    %v711 = vunpack.c.h.b16 %v612
    %v712 = vunpack.c.l.b16 %v613
    %v713 = vunpack.c.h.b16 %v613
    %v714 = vunpack.c.l.b16 %v614
    %v715 = vunpack.c.h.b16 %v614
    %v716 = vunpack.c.l.b16 %v615
    %v717 = vunpack.c.h.b16 %v615
    %v718 = vunpack.c.l.b16 %v616
    %v719 = vunpack.c.h.b16 %v616
    %v720 = vunpack.c.l.b16 %v617
    %v721 = vunpack.c.h.b16 %v617
    %v722 = vunpack.c.l.b16 %v618
    %v723 = vunpack.c.h.b16 %v618
    %v724 = vunpack.c.l.b16 %v619
    %v725 = vunpack.c.h.b16 %v619
    %v726 = vunpack.c.l.b16 %v620
    %v727 = vunpack.c.h.b16 %v620
    %v728 = vunpack.c.l.b16 %v621
    %v729 = vunpack.c.h.b16 %v621
    %v730 = vunpack.c.l.b16 %v622
    %v731 = vunpack.c.h.b16 %v622
    %v732 = vunpack.c.l.b16 %v623
    %v733 = vunpack.c.h.b16 %v623
    %v734 = vunpack.c.l.b16 %v624
    %v735 = vunpack.c.h.b16 %v624
    %v736 = vunpack.c.l.b16 %v625
    %v737 = vunpack.c.h.b16 %v625
    %v738 = vunpack.c.l.b16 %v626
    %v739 = vunpack.c.h.b16 %v626
    %v740 = vunpack.c.l.b16 %v627
    %v741 = vunpack.c.h.b16 %v627
    %v742 = vunpack.c.l.b16 %v628
    %v743 = vunpack.c.h.b16 %v628
    %v744 = vunpack.c.l.b16 %v629
    %v745 = vunpack.c.h.b16 %v629
    %v746 = vunpack.c.l.b16 %v630
    %v747 = vunpack.c.h.b16 %v630
    %v748 = vunpack.c.l.b16 %v631
    %v749 = vunpack.c.h.b16 %v631
    %v750 = vunpack.c.l.b16 %v632
    %v751 = vunpack.c.h.b16 %v632
    %v752 = vunpack.c.l.b16 %v633
    %v753 = vunpack.c.h.b16 %v633
    %v754 = vunpack.c.l.b16 %v634
    %v755 = vunpack.c.h.b16 %v634
    %v756 = vunpack.c.l.b16 %v635
    %v757 = vunpack.c.h.b16 %v635
    %v758 = vunpack.c.l.b16 %v636
    %v759 = vunpack.c.h.b16 %v636
    %v760 = vunpack.c.l.b16 %v637
    %v761 = vunpack.c.h.b16 %v637
    %v762 = vunpack.c.l.b16 %v638
    %v763 = vunpack.c.h.b16 %v638
    %v764 = vunpack.c.l.b16 %v639
    %v765 = vunpack.c.h.b16 %v639
    %v766 = vunpack.c.l.b16 %v640
    %v767 = vunpack.c.h.b16 %v640
    %v768 = vunpack.c.l.b16 %v641
    %v769 = vunpack.c.h.b16 %v641
    %v770 = vunpack.c.l.b16 %v642
    %v771 = vunpack.c.h.b16 %v642
    %v772 = vunpack.c.l.b16 %v643
    %v773 = vunpack.c.h.b16 %v643
    %v774 = vpack.c.b16 %v714, %v710
    %v775 = vpack.c.b16 %v715, %v711
    %v776 = vpack.c.b16 %v716, %v712
    %v777 = vpack.c.b16 %v717, %v713
    %v778 = vpack.c.b16 %v722, %v718
    %v779 = vpack.c.b16 %v723, %v719
    %v780 = vpack.c.b16 %v724, %v720
    %v781 = vpack.c.b16 %v725, %v721
    %v782 = vpack.c.b16 %v730, %v726
    %v783 = vpack.c.b16 %v731, %v727
    %v784 = vpack.c.b16 %v732, %v728
    %v785 = vpack.c.b16 %v733, %v729
    %v786 = vpack.c.b16 %v738, %v734
    %v787 = vpack.c.b16 %v739, %v735
    %v788 = vpack.c.b16 %v740, %v736
    %v789 = vpack.c.b16 %v741, %v737
    %v790 = vpack.c.b16 %v746, %v742
    %v791 = vpack.c.b16 %v747, %v743
    %v792 = vpack.c.b16 %v748, %v744
    %v793 = vpack.c.b16 %v749, %v745
    %v794 = vpack.c.b16 %v754, %v750
    %v795 = vpack.c.b16 %v755, %v751
    %v796 = vpack.c.b16 %v756, %v752
    %v797 = vpack.c.b16 %v757, %v753
    %v798 = vpack.c.b16 %v762, %v758
    %v799 = vpack.c.b16 %v763, %v759
    %v800 = vpack.c.b16 %v764, %v760
    %v801 = vpack.c.b16 %v765, %v761
    %v802 = vpack.c.b16 %v770, %v766
    %v803 = vpack.c.b16 %v771, %v767
    %v804 = vpack.c.b16 %v772, %v768
    %v805 = vpack.c.b16 %v773, %v769
    %838 = vmatprep.subr.bf16.mxu0 %v775
    %839 = vmatpush1.bf16.msra.mxu0 %v774
    %840 = vmatprep.subr.bf16.mxu0 %v779
    %841 = vmatpush1.bf16.msra.mxu0 %v778
    %842 = vmatprep.subr.bf16.mxu0 %v783
    %843 = vmatpush1.bf16.msra.mxu0 %v782
    %844 = vmatprep.subr.bf16.mxu0 %v787
    %845 = vmatpush1.bf16.msra.mxu0 %v786
    %846 = vmatprep.subr.bf16.mxu0 %v791
    %847 = vmatpush1.bf16.msra.mxu0 %v790
    %848 = vmatprep.subr.bf16.mxu0 %v795
    %849 = vmatpush1.bf16.msra.mxu0 %v794
    %850 = vmatprep.subr.bf16.mxu0 %v799
    %851 = vmatpush1.bf16.msra.mxu0 %v798
    %852 = vmatprep.subr.bf16.mxu0 %v803
    %853 = vmatpush1.bf16.msra.mxu0 %v802
    %854 = vmatprep.subr.bf16.mxu0 0
    %855 = vmatpush1.bf16.msra.mxu0 0
    %856 = vmatprep.subr.bf16.mxu0 0
    %857 = vmatpush1.bf16.msra.mxu0 0
    %858 = vmatprep.subr.bf16.mxu0 0
    %859 = vmatpush1.bf16.msra.mxu0 0
    %860 = vmatprep.subr.bf16.mxu0 0
    %861 = vmatpush1.bf16.msra.mxu0 0
    %862 = vmatprep.subr.bf16.mxu0 0
    %863 = vmatpush1.bf16.msra.mxu0 0
    %864 = vmatprep.subr.bf16.mxu0 0
    %865 = vmatpush1.bf16.msra.mxu0 0
    %866 = vmatprep.subr.bf16.mxu0 0
    %867 = vmatpush1.bf16.msra.mxu0 0
    %868 = vmatprep.subr.bf16.mxu0 0
    %869 = vmatpush1.bf16.msra.mxu0 0
    %870 = vmatprep.mubr.bf16.mxu0 0
    %871 = vmatmul.mubr.bf16.gmra.mrb[0].mxu0 %v677
    %v872 = vpop.f32.mrb[0].mxu0
    %v873 = vadd.f32 0.0, %v872
    %v874 = vpop.f32.mrb[0].mxu0
    %v875 = vadd.f32 0.0, %v874
    %v876 = vpop.f32.mrb[0].mxu0
    %v877 = vpop.f32.mrb[0].mxu0
    %878 = vdwg.mxu0
    %879 = vmatprep.subr.bf16.mxu0 %v777
    %880 = vmatpush1.bf16.msra.mxu0 %v776
    %881 = vmatprep.subr.bf16.mxu0 %v781
    %882 = vmatpush1.bf16.msra.mxu0 %v780
    %883 = vmatprep.subr.bf16.mxu0 %v785
    %884 = vmatpush1.bf16.msra.mxu0 %v784
    %885 = vmatprep.subr.bf16.mxu0 %v789
    %886 = vmatpush1.bf16.msra.mxu0 %v788
    %887 = vmatprep.subr.bf16.mxu0 %v793
    %888 = vmatpush1.bf16.msra.mxu0 %v792
    %889 = vmatprep.subr.bf16.mxu0 %v797
    %890 = vmatpush1.bf16.msra.mxu0 %v796
    %891 = vmatprep.subr.bf16.mxu0 %v801
    %892 = vmatpush1.bf16.msra.mxu0 %v800
    %893 = vmatprep.subr.bf16.mxu0 %v805
    %894 = vmatpush1.bf16.msra.mxu0 %v804
    %895 = vmatprep.subr.bf16.mxu0 0
    %896 = vmatpush1.bf16.msra.mxu0 0
    %897 = vmatprep.subr.bf16.mxu0 0
    %898 = vmatpush1.bf16.msra.mxu0 0
    %899 = vmatprep.subr.bf16.mxu0 0
    %900 = vmatpush1.bf16.msra.mxu0 0
    %901 = vmatprep.subr.bf16.mxu0 0
    %902 = vmatpush1.bf16.msra.mxu0 0
    %903 = vmatprep.subr.bf16.mxu0 0
    %904 = vmatpush1.bf16.msra.mxu0 0
    %905 = vmatprep.subr.bf16.mxu0 0
    %906 = vmatpush1.bf16.msra.mxu0 0
    %907 = vmatprep.subr.bf16.mxu0 0
    %908 = vmatpush1.bf16.msra.mxu0 0
    %909 = vmatprep.subr.bf16.mxu0 0
    %910 = vmatpush1.bf16.msra.mxu0 0
    %911 = vmatprep.mubr.bf16.mxu0 0
    %912 = vmatmul.mubr.bf16.gmra.mrb[0].mxu0 %v677
    %v913 = vpop.f32.mrb[0].mxu0
    %v914 = vadd.f32 0.0, %v913
    %v915 = vpop.f32.mrb[0].mxu0
    %v916 = vadd.f32 0.0, %v915
    %v917 = vpop.f32.mrb[0].mxu0
    %v918 = vpop.f32.mrb[0].mxu0
    %919 = vdwg.mxu0
    %v920 = vpack.c.bf16 %v666, %v666
    %v953 = vunpack.c.l.b16 %v548
    %v954 = vunpack.c.h.b16 %v548
    %v955 = vunpack.c.l.b16 %v549
    %v956 = vunpack.c.h.b16 %v549
    %v957 = vunpack.c.l.b16 %v550
    %v958 = vunpack.c.h.b16 %v550
    %v959 = vunpack.c.l.b16 %v551
    %v960 = vunpack.c.h.b16 %v551
    %v961 = vunpack.c.l.b16 %v552
    %v962 = vunpack.c.h.b16 %v552
    %v963 = vunpack.c.l.b16 %v553
    %v964 = vunpack.c.h.b16 %v553
    %v965 = vunpack.c.l.b16 %v554
    %v966 = vunpack.c.h.b16 %v554
    %v967 = vunpack.c.l.b16 %v555
    %v968 = vunpack.c.h.b16 %v555
    %v969 = vunpack.c.l.b16 %v556
    %v970 = vunpack.c.h.b16 %v556
    %v971 = vunpack.c.l.b16 %v557
    %v972 = vunpack.c.h.b16 %v557
    %v973 = vunpack.c.l.b16 %v558
    %v974 = vunpack.c.h.b16 %v558
    %v975 = vunpack.c.l.b16 %v559
    %v976 = vunpack.c.h.b16 %v559
    %v977 = vunpack.c.l.b16 %v560
    %v978 = vunpack.c.h.b16 %v560
    %v979 = vunpack.c.l.b16 %v561
    %v980 = vunpack.c.h.b16 %v561
    %v981 = vunpack.c.l.b16 %v562
    %v982 = vunpack.c.h.b16 %v562
    %v983 = vunpack.c.l.b16 %v563
    %v984 = vunpack.c.h.b16 %v563
    %v985 = vunpack.c.l.b16 %v564
    %v986 = vunpack.c.h.b16 %v564
    %v987 = vunpack.c.l.b16 %v565
    %v988 = vunpack.c.h.b16 %v565
    %v989 = vunpack.c.l.b16 %v566
    %v990 = vunpack.c.h.b16 %v566
    %v991 = vunpack.c.l.b16 %v567
    %v992 = vunpack.c.h.b16 %v567
    %v993 = vunpack.c.l.b16 %v568
    %v994 = vunpack.c.h.b16 %v568
    %v995 = vunpack.c.l.b16 %v569
    %v996 = vunpack.c.h.b16 %v569
    %v997 = vunpack.c.l.b16 %v570
    %v998 = vunpack.c.h.b16 %v570
    %v999 = vunpack.c.l.b16 %v571
    %v1000 = vunpack.c.h.b16 %v571
    %v1001 = vunpack.c.l.b16 %v572
    %v1002 = vunpack.c.h.b16 %v572
    %v1003 = vunpack.c.l.b16 %v573
    %v1004 = vunpack.c.h.b16 %v573
    %v1005 = vunpack.c.l.b16 %v574
    %v1006 = vunpack.c.h.b16 %v574
    %v1007 = vunpack.c.l.b16 %v575
    %v1008 = vunpack.c.h.b16 %v575
    %v1009 = vunpack.c.l.b16 %v576
    %v1010 = vunpack.c.h.b16 %v576
    %v1011 = vunpack.c.l.b16 %v577
    %v1012 = vunpack.c.h.b16 %v577
    %v1013 = vunpack.c.l.b16 %v578
    %v1014 = vunpack.c.h.b16 %v578
    %v1015 = vunpack.c.l.b16 %v579
    %v1016 = vunpack.c.h.b16 %v579
    %v1017 = vpack.c.b16 %v957, %v953
    %v1018 = vpack.c.b16 %v958, %v954
    %v1019 = vpack.c.b16 %v959, %v955
    %v1020 = vpack.c.b16 %v960, %v956
    %v1021 = vpack.c.b16 %v965, %v961
    %v1022 = vpack.c.b16 %v966, %v962
    %v1023 = vpack.c.b16 %v967, %v963
    %v1024 = vpack.c.b16 %v968, %v964
    %v1025 = vpack.c.b16 %v973, %v969
    %v1026 = vpack.c.b16 %v974, %v970
    %v1027 = vpack.c.b16 %v975, %v971
    %v1028 = vpack.c.b16 %v976, %v972
    %v1029 = vpack.c.b16 %v981, %v977
    %v1030 = vpack.c.b16 %v982, %v978
    %v1031 = vpack.c.b16 %v983, %v979
    %v1032 = vpack.c.b16 %v984, %v980
    %v1033 = vpack.c.b16 %v989, %v985
    %v1034 = vpack.c.b16 %v990, %v986
    %v1035 = vpack.c.b16 %v991, %v987
    %v1036 = vpack.c.b16 %v992, %v988
    %v1037 = vpack.c.b16 %v997, %v993
    %v1038 = vpack.c.b16 %v998, %v994
    %v1039 = vpack.c.b16 %v999, %v995
    %v1040 = vpack.c.b16 %v1000, %v996
    %v1041 = vpack.c.b16 %v1005, %v1001
    %v1042 = vpack.c.b16 %v1006, %v1002
    %v1043 = vpack.c.b16 %v1007, %v1003
    %v1044 = vpack.c.b16 %v1008, %v1004
    %v1045 = vpack.c.b16 %v1013, %v1009
    %v1046 = vpack.c.b16 %v1014, %v1010
    %v1047 = vpack.c.b16 %v1015, %v1011
    %v1048 = vpack.c.b16 %v1016, %v1012
    %1081 = vmatprep.subr.bf16.mxu0 %v1018
    %1082 = vmatpush1.bf16.msra.mxu0 %v1017
    %1083 = vmatprep.subr.bf16.mxu0 %v1022
    %1084 = vmatpush1.bf16.msra.mxu0 %v1021
    %1085 = vmatprep.subr.bf16.mxu0 %v1026
    %1086 = vmatpush1.bf16.msra.mxu0 %v1025
    %1087 = vmatprep.subr.bf16.mxu0 %v1030
    %1088 = vmatpush1.bf16.msra.mxu0 %v1029
    %1089 = vmatprep.subr.bf16.mxu0 %v1034
    %1090 = vmatpush1.bf16.msra.mxu0 %v1033
    %1091 = vmatprep.subr.bf16.mxu0 %v1038
    %1092 = vmatpush1.bf16.msra.mxu0 %v1037
    %1093 = vmatprep.subr.bf16.mxu0 %v1042
    %1094 = vmatpush1.bf16.msra.mxu0 %v1041
    %1095 = vmatprep.subr.bf16.mxu0 %v1046
    %1096 = vmatpush1.bf16.msra.mxu0 %v1045
    %1097 = vmatprep.subr.bf16.mxu0 0
    %1098 = vmatpush1.bf16.msra.mxu0 0
    %1099 = vmatprep.subr.bf16.mxu0 0
    %1100 = vmatpush1.bf16.msra.mxu0 0
    %1101 = vmatprep.subr.bf16.mxu0 0
    %1102 = vmatpush1.bf16.msra.mxu0 0
    %1103 = vmatprep.subr.bf16.mxu0 0
    %1104 = vmatpush1.bf16.msra.mxu0 0
    %1105 = vmatprep.subr.bf16.mxu0 0
    %1106 = vmatpush1.bf16.msra.mxu0 0
    %1107 = vmatprep.subr.bf16.mxu0 0
    %1108 = vmatpush1.bf16.msra.mxu0 0
    %1109 = vmatprep.subr.bf16.mxu0 0
    %1110 = vmatpush1.bf16.msra.mxu0 0
    %1111 = vmatprep.subr.bf16.mxu0 0
    %1112 = vmatpush1.bf16.msra.mxu0 0
    %1113 = vmatprep.mubr.bf16.mxu0 0
    %1114 = vmatmul.mubr.bf16.gmra.mrb[0].mxu0 %v920
    %v1115 = vpop.f32.mrb[0].mxu0
    %v1116 = vadd.f32 0.0, %v1115
    %v1117 = vpop.f32.mrb[0].mxu0
    %v1118 = vadd.f32 0.0, %v1117
    %v1119 = vpop.f32.mrb[0].mxu0
    %v1120 = vpop.f32.mrb[0].mxu0
    %1121 = vdwg.mxu0
    %1122 = vmatprep.subr.bf16.mxu0 %v1020
    %1123 = vmatpush1.bf16.msra.mxu0 %v1019
    %1124 = vmatprep.subr.bf16.mxu0 %v1024
    %1125 = vmatpush1.bf16.msra.mxu0 %v1023
    %1126 = vmatprep.subr.bf16.mxu0 %v1028
    %1127 = vmatpush1.bf16.msra.mxu0 %v1027
    %1128 = vmatprep.subr.bf16.mxu0 %v1032
    %1129 = vmatpush1.bf16.msra.mxu0 %v1031
    %1130 = vmatprep.subr.bf16.mxu0 %v1036
    %1131 = vmatpush1.bf16.msra.mxu0 %v1035
    %1132 = vmatprep.subr.bf16.mxu0 %v1040
    %1133 = vmatpush1.bf16.msra.mxu0 %v1039
    %1134 = vmatprep.subr.bf16.mxu0 %v1044
    %1135 = vmatpush1.bf16.msra.mxu0 %v1043
    %1136 = vmatprep.subr.bf16.mxu0 %v1048
    %1137 = vmatpush1.bf16.msra.mxu0 %v1047
    %1138 = vmatprep.subr.bf16.mxu0 0
    %1139 = vmatpush1.bf16.msra.mxu0 0
    %1140 = vmatprep.subr.bf16.mxu0 0
    %1141 = vmatpush1.bf16.msra.mxu0 0
    %1142 = vmatprep.subr.bf16.mxu0 0
    %1143 = vmatpush1.bf16.msra.mxu0 0
    %1144 = vmatprep.subr.bf16.mxu0 0
    %1145 = vmatpush1.bf16.msra.mxu0 0
    %1146 = vmatprep.subr.bf16.mxu0 0
    %1147 = vmatpush1.bf16.msra.mxu0 0
    %1148 = vmatprep.subr.bf16.mxu0 0
    %1149 = vmatpush1.bf16.msra.mxu0 0
    %1150 = vmatprep.subr.bf16.mxu0 0
    %1151 = vmatpush1.bf16.msra.mxu0 0
    %1152 = vmatprep.subr.bf16.mxu0 0
    %1153 = vmatpush1.bf16.msra.mxu0 0
    %1154 = vmatprep.mubr.bf16.mxu0 0
    %1155 = vmatmul.mubr.bf16.gmra.mrb[0].mxu0 %v920
    %v1156 = vpop.f32.mrb[0].mxu0
    %v1157 = vadd.f32 0.0, %v1156
    %v1158 = vpop.f32.mrb[0].mxu0
    %v1159 = vadd.f32 0.0, %v1158
    %v1160 = vpop.f32.mrb[0].mxu0
    %v1161 = vpop.f32.mrb[0].mxu0
    %1162 = vdwg.mxu0
    %v1163 = vadd.f32 %v673, %v1116
    %v1164 = vadd.f32 %v674, %v1118
    %v1165 = vadd.f32 %v675, %v1157
    %v1166 = vadd.f32 %v676, %v1159
    %v1167 = vxor.u32 %v1163, 2147483648
    %v1168 = vmul.f32 %v1167, 1.442695
    %v1169 = vpow.pop %v1168
    %v1170 = vadd.f32 %v1169, 1.0
    %v1171 = vrcp.pop %v1170
    %v1172 = vmul.f32 1.0, %v1171
    %v1173 = vxor.u32 %v1164, 2147483648
    %v1174 = vmul.f32 %v1173, 1.442695
    %v1175 = vpow.pop %v1174
    %v1176 = vadd.f32 %v1175, 1.0
    %v1177 = vrcp.pop %v1176
    %v1178 = vmul.f32 1.0, %v1177
    %v1179 = vtanh.pop %v1165
    %v1180 = vxor.u32 %v1166, 2147483648
    %v1181 = vmul.f32 %v1180, 1.442695
    %v1182 = vpow.pop %v1181
    %v1183 = vadd.f32 %v1182, 1.0
    %v1184 = vrcp.pop %v1183
    %v1185 = vmul.f32 1.0, %v1184
    %v1186 = vmul.f32 %v1178, %v667
    %v1187 = vmul.f32 %v1172, %v1179
    %v1188 = vadd.f32 %v1186, %v1187
    %v1189 = vtanh.pop %v1188
    %v1190 = vmul.f32 %v1185, %v1189
    %v1191 = vpack.c.bf16 %v1190, %v1190
    %v1224 = vunpack.c.l.b16 %v580
    %v1225 = vunpack.c.h.b16 %v580
    %v1226 = vunpack.c.l.b16 %v581
    %v1227 = vunpack.c.h.b16 %v581
    %v1228 = vunpack.c.l.b16 %v582
    %v1229 = vunpack.c.h.b16 %v582
    %v1230 = vunpack.c.l.b16 %v583
    %v1231 = vunpack.c.h.b16 %v583
    %v1232 = vunpack.c.l.b16 %v584
    %v1233 = vunpack.c.h.b16 %v584
    %v1234 = vunpack.c.l.b16 %v585
    %v1235 = vunpack.c.h.b16 %v585
    %v1236 = vunpack.c.l.b16 %v586
    %v1237 = vunpack.c.h.b16 %v586
    %v1238 = vunpack.c.l.b16 %v587
    %v1239 = vunpack.c.h.b16 %v587
    %v1240 = vunpack.c.l.b16 %v588
    %v1241 = vunpack.c.h.b16 %v588
    %v1242 = vunpack.c.l.b16 %v589
    %v1243 = vunpack.c.h.b16 %v589
    %v1244 = vunpack.c.l.b16 %v590
    %v1245 = vunpack.c.h.b16 %v590
    %v1246 = vunpack.c.l.b16 %v591
    %v1247 = vunpack.c.h.b16 %v591
    %v1248 = vunpack.c.l.b16 %v592
    %v1249 = vunpack.c.h.b16 %v592
    %v1250 = vunpack.c.l.b16 %v593
    %v1251 = vunpack.c.h.b16 %v593
    %v1252 = vunpack.c.l.b16 %v594
    %v1253 = vunpack.c.h.b16 %v594
    %v1254 = vunpack.c.l.b16 %v595
    %v1255 = vunpack.c.h.b16 %v595
    %v1256 = vunpack.c.l.b16 %v596
    %v1257 = vunpack.c.h.b16 %v596
    %v1258 = vunpack.c.l.b16 %v597
    %v1259 = vunpack.c.h.b16 %v597
    %v1260 = vunpack.c.l.b16 %v598
    %v1261 = vunpack.c.h.b16 %v598
    %v1262 = vunpack.c.l.b16 %v599
    %v1263 = vunpack.c.h.b16 %v599
    %v1264 = vunpack.c.l.b16 %v600
    %v1265 = vunpack.c.h.b16 %v600
    %v1266 = vunpack.c.l.b16 %v601
    %v1267 = vunpack.c.h.b16 %v601
    %v1268 = vunpack.c.l.b16 %v602
    %v1269 = vunpack.c.h.b16 %v602
    %v1270 = vunpack.c.l.b16 %v603
    %v1271 = vunpack.c.h.b16 %v603
    %v1272 = vunpack.c.l.b16 %v604
    %v1273 = vunpack.c.h.b16 %v604
    %v1274 = vunpack.c.l.b16 %v605
    %v1275 = vunpack.c.h.b16 %v605
    %v1276 = vunpack.c.l.b16 %v606
    %v1277 = vunpack.c.h.b16 %v606
    %v1278 = vunpack.c.l.b16 %v607
    %v1279 = vunpack.c.h.b16 %v607
    %v1280 = vunpack.c.l.b16 %v608
    %v1281 = vunpack.c.h.b16 %v608
    %v1282 = vunpack.c.l.b16 %v609
    %v1283 = vunpack.c.h.b16 %v609
    %v1284 = vunpack.c.l.b16 %v610
    %v1285 = vunpack.c.h.b16 %v610
    %v1286 = vunpack.c.l.b16 %v611
    %v1287 = vunpack.c.h.b16 %v611
    %v1288 = vpack.c.b16 %v1228, %v1224
    %v1289 = vpack.c.b16 %v1229, %v1225
    %v1290 = vpack.c.b16 %v1230, %v1226
    %v1291 = vpack.c.b16 %v1231, %v1227
    %v1292 = vpack.c.b16 %v1236, %v1232
    %v1293 = vpack.c.b16 %v1237, %v1233
    %v1294 = vpack.c.b16 %v1238, %v1234
    %v1295 = vpack.c.b16 %v1239, %v1235
    %v1296 = vpack.c.b16 %v1244, %v1240
    %v1297 = vpack.c.b16 %v1245, %v1241
    %v1298 = vpack.c.b16 %v1246, %v1242
    %v1299 = vpack.c.b16 %v1247, %v1243
    %v1300 = vpack.c.b16 %v1252, %v1248
    %v1301 = vpack.c.b16 %v1253, %v1249
    %v1302 = vpack.c.b16 %v1254, %v1250
    %v1303 = vpack.c.b16 %v1255, %v1251
    %v1304 = vpack.c.b16 %v1260, %v1256
    %v1305 = vpack.c.b16 %v1261, %v1257
    %v1306 = vpack.c.b16 %v1262, %v1258
    %v1307 = vpack.c.b16 %v1263, %v1259
    %v1308 = vpack.c.b16 %v1268, %v1264
    %v1309 = vpack.c.b16 %v1269, %v1265
    %v1310 = vpack.c.b16 %v1270, %v1266
    %v1311 = vpack.c.b16 %v1271, %v1267
    %v1312 = vpack.c.b16 %v1276, %v1272
    %v1313 = vpack.c.b16 %v1277, %v1273
    %v1314 = vpack.c.b16 %v1278, %v1274
    %v1315 = vpack.c.b16 %v1279, %v1275
    %v1316 = vpack.c.b16 %v1284, %v1280
    %v1317 = vpack.c.b16 %v1285, %v1281
    %v1318 = vpack.c.b16 %v1286, %v1282
    %v1319 = vpack.c.b16 %v1287, %v1283
    %1352 = vmatprep.subr.bf16.mxu0 %v1289
    %1353 = vmatpush1.bf16.msra.mxu0 %v1288
    %1354 = vmatprep.subr.bf16.mxu0 %v1293
    %1355 = vmatpush1.bf16.msra.mxu0 %v1292
    %1356 = vmatprep.subr.bf16.mxu0 %v1297
    %1357 = vmatpush1.bf16.msra.mxu0 %v1296
    %1358 = vmatprep.subr.bf16.mxu0 %v1301
    %1359 = vmatpush1.bf16.msra.mxu0 %v1300
    %1360 = vmatprep.subr.bf16.mxu0 %v1305
    %1361 = vmatpush1.bf16.msra.mxu0 %v1304
    %1362 = vmatprep.subr.bf16.mxu0 %v1309
    %1363 = vmatpush1.bf16.msra.mxu0 %v1308
    %1364 = vmatprep.subr.bf16.mxu0 %v1313
    %1365 = vmatpush1.bf16.msra.mxu0 %v1312
    %1366 = vmatprep.subr.bf16.mxu0 %v1317
    %1367 = vmatpush1.bf16.msra.mxu0 %v1316
    %1368 = vmatprep.subr.bf16.mxu0 0
    %1369 = vmatpush1.bf16.msra.mxu0 0
    %1370 = vmatprep.subr.bf16.mxu0 0
    %1371 = vmatpush1.bf16.msra.mxu0 0
    %1372 = vmatprep.subr.bf16.mxu0 0
    %1373 = vmatpush1.bf16.msra.mxu0 0
    %1374 = vmatprep.subr.bf16.mxu0 0
    %1375 = vmatpush1.bf16.msra.mxu0 0
    %1376 = vmatprep.subr.bf16.mxu0 0
    %1377 = vmatpush1.bf16.msra.mxu0 0
    %1378 = vmatprep.subr.bf16.mxu0 0
    %1379 = vmatpush1.bf16.msra.mxu0 0
    %1380 = vmatprep.subr.bf16.mxu0 0
    %1381 = vmatpush1.bf16.msra.mxu0 0
    %1382 = vmatprep.subr.bf16.mxu0 0
    %1383 = vmatpush1.bf16.msra.mxu0 0
    %1384 = vmatprep.mubr.bf16.mxu0 0
    %1385 = vmatmul.mubr.bf16.gmra.mrb[0].mxu0 %v1191
    %v1386 = vpop.f32.mrb[0].mxu0
    %v1387 = vadd.f32 %v873, %v1386
    %v1388 = vpop.f32.mrb[0].mxu0
    %v1389 = vadd.f32 %v875, %v1388
    %v1390 = vpop.f32.mrb[0].mxu0
    %v1391 = vpop.f32.mrb[0].mxu0
    %1392 = vdwg.mxu0
    %1393 = vmatprep.subr.bf16.mxu0 %v1291
    %1394 = vmatpush1.bf16.msra.mxu0 %v1290
    %1395 = vmatprep.subr.bf16.mxu0 %v1295
    %1396 = vmatpush1.bf16.msra.mxu0 %v1294
    %1397 = vmatprep.subr.bf16.mxu0 %v1299
    %1398 = vmatpush1.bf16.msra.mxu0 %v1298
    %1399 = vmatprep.subr.bf16.mxu0 %v1303
    %1400 = vmatpush1.bf16.msra.mxu0 %v1302
    %1401 = vmatprep.subr.bf16.mxu0 %v1307
    %1402 = vmatpush1.bf16.msra.mxu0 %v1306
    %1403 = vmatprep.subr.bf16.mxu0 %v1311
    %1404 = vmatpush1.bf16.msra.mxu0 %v1310
    %1405 = vmatprep.subr.bf16.mxu0 %v1315
    %1406 = vmatpush1.bf16.msra.mxu0 %v1314
    %1407 = vmatprep.subr.bf16.mxu0 %v1319
    %1408 = vmatpush1.bf16.msra.mxu0 %v1318
    %1409 = vmatprep.subr.bf16.mxu0 0
    %1410 = vmatpush1.bf16.msra.mxu0 0
    %1411 = vmatprep.subr.bf16.mxu0 0
    %1412 = vmatpush1.bf16.msra.mxu0 0
    %1413 = vmatprep.subr.bf16.mxu0 0
    %1414 = vmatpush1.bf16.msra.mxu0 0
    %1415 = vmatprep.subr.bf16.mxu0 0
    %1416 = vmatpush1.bf16.msra.mxu0 0
    %1417 = vmatprep.subr.bf16.mxu0 0
    %1418 = vmatpush1.bf16.msra.mxu0 0
    %1419 = vmatprep.subr.bf16.mxu0 0
    %1420 = vmatpush1.bf16.msra.mxu0 0
    %1421 = vmatprep.subr.bf16.mxu0 0
    %1422 = vmatpush1.bf16.msra.mxu0 0
    %1423 = vmatprep.subr.bf16.mxu0 0
    %1424 = vmatpush1.bf16.msra.mxu0 0
    %1425 = vmatprep.mubr.bf16.mxu0 0
    %1426 = vmatmul.mubr.bf16.gmra.mrb[0].mxu0 %v1191
    %v1427 = vpop.f32.mrb[0].mxu0
    %v1428 = vadd.f32 %v914, %v1427
    %v1429 = vpop.f32.mrb[0].mxu0
    %v1430 = vadd.f32 %v916, %v1429
    %v1431 = vpop.f32.mrb[0].mxu0
    %v1432 = vpop.f32.mrb[0].mxu0
    %1433 = vdwg.mxu0
    %v1434 = vadd.f32 %v1387, %v649
    %v1435 = vadd.f32 %v1389, %v653
    %v1436 = vadd.f32 %v1428, %v657
    %v1437 = vadd.f32 %v1430, %v661
    %v1438 = vxor.u32 %v1434, 2147483648
    %v1439 = vmul.f32 %v1438, 1.442695
    %v1440 = vpow.pop %v1439
    %v1441 = vadd.f32 %v1440, 1.0
    %v1442 = vrcp.pop %v1441
    %v1443 = vmul.f32 1.0, %v1442
    %v1444 = vxor.u32 %v1435, 2147483648
    %v1445 = vmul.f32 %v1444, 1.442695
    %v1446 = vpow.pop %v1445
    %v1447 = vadd.f32 %v1446, 1.0
    %v1448 = vrcp.pop %v1447
    %v1449 = vmul.f32 1.0, %v1448
    %v1450 = vtanh.pop %v1436
    %v1451 = vxor.u32 %v1437, 2147483648
    %v1452 = vmul.f32 %v1451, 1.442695
    %v1453 = vpow.pop %v1452
    %v1454 = vadd.f32 %v1453, 1.0
    %v1455 = vrcp.pop %v1454
    %v1456 = vmul.f32 1.0, %v1455
    %v1457 = vmul.f32 %v1449, %v669
    %v1458 = vmul.f32 %v1443, %v1450
    %v1459 = vadd.f32 %v1457, %v1458
    %v1460 = vtanh.pop %v1459
    %v1461 = vmul.f32 %v1456, %v1460
    %s1462 = smul.u32 1, 4
    %s1463 = smul.addr %s1462, 8
    %s1464 = scalar_lea.vmem [#allocation6], %s1463
    %v1465 = vld [vmem:[%s1464] sm:$0xff]
    %v1466 = vld [vmem:[%s1464 + $0x8] sm:$0xff]
    %v1467 = vld [vmem:[%s1464 + $0x10] sm:$0xff]
    %v1468 = vld [vmem:[%s1464 + $0x18] sm:$0xff]
    %v1469 = vpack.c.bf16 %v1461, %v1461
    %1470 = vmatprep.subr.bf16.mxu0 %v775
    %1471 = vmatpush1.bf16.msra.mxu0 %v774
    %1472 = vmatprep.subr.bf16.mxu0 %v779
    %1473 = vmatpush1.bf16.msra.mxu0 %v778
    %1474 = vmatprep.subr.bf16.mxu0 %v783
    %1475 = vmatpush1.bf16.msra.mxu0 %v782
    %1476 = vmatprep.subr.bf16.mxu0 %v787
    %1477 = vmatpush1.bf16.msra.mxu0 %v786
    %1478 = vmatprep.subr.bf16.mxu0 %v791
    %1479 = vmatpush1.bf16.msra.mxu0 %v790
    %1480 = vmatprep.subr.bf16.mxu0 %v795
    %1481 = vmatpush1.bf16.msra.mxu0 %v794
    %1482 = vmatprep.subr.bf16.mxu0 %v799
    %1483 = vmatpush1.bf16.msra.mxu0 %v798
    %1484 = vmatprep.subr.bf16.mxu0 %v803
    %1485 = vmatpush1.bf16.msra.mxu0 %v802
    %1486 = vmatprep.subr.bf16.mxu0 0
    %1487 = vmatpush1.bf16.msra.mxu0 0
    %1488 = vmatprep.subr.bf16.mxu0 0
    %1489 = vmatpush1.bf16.msra.mxu0 0
    %1490 = vmatprep.subr.bf16.mxu0 0
    %1491 = vmatpush1.bf16.msra.mxu0 0
    %1492 = vmatprep.subr.bf16.mxu0 0
    %1493 = vmatpush1.bf16.msra.mxu0 0
    %1494 = vmatprep.subr.bf16.mxu0 0
    %1495 = vmatpush1.bf16.msra.mxu0 0
    %1496 = vmatprep.subr.bf16.mxu0 0
    %1497 = vmatpush1.bf16.msra.mxu0 0
    %1498 = vmatprep.subr.bf16.mxu0 0
    %1499 = vmatpush1.bf16.msra.mxu0 0
    %1500 = vmatprep.subr.bf16.mxu0 0
    %1501 = vmatpush1.bf16.msra.mxu0 0
    %1502 = vmatprep.mubr.bf16.mxu0 0
    %1503 = vmatmul.mubr.bf16.gmra.mrb[0].mxu0 %v1469
    %v1504 = vpop.f32.mrb[0].mxu0
    %v1505 = vadd.f32 0.0, %v1504
    %v1506 = vpop.f32.mrb[0].mxu0
    %v1507 = vadd.f32 0.0, %v1506
    %v1508 = vpop.f32.mrb[0].mxu0
    %v1509 = vpop.f32.mrb[0].mxu0
    %1510 = vdwg.mxu0
    %1511 = vmatprep.subr.bf16.mxu0 %v777
    %1512 = vmatpush1.bf16.msra.mxu0 %v776
    %1513 = vmatprep.subr.bf16.mxu0 %v781
    %1514 = vmatpush1.bf16.msra.mxu0 %v780
    %1515 = vmatprep.subr.bf16.mxu0 %v785
    %1516 = vmatpush1.bf16.msra.mxu0 %v784
    %1517 = vmatprep.subr.bf16.mxu0 %v789
    %1518 = vmatpush1.bf16.msra.mxu0 %v788
    %1519 = vmatprep.subr.bf16.mxu0 %v793
    %1520 = vmatpush1.bf16.msra.mxu0 %v792
    %1521 = vmatprep.subr.bf16.mxu0 %v797
    %1522 = vmatpush1.bf16.msra.mxu0 %v796
    %1523 = vmatprep.subr.bf16.mxu0 %v801
    %1524 = vmatpush1.bf16.msra.mxu0 %v800
    %1525 = vmatprep.subr.bf16.mxu0 %v805
    %1526 = vmatpush1.bf16.msra.mxu0 %v804
    %1527 = vmatprep.subr.bf16.mxu0 0
    %1528 = vmatpush1.bf16.msra.mxu0 0
    %1529 = vmatprep.subr.bf16.mxu0 0
    %1530 = vmatpush1.bf16.msra.mxu0 0
    %1531 = vmatprep.subr.bf16.mxu0 0
    %1532 = vmatpush1.bf16.msra.mxu0 0
    %1533 = vmatprep.subr.bf16.mxu0 0
    %1534 = vmatpush1.bf16.msra.mxu0 0
    %1535 = vmatprep.subr.bf16.mxu0 0
    %1536 = vmatpush1.bf16.msra.mxu0 0
    %1537 = vmatprep.subr.bf16.mxu0 0
    %1538 = vmatpush1.bf16.msra.mxu0 0
    %1539 = vmatprep.subr.bf16.mxu0 0
    %1540 = vmatpush1.bf16.msra.mxu0 0
    %1541 = vmatprep.subr.bf16.mxu0 0
    %1542 = vmatpush1.bf16.msra.mxu0 0
    %1543 = vmatprep.mubr.bf16.mxu0 0
    %1544 = vmatmul.mubr.bf16.gmra.mrb[0].mxu0 %v1469
    %v1545 = vpop.f32.mrb[0].mxu0
    %v1546 = vadd.f32 0.0, %v1545
    %v1547 = vpop.f32.mrb[0].mxu0
    %v1548 = vadd.f32 0.0, %v1547
    %v1549 = vpop.f32.mrb[0].mxu0
    %v1550 = vpop.f32.mrb[0].mxu0
    %1551 = vdwg.mxu0
    %1552 = vmatprep.subr.bf16.mxu0 %v1018
    %1553 = vmatpush1.bf16.msra.mxu0 %v1017
    %1554 = vmatprep.subr.bf16.mxu0 %v1022
    %1555 = vmatpush1.bf16.msra.mxu0 %v1021
    %1556 = vmatprep.subr.bf16.mxu0 %v1026
    %1557 = vmatpush1.bf16.msra.mxu0 %v1025
    %1558 = vmatprep.subr.bf16.mxu0 %v1030
    %1559 = vmatpush1.bf16.msra.mxu0 %v1029
    %1560 = vmatprep.subr.bf16.mxu0 %v1034
    %1561 = vmatpush1.bf16.msra.mxu0 %v1033
    %1562 = vmatprep.subr.bf16.mxu0 %v1038
    %1563 = vmatpush1.bf16.msra.mxu0 %v1037
    %1564 = vmatprep.subr.bf16.mxu0 %v1042
    %1565 = vmatpush1.bf16.msra.mxu0 %v1041
    %1566 = vmatprep.subr.bf16.mxu0 %v1046
    %1567 = vmatpush1.bf16.msra.mxu0 %v1045
    %1568 = vmatprep.subr.bf16.mxu0 0
    %1569 = vmatpush1.bf16.msra.mxu0 0
    %1570 = vmatprep.subr.bf16.mxu0 0
    %1571 = vmatpush1.bf16.msra.mxu0 0
    %1572 = vmatprep.subr.bf16.mxu0 0
    %1573 = vmatpush1.bf16.msra.mxu0 0
    %1574 = vmatprep.subr.bf16.mxu0 0
    %1575 = vmatpush1.bf16.msra.mxu0 0
    %1576 = vmatprep.subr.bf16.mxu0 0
    %1577 = vmatpush1.bf16.msra.mxu0 0
    %1578 = vmatprep.subr.bf16.mxu0 0
    %1579 = vmatpush1.bf16.msra.mxu0 0
    %1580 = vmatprep.subr.bf16.mxu0 0
    %1581 = vmatpush1.bf16.msra.mxu0 0
    %1582 = vmatprep.subr.bf16.mxu0 0
    %1583 = vmatpush1.bf16.msra.mxu0 0
    %1584 = vmatprep.mubr.bf16.mxu0 0
    %1585 = vmatmul.mubr.bf16.gmra.mrb[0].mxu0 %v1191
    %v1586 = vpop.f32.mrb[0].mxu0
    %v1587 = vadd.f32 0.0, %v1586
    %v1588 = vpop.f32.mrb[0].mxu0
    %v1589 = vadd.f32 0.0, %v1588
    %v1590 = vpop.f32.mrb[0].mxu0
    %v1591 = vpop.f32.mrb[0].mxu0
    %1592 = vdwg.mxu0
    %1593 = vmatprep.subr.bf16.mxu0 %v1020
    %1594 = vmatpush1.bf16.msra.mxu0 %v1019
    %1595 = vmatprep.subr.bf16.mxu0 %v1024
    %1596 = vmatpush1.bf16.msra.mxu0 %v1023
    %1597 = vmatprep.subr.bf16.mxu0 %v1028
    %1598 = vmatpush1.bf16.msra.mxu0 %v1027
    %1599 = vmatprep.subr.bf16.mxu0 %v1032
    %1600 = vmatpush1.bf16.msra.mxu0 %v1031
    %1601 = vmatprep.subr.bf16.mxu0 %v1036
    %1602 = vmatpush1.bf16.msra.mxu0 %v1035
    %1603 = vmatprep.subr.bf16.mxu0 %v1040
    %1604 = vmatpush1.bf16.msra.mxu0 %v1039
    %1605 = vmatprep.subr.bf16.mxu0 %v1044
    %1606 = vmatpush1.bf16.msra.mxu0 %v1043
    %1607 = vmatprep.subr.bf16.mxu0 %v1048
    %1608 = vmatpush1.bf16.msra.mxu0 %v1047
    %1609 = vmatprep.subr.bf16.mxu0 0
    %1610 = vmatpush1.bf16.msra.mxu0 0
    %1611 = vmatprep.subr.bf16.mxu0 0
    %1612 = vmatpush1.bf16.msra.mxu0 0
    %1613 = vmatprep.subr.bf16.mxu0 0
    %1614 = vmatpush1.bf16.msra.mxu0 0
    %1615 = vmatprep.subr.bf16.mxu0 0
    %1616 = vmatpush1.bf16.msra.mxu0 0
    %1617 = vmatprep.subr.bf16.mxu0 0
    %1618 = vmatpush1.bf16.msra.mxu0 0
    %1619 = vmatprep.subr.bf16.mxu0 0
    %1620 = vmatpush1.bf16.msra.mxu0 0
    %1621 = vmatprep.subr.bf16.mxu0 0
    %1622 = vmatpush1.bf16.msra.mxu0 0
    %1623 = vmatprep.subr.bf16.mxu0 0
    %1624 = vmatpush1.bf16.msra.mxu0 0
    %1625 = vmatprep.mubr.bf16.mxu0 0
    %1626 = vmatmul.mubr.bf16.gmra.mrb[0].mxu0 %v1191
    %v1627 = vpop.f32.mrb[0].mxu0
    %v1628 = vadd.f32 0.0, %v1627
    %v1629 = vpop.f32.mrb[0].mxu0
    %v1630 = vadd.f32 0.0, %v1629
    %v1631 = vpop.f32.mrb[0].mxu0
    %v1632 = vpop.f32.mrb[0].mxu0
    %1633 = vdwg.mxu0
    %v1634 = vadd.f32 %v1465, %v1587
    %v1635 = vadd.f32 %v1466, %v1589
    %v1636 = vadd.f32 %v1467, %v1628
    %v1637 = vadd.f32 %v1468, %v1630
    %v1638 = vxor.u32 %v1634, 2147483648
    %v1639 = vmul.f32 %v1638, 1.442695
    %v1640 = vpow.pop %v1639
    %v1641 = vadd.f32 %v1640, 1.0
    %v1642 = vrcp.pop %v1641
    %v1643 = vmul.f32 1.0, %v1642
    %v1644 = vxor.u32 %v1635, 2147483648
    %v1645 = vmul.f32 %v1644, 1.442695
    %v1646 = vpow.pop %v1645
    %v1647 = vadd.f32 %v1646, 1.0
    %v1648 = vrcp.pop %v1647
    %v1649 = vmul.f32 1.0, %v1648
    %v1650 = vtanh.pop %v1636
    %v1651 = vxor.u32 %v1637, 2147483648
    %v1652 = vmul.f32 %v1651, 1.442695
    %v1653 = vpow.pop %v1652
    %v1654 = vadd.f32 %v1653, 1.0
    %v1655 = vrcp.pop %v1654
    %v1656 = vmul.f32 1.0, %v1655
    %v1657 = vmul.f32 %v1649, %v1188
    %v1658 = vmul.f32 %v1643, %v1650
    %v1659 = vadd.f32 %v1657, %v1658
    %v1660 = vtanh.pop %v1659
    %v1661 = vmul.f32 %v1656, %v1660
    %v1662 = vpack.c.bf16 %v1661, %v1661
    %1663 = vmatprep.subr.bf16.mxu0 %v1289
    %1664 = vmatpush1.bf16.msra.mxu0 %v1288
    %1665 = vmatprep.subr.bf16.mxu0 %v1293
    %1666 = vmatpush1.bf16.msra.mxu0 %v1292
    %1667 = vmatprep.subr.bf16.mxu0 %v1297
    %1668 = vmatpush1.bf16.msra.mxu0 %v1296
    %1669 = vmatprep.subr.bf16.mxu0 %v1301
    %1670 = vmatpush1.bf16.msra.mxu0 %v1300
    %1671 = vmatprep.subr.bf16.mxu0 %v1305
    %1672 = vmatpush1.bf16.msra.mxu0 %v1304
    %1673 = vmatprep.subr.bf16.mxu0 %v1309
    %1674 = vmatpush1.bf16.msra.mxu0 %v1308
    %1675 = vmatprep.subr.bf16.mxu0 %v1313
    %1676 = vmatpush1.bf16.msra.mxu0 %v1312
    %1677 = vmatprep.subr.bf16.mxu0 %v1317
    %1678 = vmatpush1.bf16.msra.mxu0 %v1316
    %1679 = vmatprep.subr.bf16.mxu0 0
    %1680 = vmatpush1.bf16.msra.mxu0 0
    %1681 = vmatprep.subr.bf16.mxu0 0
    %1682 = vmatpush1.bf16.msra.mxu0 0
    %1683 = vmatprep.subr.bf16.mxu0 0
    %1684 = vmatpush1.bf16.msra.mxu0 0
    %1685 = vmatprep.subr.bf16.mxu0 0
    %1686 = vmatpush1.bf16.msra.mxu0 0
    %1687 = vmatprep.subr.bf16.mxu0 0
    %1688 = vmatpush1.bf16.msra.mxu0 0
    %1689 = vmatprep.subr.bf16.mxu0 0
    %1690 = vmatpush1.bf16.msra.mxu0 0
    %1691 = vmatprep.subr.bf16.mxu0 0
    %1692 = vmatpush1.bf16.msra.mxu0 0
    %1693 = vmatprep.subr.bf16.mxu0 0
    %1694 = vmatpush1.bf16.msra.mxu0 0
    %1695 = vmatprep.mubr.bf16.mxu0 0
    %1696 = vmatmul.mubr.bf16.gmra.mrb[0].mxu0 %v1662
    %v1697 = vpop.f32.mrb[0].mxu0
    %v1698 = vadd.f32 %v1505, %v1697
    %v1699 = vpop.f32.mrb[0].mxu0
    %v1700 = vadd.f32 %v1507, %v1699
    %v1701 = vpop.f32.mrb[0].mxu0
    %v1702 = vpop.f32.mrb[0].mxu0
    %1703 = vdwg.mxu0
    %1704 = vmatprep.subr.bf16.mxu0 %v1291
    %1705 = vmatpush1.bf16.msra.mxu0 %v1290
    %1706 = vmatprep.subr.bf16.mxu0 %v1295
    %1707 = vmatpush1.bf16.msra.mxu0 %v1294
    %1708 = vmatprep.subr.bf16.mxu0 %v1299
    %1709 = vmatpush1.bf16.msra.mxu0 %v1298
    %1710 = vmatprep.subr.bf16.mxu0 %v1303
    %1711 = vmatpush1.bf16.msra.mxu0 %v1302
    %1712 = vmatprep.subr.bf16.mxu0 %v1307
    %1713 = vmatpush1.bf16.msra.mxu0 %v1306
    %1714 = vmatprep.subr.bf16.mxu0 %v1311
    %1715 = vmatpush1.bf16.msra.mxu0 %v1310
    %1716 = vmatprep.subr.bf16.mxu0 %v1315
    %1717 = vmatpush1.bf16.msra.mxu0 %v1314
    %1718 = vmatprep.subr.bf16.mxu0 %v1319
    %1719 = vmatpush1.bf16.msra.mxu0 %v1318
    %1720 = vmatprep.subr.bf16.mxu0 0
    %1721 = vmatpush1.bf16.msra.mxu0 0
    %1722 = vmatprep.subr.bf16.mxu0 0
    %1723 = vmatpush1.bf16.msra.mxu0 0
    %1724 = vmatprep.subr.bf16.mxu0 0
    %1725 = vmatpush1.bf16.msra.mxu0 0
    %1726 = vmatprep.subr.bf16.mxu0 0
    %1727 = vmatpush1.bf16.msra.mxu0 0
    %1728 = vmatprep.subr.bf16.mxu0 0
    %1729 = vmatpush1.bf16.msra.mxu0 0
    %1730 = vmatprep.subr.bf16.mxu0 0
    %1731 = vmatpush1.bf16.msra.mxu0 0
    %1732 = vmatprep.subr.bf16.mxu0 0
    %1733 = vmatpush1.bf16.msra.mxu0 0
    %1734 = vmatprep.subr.bf16.mxu0 0
    %1735 = vmatpush1.bf16.msra.mxu0 0
    %1736 = vmatprep.mubr.bf16.mxu0 0
    %1737 = vmatmul.mubr.bf16.gmra.mrb[0].mxu0 %v1662
    %v1738 = vpop.f32.mrb[0].mxu0
    %v1739 = vadd.f32 %v1546, %v1738
    %v1740 = vpop.f32.mrb[0].mxu0
    %v1741 = vadd.f32 %v1548, %v1740
    %v1742 = vpop.f32.mrb[0].mxu0
    %v1743 = vpop.f32.mrb[0].mxu0
    %1744 = vdwg.mxu0
    %v1745 = vadd.f32 %v1698, %v649
    %v1746 = vadd.f32 %v1700, %v653
    %v1747 = vadd.f32 %v1739, %v657
    %v1748 = vadd.f32 %v1741, %v661
    %v1749 = vxor.u32 %v1745, 2147483648
    %v1750 = vmul.f32 %v1749, 1.442695
    %v1751 = vpow.pop %v1750
    %v1752 = vadd.f32 %v1751, 1.0
    %v1753 = vrcp.pop %v1752
    %v1754 = vmul.f32 1.0, %v1753
    %v1755 = vxor.u32 %v1746, 2147483648
    %v1756 = vmul.f32 %v1755, 1.442695
    %v1757 = vpow.pop %v1756
    %v1758 = vadd.f32 %v1757, 1.0
    %v1759 = vrcp.pop %v1758
    %v1760 = vmul.f32 1.0, %v1759
    %v1761 = vtanh.pop %v1747
    %v1762 = vxor.u32 %v1748, 2147483648
    %v1763 = vmul.f32 %v1762, 1.442695
    %v1764 = vpow.pop %v1763
    %v1765 = vadd.f32 %v1764, 1.0
    %v1766 = vrcp.pop %v1765
    %v1767 = vmul.f32 1.0, %v1766
    %v1768 = vmul.f32 %v1760, %v1459
    %v1769 = vmul.f32 %v1754, %v1761
    %v1770 = vadd.f32 %v1768, %v1769
    %v1771 = vtanh.pop %v1770
    %v1772 = vmul.f32 %v1767, %v1771
    %s1773 = smul.u32 2, 4
    %s1774 = smul.addr %s1773, 8
    %s1775 = scalar_lea.vmem [#allocation6], %s1774
    %v1776 = vld [vmem:[%s1775] sm:$0xff]
    %v1777 = vld [vmem:[%s1775 + $0x8] sm:$0xff]
    %v1778 = vld [vmem:[%s1775 + $0x10] sm:$0xff]
    %v1779 = vld [vmem:[%s1775 + $0x18] sm:$0xff]
    %v1780 = vpack.c.bf16 %v1772, %v1772
    %1781 = vmatprep.subr.bf16.mxu0 %v775
    %1782 = vmatpush1.bf16.msra.mxu0 %v774
    %1783 = vmatprep.subr.bf16.mxu0 %v779
    %1784 = vmatpush1.bf16.msra.mxu0 %v778
    %1785 = vmatprep.subr.bf16.mxu0 %v783
    %1786 = vmatpush1.bf16.msra.mxu0 %v782
    %1787 = vmatprep.subr.bf16.mxu0 %v787
    %1788 = vmatpush1.bf16.msra.mxu0 %v786
    %1789 = vmatprep.subr.bf16.mxu0 %v791
    %1790 = vmatpush1.bf16.msra.mxu0 %v790
    %1791 = vmatprep.subr.bf16.mxu0 %v795
    %1792 = vmatpush1.bf16.msra.mxu0 %v794
    %1793 = vmatprep.subr.bf16.mxu0 %v799
    %1794 = vmatpush1.bf16.msra.mxu0 %v798
    %1795 = vmatprep.subr.bf16.mxu0 %v803
    %1796 = vmatpush1.bf16.msra.mxu0 %v802
    %1797 = vmatprep.subr.bf16.mxu0 0
    %1798 = vmatpush1.bf16.msra.mxu0 0
    %1799 = vmatprep.subr.bf16.mxu0 0
    %1800 = vmatpush1.bf16.msra.mxu0 0
    %1801 = vmatprep.subr.bf16.mxu0 0
    %1802 = vmatpush1.bf16.msra.mxu0 0
    %1803 = vmatprep.subr.bf16.mxu0 0
    %1804 = vmatpush1.bf16.msra.mxu0 0
    %1805 = vmatprep.subr.bf16.mxu0 0
    %1806 = vmatpush1.bf16.msra.mxu0 0
    %1807 = vmatprep.subr.bf16.mxu0 0
    %1808 = vmatpush1.bf16.msra.mxu0 0
    %1809 = vmatprep.subr.bf16.mxu0 0
    %1810 = vmatpush1.bf16.msra.mxu0 0
    %1811 = vmatprep.subr.bf16.mxu0 0
    %1812 = vmatpush1.bf16.msra.mxu0 0
    %1813 = vmatprep.mubr.bf16.mxu0 0
    %1814 = vmatmul.mubr.bf16.gmra.mrb[0].mxu0 %v1780
    %v1815 = vpop.f32.mrb[0].mxu0
    %v1816 = vadd.f32 0.0, %v1815
    %v1817 = vpop.f32.mrb[0].mxu0
    %v1818 = vadd.f32 0.0, %v1817
    %v1819 = vpop.f32.mrb[0].mxu0
    %v1820 = vpop.f32.mrb[0].mxu0
    %1821 = vdwg.mxu0
    %1822 = vmatprep.subr.bf16.mxu0 %v777
    %1823 = vmatpush1.bf16.msra.mxu0 %v776
    %1824 = vmatprep.subr.bf16.mxu0 %v781
    %1825 = vmatpush1.bf16.msra.mxu0 %v780
    %1826 = vmatprep.subr.bf16.mxu0 %v785
    %1827 = vmatpush1.bf16.msra.mxu0 %v784
    %1828 = vmatprep.subr.bf16.mxu0 %v789
    %1829 = vmatpush1.bf16.msra.mxu0 %v788
    %1830 = vmatprep.subr.bf16.mxu0 %v793
    %1831 = vmatpush1.bf16.msra.mxu0 %v792
    %1832 = vmatprep.subr.bf16.mxu0 %v797
    %1833 = vmatpush1.bf16.msra.mxu0 %v796
    %1834 = vmatprep.subr.bf16.mxu0 %v801
    %1835 = vmatpush1.bf16.msra.mxu0 %v800
    %1836 = vmatprep.subr.bf16.mxu0 %v805
    %1837 = vmatpush1.bf16.msra.mxu0 %v804
    %1838 = vmatprep.subr.bf16.mxu0 0
    %1839 = vmatpush1.bf16.msra.mxu0 0
    %1840 = vmatprep.subr.bf16.mxu0 0
    %1841 = vmatpush1.bf16.msra.mxu0 0
    %1842 = vmatprep.subr.bf16.mxu0 0
    %1843 = vmatpush1.bf16.msra.mxu0 0
    %1844 = vmatprep.subr.bf16.mxu0 0
    %1845 = vmatpush1.bf16.msra.mxu0 0
    %1846 = vmatprep.subr.bf16.mxu0 0
    %1847 = vmatpush1.bf16.msra.mxu0 0
    %1848 = vmatprep.subr.bf16.mxu0 0
    %1849 = vmatpush1.bf16.msra.mxu0 0
    %1850 = vmatprep.subr.bf16.mxu0 0
    %1851 = vmatpush1.bf16.msra.mxu0 0
    %1852 = vmatprep.subr.bf16.mxu0 0
    %1853 = vmatpush1.bf16.msra.mxu0 0
    %1854 = vmatprep.mubr.bf16.mxu0 0
    %1855 = vmatmul.mubr.bf16.gmra.mrb[0].mxu0 %v1780
    %v1856 = vpop.f32.mrb[0].mxu0
    %v1857 = vadd.f32 0.0, %v1856
    %v1858 = vpop.f32.mrb[0].mxu0
    %v1859 = vadd.f32 0.0, %v1858
    %v1860 = vpop.f32.mrb[0].mxu0
    %v1861 = vpop.f32.mrb[0].mxu0
    %1862 = vdwg.mxu0
    %1863 = vmatprep.subr.bf16.mxu0 %v1018
    %1864 = vmatpush1.bf16.msra.mxu0 %v1017
    %1865 = vmatprep.subr.bf16.mxu0 %v1022
    %1866 = vmatpush1.bf16.msra.mxu0 %v1021
    %1867 = vmatprep.subr.bf16.mxu0 %v1026
    %1868 = vmatpush1.bf16.msra.mxu0 %v1025
    %1869 = vmatprep.subr.bf16.mxu0 %v1030
    %1870 = vmatpush1.bf16.msra.mxu0 %v1029
    %1871 = vmatprep.subr.bf16.mxu0 %v1034
    %1872 = vmatpush1.bf16.msra.mxu0 %v1033
    %1873 = vmatprep.subr.bf16.mxu0 %v1038
    %1874 = vmatpush1.bf16.msra.mxu0 %v1037
    %1875 = vmatprep.subr.bf16.mxu0 %v1042
    %1876 = vmatpush1.bf16.msra.mxu0 %v1041
    %1877 = vmatprep.subr.bf16.mxu0 %v1046
    %1878 = vmatpush1.bf16.msra.mxu0 %v1045
    %1879 = vmatprep.subr.bf16.mxu0 0
    %1880 = vmatpush1.bf16.msra.mxu0 0
    %1881 = vmatprep.subr.bf16.mxu0 0
    %1882 = vmatpush1.bf16.msra.mxu0 0
    %1883 = vmatprep.subr.bf16.mxu0 0
    %1884 = vmatpush1.bf16.msra.mxu0 0
    %1885 = vmatprep.subr.bf16.mxu0 0
    %1886 = vmatpush1.bf16.msra.mxu0 0
    %1887 = vmatprep.subr.bf16.mxu0 0
    %1888 = vmatpush1.bf16.msra.mxu0 0
    %1889 = vmatprep.subr.bf16.mxu0 0
    %1890 = vmatpush1.bf16.msra.mxu0 0
    %1891 = vmatprep.subr.bf16.mxu0 0
    %1892 = vmatpush1.bf16.msra.mxu0 0
    %1893 = vmatprep.subr.bf16.mxu0 0
    %1894 = vmatpush1.bf16.msra.mxu0 0
    %1895 = vmatprep.mubr.bf16.mxu0 0
    %1896 = vmatmul.mubr.bf16.gmra.mrb[0].mxu0 %v1662
    %v1897 = vpop.f32.mrb[0].mxu0
    %v1898 = vadd.f32 0.0, %v1897
    %v1899 = vpop.f32.mrb[0].mxu0
    %v1900 = vadd.f32 0.0, %v1899
    %v1901 = vpop.f32.mrb[0].mxu0
    %v1902 = vpop.f32.mrb[0].mxu0
    %1903 = vdwg.mxu0
    %1904 = vmatprep.subr.bf16.mxu0 %v1020
    %1905 = vmatpush1.bf16.msra.mxu0 %v1019
    %1906 = vmatprep.subr.bf16.mxu0 %v1024
    %1907 = vmatpush1.bf16.msra.mxu0 %v1023
    %1908 = vmatprep.subr.bf16.mxu0 %v1028
    %1909 = vmatpush1.bf16.msra.mxu0 %v1027
    %1910 = vmatprep.subr.bf16.mxu0 %v1032
    %1911 = vmatpush1.bf16.msra.mxu0 %v1031
    %1912 = vmatprep.subr.bf16.mxu0 %v1036
    %1913 = vmatpush1.bf16.msra.mxu0 %v1035
    %1914 = vmatprep.subr.bf16.mxu0 %v1040
    %1915 = vmatpush1.bf16.msra.mxu0 %v1039
    %1916 = vmatprep.subr.bf16.mxu0 %v1044
    %1917 = vmatpush1.bf16.msra.mxu0 %v1043
    %1918 = vmatprep.subr.bf16.mxu0 %v1048
    %1919 = vmatpush1.bf16.msra.mxu0 %v1047
    %1920 = vmatprep.subr.bf16.mxu0 0
    %1921 = vmatpush1.bf16.msra.mxu0 0
    %1922 = vmatprep.subr.bf16.mxu0 0
    %1923 = vmatpush1.bf16.msra.mxu0 0
    %1924 = vmatprep.subr.bf16.mxu0 0
    %1925 = vmatpush1.bf16.msra.mxu0 0
    %1926 = vmatprep.subr.bf16.mxu0 0
    %1927 = vmatpush1.bf16.msra.mxu0 0
    %1928 = vmatprep.subr.bf16.mxu0 0
    %1929 = vmatpush1.bf16.msra.mxu0 0
    %1930 = vmatprep.subr.bf16.mxu0 0
    %1931 = vmatpush1.bf16.msra.mxu0 0
    %1932 = vmatprep.subr.bf16.mxu0 0
    %1933 = vmatpush1.bf16.msra.mxu0 0
    %1934 = vmatprep.subr.bf16.mxu0 0
    %1935 = vmatpush1.bf16.msra.mxu0 0
    %1936 = vmatprep.mubr.bf16.mxu0 0
    %1937 = vmatmul.mubr.bf16.gmra.mrb[0].mxu0 %v1662
    %v1938 = vpop.f32.mrb[0].mxu0
    %v1939 = vadd.f32 0.0, %v1938
    %v1940 = vpop.f32.mrb[0].mxu0
    %v1941 = vadd.f32 0.0, %v1940
    %v1942 = vpop.f32.mrb[0].mxu0
    %v1943 = vpop.f32.mrb[0].mxu0
    %1944 = vdwg.mxu0
    %v1945 = vadd.f32 %v1776, %v1898
    %v1946 = vadd.f32 %v1777, %v1900
    %v1947 = vadd.f32 %v1778, %v1939
    %v1948 = vadd.f32 %v1779, %v1941
    %v1949 = vxor.u32 %v1945, 2147483648
    %v1950 = vmul.f32 %v1949, 1.442695
    %v1951 = vpow.pop %v1950
    %v1952 = vadd.f32 %v1951, 1.0
    %v1953 = vrcp.pop %v1952
    %v1954 = vmul.f32 1.0, %v1953
    %v1955 = vxor.u32 %v1946, 2147483648
    %v1956 = vmul.f32 %v1955, 1.442695
    %v1957 = vpow.pop %v1956
    %v1958 = vadd.f32 %v1957, 1.0
    %v1959 = vrcp.pop %v1958
    %v1960 = vmul.f32 1.0, %v1959
    %v1961 = vtanh.pop %v1947
    %v1962 = vxor.u32 %v1948, 2147483648
    %v1963 = vmul.f32 %v1962, 1.442695
    %v1964 = vpow.pop %v1963
    %v1965 = vadd.f32 %v1964, 1.0
    %v1966 = vrcp.pop %v1965
    %v1967 = vmul.f32 1.0, %v1966
    %v1968 = vmul.f32 %v1960, %v1659
    %v1969 = vmul.f32 %v1954, %v1961
    %v1970 = vadd.f32 %v1968, %v1969
    %v1971 = vtanh.pop %v1970
    %v1972 = vmul.f32 %v1967, %v1971
    %v1973 = vpack.c.bf16 %v1972, %v1972
    %1974 = vmatprep.subr.bf16.mxu0 %v1289
    %1975 = vmatpush1.bf16.msra.mxu0 %v1288
    %1976 = vmatprep.subr.bf16.mxu0 %v1293
    %1977 = vmatpush1.bf16.msra.mxu0 %v1292
    %1978 = vmatprep.subr.bf16.mxu0 %v1297
    %1979 = vmatpush1.bf16.msra.mxu0 %v1296
    %1980 = vmatprep.subr.bf16.mxu0 %v1301
    %1981 = vmatpush1.bf16.msra.mxu0 %v1300
    %1982 = vmatprep.subr.bf16.mxu0 %v1305
    %1983 = vmatpush1.bf16.msra.mxu0 %v1304
    %1984 = vmatprep.subr.bf16.mxu0 %v1309
    %1985 = vmatpush1.bf16.msra.mxu0 %v1308
    %1986 = vmatprep.subr.bf16.mxu0 %v1313
    %1987 = vmatpush1.bf16.msra.mxu0 %v1312
    %1988 = vmatprep.subr.bf16.mxu0 %v1317
    %1989 = vmatpush1.bf16.msra.mxu0 %v1316
    %1990 = vmatprep.subr.bf16.mxu0 0
    %1991 = vmatpush1.bf16.msra.mxu0 0
    %1992 = vmatprep.subr.bf16.mxu0 0
    %1993 = vmatpush1.bf16.msra.mxu0 0
    %1994 = vmatprep.subr.bf16.mxu0 0
    %1995 = vmatpush1.bf16.msra.mxu0 0
    %1996 = vmatprep.subr.bf16.mxu0 0
    %1997 = vmatpush1.bf16.msra.mxu0 0
    %1998 = vmatprep.subr.bf16.mxu0 0
    %1999 = vmatpush1.bf16.msra.mxu0 0
    %2000 = vmatprep.subr.bf16.mxu0 0
    %2001 = vmatpush1.bf16.msra.mxu0 0
    %2002 = vmatprep.subr.bf16.mxu0 0
    %2003 = vmatpush1.bf16.msra.mxu0 0
    %2004 = vmatprep.subr.bf16.mxu0 0
    %2005 = vmatpush1.bf16.msra.mxu0 0
    %2006 = vmatprep.mubr.bf16.mxu0 0
    %2007 = vmatmul.mubr.bf16.gmra.mrb[0].mxu0 %v1973
    %v2008 = vpop.f32.mrb[0].mxu0
    %v2009 = vadd.f32 %v1816, %v2008
    %v2010 = vpop.f32.mrb[0].mxu0
    %v2011 = vadd.f32 %v1818, %v2010
    %v2012 = vpop.f32.mrb[0].mxu0
    %v2013 = vpop.f32.mrb[0].mxu0
    %2014 = vdwg.mxu0
    %2015 = vmatprep.subr.bf16.mxu0 %v1291
    %2016 = vmatpush1.bf16.msra.mxu0 %v1290
    %2017 = vmatprep.subr.bf16.mxu0 %v1295
    %2018 = vmatpush1.bf16.msra.mxu0 %v1294
    %2019 = vmatprep.subr.bf16.mxu0 %v1299
    %2020 = vmatpush1.bf16.msra.mxu0 %v1298
    %2021 = vmatprep.subr.bf16.mxu0 %v1303
    %2022 = vmatpush1.bf16.msra.mxu0 %v1302
    %2023 = vmatprep.subr.bf16.mxu0 %v1307
    %2024 = vmatpush1.bf16.msra.mxu0 %v1306
    %2025 = vmatprep.subr.bf16.mxu0 %v1311
    %2026 = vmatpush1.bf16.msra.mxu0 %v1310
    %2027 = vmatprep.subr.bf16.mxu0 %v1315
    %2028 = vmatpush1.bf16.msra.mxu0 %v1314
    %2029 = vmatprep.subr.bf16.mxu0 %v1319
    %2030 = vmatpush1.bf16.msra.mxu0 %v1318
    %2031 = vmatprep.subr.bf16.mxu0 0
    %2032 = vmatpush1.bf16.msra.mxu0 0
    %2033 = vmatprep.subr.bf16.mxu0 0
    %2034 = vmatpush1.bf16.msra.mxu0 0
    %2035 = vmatprep.subr.bf16.mxu0 0
    %2036 = vmatpush1.bf16.msra.mxu0 0
    %2037 = vmatprep.subr.bf16.mxu0 0
    %2038 = vmatpush1.bf16.msra.mxu0 0
    %2039 = vmatprep.subr.bf16.mxu0 0
    %2040 = vmatpush1.bf16.msra.mxu0 0
    %2041 = vmatprep.subr.bf16.mxu0 0
    %2042 = vmatpush1.bf16.msra.mxu0 0
    %2043 = vmatprep.subr.bf16.mxu0 0
    %2044 = vmatpush1.bf16.msra.mxu0 0
    %2045 = vmatprep.subr.bf16.mxu0 0
    %2046 = vmatpush1.bf16.msra.mxu0 0
    %2047 = vmatprep.mubr.bf16.mxu0 0
    %2048 = vmatmul.mubr.bf16.gmra.mrb[0].mxu0 %v1973
    %v2049 = vpop.f32.mrb[0].mxu0
    %v2050 = vadd.f32 %v1857, %v2049
    %v2051 = vpop.f32.mrb[0].mxu0
    %v2052 = vadd.f32 %v1859, %v2051
    %v2053 = vpop.f32.mrb[0].mxu0
    %v2054 = vpop.f32.mrb[0].mxu0
    %2055 = vdwg.mxu0
    %v2056 = vadd.f32 %v2009, %v649
    %v2057 = vadd.f32 %v2011, %v653
    %v2058 = vadd.f32 %v2050, %v657
    %v2059 = vadd.f32 %v2052, %v661
    %v2060 = vxor.u32 %v2056, 2147483648
    %v2061 = vmul.f32 %v2060, 1.442695
    %v2062 = vpow.pop %v2061
    %v2063 = vadd.f32 %v2062, 1.0
    %v2064 = vrcp.pop %v2063
    %v2065 = vmul.f32 1.0, %v2064
    %v2066 = vxor.u32 %v2057, 2147483648
    %v2067 = vmul.f32 %v2066, 1.442695
    %v2068 = vpow.pop %v2067
    %v2069 = vadd.f32 %v2068, 1.0
    %v2070 = vrcp.pop %v2069
    %v2071 = vmul.f32 1.0, %v2070
    %v2072 = vtanh.pop %v2058
    %v2073 = vxor.u32 %v2059, 2147483648
    %v2074 = vmul.f32 %v2073, 1.442695
    %v2075 = vpow.pop %v2074
    %v2076 = vadd.f32 %v2075, 1.0
    %v2077 = vrcp.pop %v2076
    %v2078 = vmul.f32 1.0, %v2077
    %v2079 = vmul.f32 %v2071, %v1770
    %v2080 = vmul.f32 %v2065, %v2072
    %v2081 = vadd.f32 %v2079, %v2080
    %v2082 = vtanh.pop %v2081
    %v2083 = vmul.f32 %v2078, %v2082
    %s2084 = smul.u32 3, 4
    %s2085 = smul.addr %s2084, 8
    %s2086 = scalar_lea.vmem [#allocation6], %s2085
    %v2087 = vld [vmem:[%s2086] sm:$0xff]
    %v2088 = vld [vmem:[%s2086 + $0x8] sm:$0xff]
    %v2089 = vld [vmem:[%s2086 + $0x10] sm:$0xff]
    %v2090 = vld [vmem:[%s2086 + $0x18] sm:$0xff]
    %v2091 = vpack.c.bf16 %v2083, %v2083
    %2092 = vmatprep.subr.bf16.mxu0 %v775
    %2093 = vmatpush1.bf16.msra.mxu0 %v774
    %2094 = vmatprep.subr.bf16.mxu0 %v779
    %2095 = vmatpush1.bf16.msra.mxu0 %v778
    %2096 = vmatprep.subr.bf16.mxu0 %v783
    %2097 = vmatpush1.bf16.msra.mxu0 %v782
    %2098 = vmatprep.subr.bf16.mxu0 %v787
    %2099 = vmatpush1.bf16.msra.mxu0 %v786
    %2100 = vmatprep.subr.bf16.mxu0 %v791
    %2101 = vmatpush1.bf16.msra.mxu0 %v790
    %2102 = vmatprep.subr.bf16.mxu0 %v795
    %2103 = vmatpush1.bf16.msra.mxu0 %v794
    %2104 = vmatprep.subr.bf16.mxu0 %v799
    %2105 = vmatpush1.bf16.msra.mxu0 %v798
    %2106 = vmatprep.subr.bf16.mxu0 %v803
    %2107 = vmatpush1.bf16.msra.mxu0 %v802
    %2108 = vmatprep.subr.bf16.mxu0 0
    %2109 = vmatpush1.bf16.msra.mxu0 0
    %2110 = vmatprep.subr.bf16.mxu0 0
    %2111 = vmatpush1.bf16.msra.mxu0 0
    %2112 = vmatprep.subr.bf16.mxu0 0
    %2113 = vmatpush1.bf16.msra.mxu0 0
    %2114 = vmatprep.subr.bf16.mxu0 0
    %2115 = vmatpush1.bf16.msra.mxu0 0
    %2116 = vmatprep.subr.bf16.mxu0 0
    %2117 = vmatpush1.bf16.msra.mxu0 0
    %2118 = vmatprep.subr.bf16.mxu0 0
    %2119 = vmatpush1.bf16.msra.mxu0 0
    %2120 = vmatprep.subr.bf16.mxu0 0
    %2121 = vmatpush1.bf16.msra.mxu0 0
    %2122 = vmatprep.subr.bf16.mxu0 0
    %2123 = vmatpush1.bf16.msra.mxu0 0
    %2124 = vmatprep.mubr.bf16.mxu0 0
    %2125 = vmatmul.mubr.bf16.gmra.mrb[0].mxu0 %v2091
    %v2126 = vpop.f32.mrb[0].mxu0
    %v2127 = vadd.f32 0.0, %v2126
    %v2128 = vpop.f32.mrb[0].mxu0
    %v2129 = vadd.f32 0.0, %v2128
    %v2130 = vpop.f32.mrb[0].mxu0
    %v2131 = vpop.f32.mrb[0].mxu0
    %2132 = vdwg.mxu0
    %2133 = vmatprep.subr.bf16.mxu0 %v777
    %2134 = vmatpush1.bf16.msra.mxu0 %v776
    %2135 = vmatprep.subr.bf16.mxu0 %v781
    %2136 = vmatpush1.bf16.msra.mxu0 %v780
    %2137 = vmatprep.subr.bf16.mxu0 %v785
    %2138 = vmatpush1.bf16.msra.mxu0 %v784
    %2139 = vmatprep.subr.bf16.mxu0 %v789
    %2140 = vmatpush1.bf16.msra.mxu0 %v788
    %2141 = vmatprep.subr.bf16.mxu0 %v793
    %2142 = vmatpush1.bf16.msra.mxu0 %v792
    %2143 = vmatprep.subr.bf16.mxu0 %v797
    %2144 = vmatpush1.bf16.msra.mxu0 %v796
    %2145 = vmatprep.subr.bf16.mxu0 %v801
    %2146 = vmatpush1.bf16.msra.mxu0 %v800
    %2147 = vmatprep.subr.bf16.mxu0 %v805
    %2148 = vmatpush1.bf16.msra.mxu0 %v804
    %2149 = vmatprep.subr.bf16.mxu0 0
    %2150 = vmatpush1.bf16.msra.mxu0 0
    %2151 = vmatprep.subr.bf16.mxu0 0
    %2152 = vmatpush1.bf16.msra.mxu0 0
    %2153 = vmatprep.subr.bf16.mxu0 0
    %2154 = vmatpush1.bf16.msra.mxu0 0
    %2155 = vmatprep.subr.bf16.mxu0 0
    %2156 = vmatpush1.bf16.msra.mxu0 0
    %2157 = vmatprep.subr.bf16.mxu0 0
    %2158 = vmatpush1.bf16.msra.mxu0 0
    %2159 = vmatprep.subr.bf16.mxu0 0
    %2160 = vmatpush1.bf16.msra.mxu0 0
    %2161 = vmatprep.subr.bf16.mxu0 0
    %2162 = vmatpush1.bf16.msra.mxu0 0
    %2163 = vmatprep.subr.bf16.mxu0 0
    %2164 = vmatpush1.bf16.msra.mxu0 0
    %2165 = vmatprep.mubr.bf16.mxu0 0
    %2166 = vmatmul.mubr.bf16.gmra.mrb[0].mxu0 %v2091
    %v2167 = vpop.f32.mrb[0].mxu0
    %v2168 = vadd.f32 0.0, %v2167
    %v2169 = vpop.f32.mrb[0].mxu0
    %v2170 = vadd.f32 0.0, %v2169
    %v2171 = vpop.f32.mrb[0].mxu0
    %v2172 = vpop.f32.mrb[0].mxu0
    %2173 = vdwg.mxu0
    %2174 = vmatprep.subr.bf16.mxu0 %v1018
    %2175 = vmatpush1.bf16.msra.mxu0 %v1017
    %2176 = vmatprep.subr.bf16.mxu0 %v1022
    %2177 = vmatpush1.bf16.msra.mxu0 %v1021
    %2178 = vmatprep.subr.bf16.mxu0 %v1026
    %2179 = vmatpush1.bf16.msra.mxu0 %v1025
    %2180 = vmatprep.subr.bf16.mxu0 %v1030
    %2181 = vmatpush1.bf16.msra.mxu0 %v1029
    %2182 = vmatprep.subr.bf16.mxu0 %v1034
    %2183 = vmatpush1.bf16.msra.mxu0 %v1033
    %2184 = vmatprep.subr.bf16.mxu0 %v1038
    %2185 = vmatpush1.bf16.msra.mxu0 %v1037
    %2186 = vmatprep.subr.bf16.mxu0 %v1042
    %2187 = vmatpush1.bf16.msra.mxu0 %v1041
    %2188 = vmatprep.subr.bf16.mxu0 %v1046
    %2189 = vmatpush1.bf16.msra.mxu0 %v1045
    %2190 = vmatprep.subr.bf16.mxu0 0
    %2191 = vmatpush1.bf16.msra.mxu0 0
    %2192 = vmatprep.subr.bf16.mxu0 0
    %2193 = vmatpush1.bf16.msra.mxu0 0
    %2194 = vmatprep.subr.bf16.mxu0 0
    %2195 = vmatpush1.bf16.msra.mxu0 0
    %2196 = vmatprep.subr.bf16.mxu0 0
    %2197 = vmatpush1.bf16.msra.mxu0 0
    %2198 = vmatprep.subr.bf16.mxu0 0
    %2199 = vmatpush1.bf16.msra.mxu0 0
    %2200 = vmatprep.subr.bf16.mxu0 0
    %2201 = vmatpush1.bf16.msra.mxu0 0
    %2202 = vmatprep.subr.bf16.mxu0 0
    %2203 = vmatpush1.bf16.msra.mxu0 0
    %2204 = vmatprep.subr.bf16.mxu0 0
    %2205 = vmatpush1.bf16.msra.mxu0 0
    %2206 = vmatprep.mubr.bf16.mxu0 0
    %2207 = vmatmul.mubr.bf16.gmra.mrb[0].mxu0 %v1973
    %v2208 = vpop.f32.mrb[0].mxu0
    %v2209 = vadd.f32 0.0, %v2208
    %v2210 = vpop.f32.mrb[0].mxu0
    %v2211 = vadd.f32 0.0, %v2210
    %v2212 = vpop.f32.mrb[0].mxu0
    %v2213 = vpop.f32.mrb[0].mxu0
    %2214 = vdwg.mxu0
    %2215 = vmatprep.subr.bf16.mxu0 %v1020
    %2216 = vmatpush1.bf16.msra.mxu0 %v1019
    %2217 = vmatprep.subr.bf16.mxu0 %v1024
    %2218 = vmatpush1.bf16.msra.mxu0 %v1023
    %2219 = vmatprep.subr.bf16.mxu0 %v1028
    %2220 = vmatpush1.bf16.msra.mxu0 %v1027
    %2221 = vmatprep.subr.bf16.mxu0 %v1032
    %2222 = vmatpush1.bf16.msra.mxu0 %v1031
    %2223 = vmatprep.subr.bf16.mxu0 %v1036
    %2224 = vmatpush1.bf16.msra.mxu0 %v1035
    %2225 = vmatprep.subr.bf16.mxu0 %v1040
    %2226 = vmatpush1.bf16.msra.mxu0 %v1039
    %2227 = vmatprep.subr.bf16.mxu0 %v1044
    %2228 = vmatpush1.bf16.msra.mxu0 %v1043
    %2229 = vmatprep.subr.bf16.mxu0 %v1048
    %2230 = vmatpush1.bf16.msra.mxu0 %v1047
    %2231 = vmatprep.subr.bf16.mxu0 0
    %2232 = vmatpush1.bf16.msra.mxu0 0
    %2233 = vmatprep.subr.bf16.mxu0 0
    %2234 = vmatpush1.bf16.msra.mxu0 0
    %2235 = vmatprep.subr.bf16.mxu0 0
    %2236 = vmatpush1.bf16.msra.mxu0 0
    %2237 = vmatprep.subr.bf16.mxu0 0
    %2238 = vmatpush1.bf16.msra.mxu0 0
    %2239 = vmatprep.subr.bf16.mxu0 0
    %2240 = vmatpush1.bf16.msra.mxu0 0
    %2241 = vmatprep.subr.bf16.mxu0 0
    %2242 = vmatpush1.bf16.msra.mxu0 0
    %2243 = vmatprep.subr.bf16.mxu0 0
    %2244 = vmatpush1.bf16.msra.mxu0 0
    %2245 = vmatprep.subr.bf16.mxu0 0
    %2246 = vmatpush1.bf16.msra.mxu0 0
    %2247 = vmatprep.mubr.bf16.mxu0 0
    %2248 = vmatmul.mubr.bf16.gmra.mrb[0].mxu0 %v1973
    %v2249 = vpop.f32.mrb[0].mxu0
    %v2250 = vadd.f32 0.0, %v2249
    %v2251 = vpop.f32.mrb[0].mxu0
    %v2252 = vadd.f32 0.0, %v2251
    %v2253 = vpop.f32.mrb[0].mxu0
    %v2254 = vpop.f32.mrb[0].mxu0
    %2255 = vdwg.mxu0
    %v2256 = vadd.f32 %v2087, %v2209
    %v2257 = vadd.f32 %v2088, %v2211
    %v2258 = vadd.f32 %v2089, %v2250
    %v2259 = vadd.f32 %v2090, %v2252
    %v2260 = vxor.u32 %v2256, 2147483648
    %v2261 = vmul.f32 %v2260, 1.442695
    %v2262 = vpow.pop %v2261
    %v2263 = vadd.f32 %v2262, 1.0
    %v2264 = vrcp.pop %v2263
    %v2265 = vmul.f32 1.0, %v2264
    %v2266 = vxor.u32 %v2257, 2147483648
    %v2267 = vmul.f32 %v2266, 1.442695
    %v2268 = vpow.pop %v2267
    %v2269 = vadd.f32 %v2268, 1.0
    %v2270 = vrcp.pop %v2269
    %v2271 = vmul.f32 1.0, %v2270
    %v2272 = vtanh.pop %v2258
    %v2273 = vxor.u32 %v2259, 2147483648
    %v2274 = vmul.f32 %v2273, 1.442695
    %v2275 = vpow.pop %v2274
    %v2276 = vadd.f32 %v2275, 1.0
    %v2277 = vrcp.pop %v2276
    %v2278 = vmul.f32 1.0, %v2277
    %v2279 = vmul.f32 %v2271, %v1970
    %v2280 = vmul.f32 %v2265, %v2272
    %v2281 = vadd.f32 %v2279, %v2280
    %v2282 = vtanh.pop %v2281
    %v2283 = vmul.f32 %v2278, %v2282
    %v2284 = vpack.c.bf16 %v2283, %v2283
    %2285 = vmatprep.subr.bf16.mxu0 %v1289
    %2286 = vmatpush1.bf16.msra.mxu0 %v1288
    %2287 = vmatprep.subr.bf16.mxu0 %v1293
    %2288 = vmatpush1.bf16.msra.mxu0 %v1292
    %2289 = vmatprep.subr.bf16.mxu0 %v1297
    %2290 = vmatpush1.bf16.msra.mxu0 %v1296
    %2291 = vmatprep.subr.bf16.mxu0 %v1301
    %2292 = vmatpush1.bf16.msra.mxu0 %v1300
    %2293 = vmatprep.subr.bf16.mxu0 %v1305
    %2294 = vmatpush1.bf16.msra.mxu0 %v1304
    %2295 = vmatprep.subr.bf16.mxu0 %v1309
    %2296 = vmatpush1.bf16.msra.mxu0 %v1308
    %2297 = vmatprep.subr.bf16.mxu0 %v1313
    %2298 = vmatpush1.bf16.msra.mxu0 %v1312
    %2299 = vmatprep.subr.bf16.mxu0 %v1317
    %2300 = vmatpush1.bf16.msra.mxu0 %v1316
    %2301 = vmatprep.subr.bf16.mxu0 0
    %2302 = vmatpush1.bf16.msra.mxu0 0
    %2303 = vmatprep.subr.bf16.mxu0 0
    %2304 = vmatpush1.bf16.msra.mxu0 0
    %2305 = vmatprep.subr.bf16.mxu0 0
    %2306 = vmatpush1.bf16.msra.mxu0 0
    %2307 = vmatprep.subr.bf16.mxu0 0
    %2308 = vmatpush1.bf16.msra.mxu0 0
    %2309 = vmatprep.subr.bf16.mxu0 0
    %2310 = vmatpush1.bf16.msra.mxu0 0
    %2311 = vmatprep.subr.bf16.mxu0 0
    %2312 = vmatpush1.bf16.msra.mxu0 0
    %2313 = vmatprep.subr.bf16.mxu0 0
    %2314 = vmatpush1.bf16.msra.mxu0 0
    %2315 = vmatprep.subr.bf16.mxu0 0
    %2316 = vmatpush1.bf16.msra.mxu0 0
    %2317 = vmatprep.mubr.bf16.mxu0 0
    %2318 = vmatmul.mubr.bf16.gmra.mrb[0].mxu0 %v2284
    %v2319 = vpop.f32.mrb[0].mxu0
    %v2320 = vadd.f32 %v2127, %v2319
    %v2321 = vpop.f32.mrb[0].mxu0
    %v2322 = vadd.f32 %v2129, %v2321
    %v2323 = vpop.f32.mrb[0].mxu0
    %v2324 = vpop.f32.mrb[0].mxu0
    %2325 = vdwg.mxu0
    %2326 = vmatprep.subr.bf16.mxu0 %v1291
    %2327 = vmatpush1.bf16.msra.mxu0 %v1290
    %2328 = vmatprep.subr.bf16.mxu0 %v1295
    %2329 = vmatpush1.bf16.msra.mxu0 %v1294
    %2330 = vmatprep.subr.bf16.mxu0 %v1299
    %2331 = vmatpush1.bf16.msra.mxu0 %v1298
    %2332 = vmatprep.subr.bf16.mxu0 %v1303
    %2333 = vmatpush1.bf16.msra.mxu0 %v1302
    %2334 = vmatprep.subr.bf16.mxu0 %v1307
    %2335 = vmatpush1.bf16.msra.mxu0 %v1306
    %2336 = vmatprep.subr.bf16.mxu0 %v1311
    %2337 = vmatpush1.bf16.msra.mxu0 %v1310
    %2338 = vmatprep.subr.bf16.mxu0 %v1315
    %2339 = vmatpush1.bf16.msra.mxu0 %v1314
    %2340 = vmatprep.subr.bf16.mxu0 %v1319
    %2341 = vmatpush1.bf16.msra.mxu0 %v1318
    %2342 = vmatprep.subr.bf16.mxu0 0
    %2343 = vmatpush1.bf16.msra.mxu0 0
    %2344 = vmatprep.subr.bf16.mxu0 0
    %2345 = vmatpush1.bf16.msra.mxu0 0
    %2346 = vmatprep.subr.bf16.mxu0 0
    %2347 = vmatpush1.bf16.msra.mxu0 0
    %2348 = vmatprep.subr.bf16.mxu0 0
    %2349 = vmatpush1.bf16.msra.mxu0 0
    %2350 = vmatprep.subr.bf16.mxu0 0
    %2351 = vmatpush1.bf16.msra.mxu0 0
    %2352 = vmatprep.subr.bf16.mxu0 0
    %2353 = vmatpush1.bf16.msra.mxu0 0
    %2354 = vmatprep.subr.bf16.mxu0 0
    %2355 = vmatpush1.bf16.msra.mxu0 0
    %2356 = vmatprep.subr.bf16.mxu0 0
    %2357 = vmatpush1.bf16.msra.mxu0 0
    %2358 = vmatprep.mubr.bf16.mxu0 0
    %2359 = vmatmul.mubr.bf16.gmra.mrb[0].mxu0 %v2284
    %v2360 = vpop.f32.mrb[0].mxu0
    %v2361 = vadd.f32 %v2168, %v2360
    %v2362 = vpop.f32.mrb[0].mxu0
    %v2363 = vadd.f32 %v2170, %v2362
    %v2364 = vpop.f32.mrb[0].mxu0
    %v2365 = vpop.f32.mrb[0].mxu0
    %2366 = vdwg.mxu0
    %v2367 = vadd.f32 %v2320, %v649
    %v2368 = vadd.f32 %v2322, %v653
    %v2369 = vadd.f32 %v2361, %v657
    %v2370 = vadd.f32 %v2363, %v661
    %v2371 = vxor.u32 %v2367, 2147483648
    %v2372 = vmul.f32 %v2371, 1.442695
    %v2373 = vpow.pop %v2372
    %v2374 = vadd.f32 %v2373, 1.0
    %v2375 = vrcp.pop %v2374
    %v2376 = vmul.f32 1.0, %v2375
    %v2377 = vxor.u32 %v2368, 2147483648
    %v2378 = vmul.f32 %v2377, 1.442695
    %v2379 = vpow.pop %v2378
    %v2380 = vadd.f32 %v2379, 1.0
    %v2381 = vrcp.pop %v2380
    %v2382 = vmul.f32 1.0, %v2381
    %v2383 = vtanh.pop %v2369
    %v2384 = vxor.u32 %v2370, 2147483648
    %v2385 = vmul.f32 %v2384, 1.442695
    %v2386 = vpow.pop %v2385
    %v2387 = vadd.f32 %v2386, 1.0
    %v2388 = vrcp.pop %v2387
    %v2389 = vmul.f32 1.0, %v2388
    %v2390 = vmul.f32 %v2382, %v2081
    %v2391 = vmul.f32 %v2376, %v2383
    %v2392 = vadd.f32 %v2390, %v2391
    %v2393 = vtanh.pop %v2392
    %v2394 = vmul.f32 %v2389, %v2393
    %s2395 = smul.u32 4, 4
    %s2396 = smul.addr %s2395, 8
    %s2397 = scalar_lea.vmem [#allocation6], %s2396
    %v2398 = vld [vmem:[%s2397] sm:$0xff]
    %v2399 = vld [vmem:[%s2397 + $0x8] sm:$0xff]
    %v2400 = vld [vmem:[%s2397 + $0x10] sm:$0xff]
    %v2401 = vld [vmem:[%s2397 + $0x18] sm:$0xff]
    %v2402 = vpack.c.bf16 %v2394, %v2394
    %2403 = vmatprep.subr.bf16.mxu0 %v775
    %2404 = vmatpush1.bf16.msra.mxu0 %v774
    %2405 = vmatprep.subr.bf16.mxu0 %v779
    %2406 = vmatpush1.bf16.msra.mxu0 %v778
    %2407 = vmatprep.subr.bf16.mxu0 %v783
    %2408 = vmatpush1.bf16.msra.mxu0 %v782
    %2409 = vmatprep.subr.bf16.mxu0 %v787
    %2410 = vmatpush1.bf16.msra.mxu0 %v786
    %2411 = vmatprep.subr.bf16.mxu0 %v791
    %2412 = vmatpush1.bf16.msra.mxu0 %v790
    %2413 = vmatprep.subr.bf16.mxu0 %v795
    %2414 = vmatpush1.bf16.msra.mxu0 %v794
    %2415 = vmatprep.subr.bf16.mxu0 %v799
    %2416 = vmatpush1.bf16.msra.mxu0 %v798
    %2417 = vmatprep.subr.bf16.mxu0 %v803
    %2418 = vmatpush1.bf16.msra.mxu0 %v802
    %2419 = vmatprep.subr.bf16.mxu0 0
    %2420 = vmatpush1.bf16.msra.mxu0 0
    %2421 = vmatprep.subr.bf16.mxu0 0
    %2422 = vmatpush1.bf16.msra.mxu0 0
    %2423 = vmatprep.subr.bf16.mxu0 0
    %2424 = vmatpush1.bf16.msra.mxu0 0
    %2425 = vmatprep.subr.bf16.mxu0 0
    %2426 = vmatpush1.bf16.msra.mxu0 0
    %2427 = vmatprep.subr.bf16.mxu0 0
    %2428 = vmatpush1.bf16.msra.mxu0 0
    %2429 = vmatprep.subr.bf16.mxu0 0
    %2430 = vmatpush1.bf16.msra.mxu0 0
    %2431 = vmatprep.subr.bf16.mxu0 0
    %2432 = vmatpush1.bf16.msra.mxu0 0
    %2433 = vmatprep.subr.bf16.mxu0 0
    %2434 = vmatpush1.bf16.msra.mxu0 0
    %2435 = vmatprep.mubr.bf16.mxu0 0
    %2436 = vmatmul.mubr.bf16.gmra.mrb[0].mxu0 %v2402
    %v2437 = vpop.f32.mrb[0].mxu0
    %v2438 = vadd.f32 0.0, %v2437
    %v2439 = vpop.f32.mrb[0].mxu0
    %v2440 = vadd.f32 0.0, %v2439
    %v2441 = vpop.f32.mrb[0].mxu0
    %v2442 = vpop.f32.mrb[0].mxu0
    %2443 = vdwg.mxu0
    %2444 = vmatprep.subr.bf16.mxu0 %v777
    %2445 = vmatpush1.bf16.msra.mxu0 %v776
    %2446 = vmatprep.subr.bf16.mxu0 %v781
    %2447 = vmatpush1.bf16.msra.mxu0 %v780
    %2448 = vmatprep.subr.bf16.mxu0 %v785
    %2449 = vmatpush1.bf16.msra.mxu0 %v784
    %2450 = vmatprep.subr.bf16.mxu0 %v789
    %2451 = vmatpush1.bf16.msra.mxu0 %v788
    %2452 = vmatprep.subr.bf16.mxu0 %v793
    %2453 = vmatpush1.bf16.msra.mxu0 %v792
    %2454 = vmatprep.subr.bf16.mxu0 %v797
    %2455 = vmatpush1.bf16.msra.mxu0 %v796
    %2456 = vmatprep.subr.bf16.mxu0 %v801
    %2457 = vmatpush1.bf16.msra.mxu0 %v800
    %2458 = vmatprep.subr.bf16.mxu0 %v805
    %2459 = vmatpush1.bf16.msra.mxu0 %v804
    %2460 = vmatprep.subr.bf16.mxu0 0
    %2461 = vmatpush1.bf16.msra.mxu0 0
    %2462 = vmatprep.subr.bf16.mxu0 0
    %2463 = vmatpush1.bf16.msra.mxu0 0
    %2464 = vmatprep.subr.bf16.mxu0 0
    %2465 = vmatpush1.bf16.msra.mxu0 0
    %2466 = vmatprep.subr.bf16.mxu0 0
    %2467 = vmatpush1.bf16.msra.mxu0 0
    %2468 = vmatprep.subr.bf16.mxu0 0
    %2469 = vmatpush1.bf16.msra.mxu0 0
    %2470 = vmatprep.subr.bf16.mxu0 0
    %2471 = vmatpush1.bf16.msra.mxu0 0
    %2472 = vmatprep.subr.bf16.mxu0 0
    %2473 = vmatpush1.bf16.msra.mxu0 0
    %2474 = vmatprep.subr.bf16.mxu0 0
    %2475 = vmatpush1.bf16.msra.mxu0 0
    %2476 = vmatprep.mubr.bf16.mxu0 0
    %2477 = vmatmul.mubr.bf16.gmra.mrb[0].mxu0 %v2402
    %v2478 = vpop.f32.mrb[0].mxu0
    %v2479 = vadd.f32 0.0, %v2478
    %v2480 = vpop.f32.mrb[0].mxu0
    %v2481 = vadd.f32 0.0, %v2480
    %v2482 = vpop.f32.mrb[0].mxu0
    %v2483 = vpop.f32.mrb[0].mxu0
    %2484 = vdwg.mxu0
    %2485 = vmatprep.subr.bf16.mxu0 %v1018
    %2486 = vmatpush1.bf16.msra.mxu0 %v1017
    %2487 = vmatprep.subr.bf16.mxu0 %v1022
    %2488 = vmatpush1.bf16.msra.mxu0 %v1021
    %2489 = vmatprep.subr.bf16.mxu0 %v1026
    %2490 = vmatpush1.bf16.msra.mxu0 %v1025
    %2491 = vmatprep.subr.bf16.mxu0 %v1030
    %2492 = vmatpush1.bf16.msra.mxu0 %v1029
    %2493 = vmatprep.subr.bf16.mxu0 %v1034
    %2494 = vmatpush1.bf16.msra.mxu0 %v1033
    %2495 = vmatprep.subr.bf16.mxu0 %v1038
    %2496 = vmatpush1.bf16.msra.mxu0 %v1037
    %2497 = vmatprep.subr.bf16.mxu0 %v1042
    %2498 = vmatpush1.bf16.msra.mxu0 %v1041
    %2499 = vmatprep.subr.bf16.mxu0 %v1046
    %2500 = vmatpush1.bf16.msra.mxu0 %v1045
    %2501 = vmatprep.subr.bf16.mxu0 0
    %2502 = vmatpush1.bf16.msra.mxu0 0
    %2503 = vmatprep.subr.bf16.mxu0 0
    %2504 = vmatpush1.bf16.msra.mxu0 0
    %2505 = vmatprep.subr.bf16.mxu0 0
    %2506 = vmatpush1.bf16.msra.mxu0 0
    %2507 = vmatprep.subr.bf16.mxu0 0
    %2508 = vmatpush1.bf16.msra.mxu0 0
    %2509 = vmatprep.subr.bf16.mxu0 0
    %2510 = vmatpush1.bf16.msra.mxu0 0
    %2511 = vmatprep.subr.bf16.mxu0 0
    %2512 = vmatpush1.bf16.msra.mxu0 0
    %2513 = vmatprep.subr.bf16.mxu0 0
    %2514 = vmatpush1.bf16.msra.mxu0 0
    %2515 = vmatprep.subr.bf16.mxu0 0
    %2516 = vmatpush1.bf16.msra.mxu0 0
    %2517 = vmatprep.mubr.bf16.mxu0 0
    %2518 = vmatmul.mubr.bf16.gmra.mrb[0].mxu0 %v2284
    %v2519 = vpop.f32.mrb[0].mxu0
    %v2520 = vadd.f32 0.0, %v2519
    %v2521 = vpop.f32.mrb[0].mxu0
    %v2522 = vadd.f32 0.0, %v2521
    %v2523 = vpop.f32.mrb[0].mxu0
    %v2524 = vpop.f32.mrb[0].mxu0
    %2525 = vdwg.mxu0
    %2526 = vmatprep.subr.bf16.mxu0 %v1020
    %2527 = vmatpush1.bf16.msra.mxu0 %v1019
    %2528 = vmatprep.subr.bf16.mxu0 %v1024
    %2529 = vmatpush1.bf16.msra.mxu0 %v1023
    %2530 = vmatprep.subr.bf16.mxu0 %v1028
    %2531 = vmatpush1.bf16.msra.mxu0 %v1027
    %2532 = vmatprep.subr.bf16.mxu0 %v1032
    %2533 = vmatpush1.bf16.msra.mxu0 %v1031
    %2534 = vmatprep.subr.bf16.mxu0 %v1036
    %2535 = vmatpush1.bf16.msra.mxu0 %v1035
    %2536 = vmatprep.subr.bf16.mxu0 %v1040
    %2537 = vmatpush1.bf16.msra.mxu0 %v1039
    %2538 = vmatprep.subr.bf16.mxu0 %v1044
    %2539 = vmatpush1.bf16.msra.mxu0 %v1043
    %2540 = vmatprep.subr.bf16.mxu0 %v1048
    %2541 = vmatpush1.bf16.msra.mxu0 %v1047
    %2542 = vmatprep.subr.bf16.mxu0 0
    %2543 = vmatpush1.bf16.msra.mxu0 0
    %2544 = vmatprep.subr.bf16.mxu0 0
    %2545 = vmatpush1.bf16.msra.mxu0 0
    %2546 = vmatprep.subr.bf16.mxu0 0
    %2547 = vmatpush1.bf16.msra.mxu0 0
    %2548 = vmatprep.subr.bf16.mxu0 0
    %2549 = vmatpush1.bf16.msra.mxu0 0
    %2550 = vmatprep.subr.bf16.mxu0 0
    %2551 = vmatpush1.bf16.msra.mxu0 0
    %2552 = vmatprep.subr.bf16.mxu0 0
    %2553 = vmatpush1.bf16.msra.mxu0 0
    %2554 = vmatprep.subr.bf16.mxu0 0
    %2555 = vmatpush1.bf16.msra.mxu0 0
    %2556 = vmatprep.subr.bf16.mxu0 0
    %2557 = vmatpush1.bf16.msra.mxu0 0
    %2558 = vmatprep.mubr.bf16.mxu0 0
    %2559 = vmatmul.mubr.bf16.gmra.mrb[0].mxu0 %v2284
    %v2560 = vpop.f32.mrb[0].mxu0
    %v2561 = vadd.f32 0.0, %v2560
    %v2562 = vpop.f32.mrb[0].mxu0
    %v2563 = vadd.f32 0.0, %v2562
    %v2564 = vpop.f32.mrb[0].mxu0
    %v2565 = vpop.f32.mrb[0].mxu0
    %2566 = vdwg.mxu0
    %v2567 = vadd.f32 %v2398, %v2520
    %v2568 = vadd.f32 %v2399, %v2522
    %v2569 = vadd.f32 %v2400, %v2561
    %v2570 = vadd.f32 %v2401, %v2563
    %v2571 = vxor.u32 %v2567, 2147483648
    %v2572 = vmul.f32 %v2571, 1.442695
    %v2573 = vpow.pop %v2572
    %v2574 = vadd.f32 %v2573, 1.0
    %v2575 = vrcp.pop %v2574
    %v2576 = vmul.f32 1.0, %v2575
    %v2577 = vxor.u32 %v2568, 2147483648
    %v2578 = vmul.f32 %v2577, 1.442695
    %v2579 = vpow.pop %v2578
    %v2580 = vadd.f32 %v2579, 1.0
    %v2581 = vrcp.pop %v2580
    %v2582 = vmul.f32 1.0, %v2581
    %v2583 = vtanh.pop %v2569
    %v2584 = vxor.u32 %v2570, 2147483648
    %v2585 = vmul.f32 %v2584, 1.442695
    %v2586 = vpow.pop %v2585
    %v2587 = vadd.f32 %v2586, 1.0
    %v2588 = vrcp.pop %v2587
    %v2589 = vmul.f32 1.0, %v2588
    %v2590 = vmul.f32 %v2582, %v2281
    %v2591 = vmul.f32 %v2576, %v2583
    %v2592 = vadd.f32 %v2590, %v2591
    %v2593 = vtanh.pop %v2592
    %v2594 = vmul.f32 %v2589, %v2593
    %v2595 = vpack.c.bf16 %v2594, %v2594
    %2596 = vmatprep.subr.bf16.mxu0 %v1289
    %2597 = vmatpush1.bf16.msra.mxu0 %v1288
    %2598 = vmatprep.subr.bf16.mxu0 %v1293
    %2599 = vmatpush1.bf16.msra.mxu0 %v1292
    %2600 = vmatprep.subr.bf16.mxu0 %v1297
    %2601 = vmatpush1.bf16.msra.mxu0 %v1296
    %2602 = vmatprep.subr.bf16.mxu0 %v1301
    %2603 = vmatpush1.bf16.msra.mxu0 %v1300
    %2604 = vmatprep.subr.bf16.mxu0 %v1305
    %2605 = vmatpush1.bf16.msra.mxu0 %v1304
    %2606 = vmatprep.subr.bf16.mxu0 %v1309
    %2607 = vmatpush1.bf16.msra.mxu0 %v1308
    %2608 = vmatprep.subr.bf16.mxu0 %v1313
    %2609 = vmatpush1.bf16.msra.mxu0 %v1312
    %2610 = vmatprep.subr.bf16.mxu0 %v1317
    %2611 = vmatpush1.bf16.msra.mxu0 %v1316
    %2612 = vmatprep.subr.bf16.mxu0 0
    %2613 = vmatpush1.bf16.msra.mxu0 0
    %2614 = vmatprep.subr.bf16.mxu0 0
    %2615 = vmatpush1.bf16.msra.mxu0 0
    %2616 = vmatprep.subr.bf16.mxu0 0
    %2617 = vmatpush1.bf16.msra.mxu0 0
    %2618 = vmatprep.subr.bf16.mxu0 0
    %2619 = vmatpush1.bf16.msra.mxu0 0
    %2620 = vmatprep.subr.bf16.mxu0 0
    %2621 = vmatpush1.bf16.msra.mxu0 0
    %2622 = vmatprep.subr.bf16.mxu0 0
    %2623 = vmatpush1.bf16.msra.mxu0 0
    %2624 = vmatprep.subr.bf16.mxu0 0
    %2625 = vmatpush1.bf16.msra.mxu0 0
    %2626 = vmatprep.subr.bf16.mxu0 0
    %2627 = vmatpush1.bf16.msra.mxu0 0
    %2628 = vmatprep.mubr.bf16.mxu0 0
    %2629 = vmatmul.mubr.bf16.gmra.mrb[0].mxu0 %v2595
    %v2630 = vpop.f32.mrb[0].mxu0
    %v2631 = vadd.f32 %v2438, %v2630
    %v2632 = vpop.f32.mrb[0].mxu0
    %v2633 = vadd.f32 %v2440, %v2632
    %v2634 = vpop.f32.mrb[0].mxu0
    %v2635 = vpop.f32.mrb[0].mxu0
    %2636 = vdwg.mxu0
    %2637 = vmatprep.subr.bf16.mxu0 %v1291
    %2638 = vmatpush1.bf16.msra.mxu0 %v1290
    %2639 = vmatprep.subr.bf16.mxu0 %v1295
    %2640 = vmatpush1.bf16.msra.mxu0 %v1294
    %2641 = vmatprep.subr.bf16.mxu0 %v1299
    %2642 = vmatpush1.bf16.msra.mxu0 %v1298
    %2643 = vmatprep.subr.bf16.mxu0 %v1303
    %2644 = vmatpush1.bf16.msra.mxu0 %v1302
    %2645 = vmatprep.subr.bf16.mxu0 %v1307
    %2646 = vmatpush1.bf16.msra.mxu0 %v1306
    %2647 = vmatprep.subr.bf16.mxu0 %v1311
    %2648 = vmatpush1.bf16.msra.mxu0 %v1310
    %2649 = vmatprep.subr.bf16.mxu0 %v1315
    %2650 = vmatpush1.bf16.msra.mxu0 %v1314
    %2651 = vmatprep.subr.bf16.mxu0 %v1319
    %2652 = vmatpush1.bf16.msra.mxu0 %v1318
    %2653 = vmatprep.subr.bf16.mxu0 0
    %2654 = vmatpush1.bf16.msra.mxu0 0
    %2655 = vmatprep.subr.bf16.mxu0 0
    %2656 = vmatpush1.bf16.msra.mxu0 0
    %2657 = vmatprep.subr.bf16.mxu0 0
    %2658 = vmatpush1.bf16.msra.mxu0 0
    %2659 = vmatprep.subr.bf16.mxu0 0
    %2660 = vmatpush1.bf16.msra.mxu0 0
    %2661 = vmatprep.subr.bf16.mxu0 0
    %2662 = vmatpush1.bf16.msra.mxu0 0
    %2663 = vmatprep.subr.bf16.mxu0 0
    %2664 = vmatpush1.bf16.msra.mxu0 0
    %2665 = vmatprep.subr.bf16.mxu0 0
    %2666 = vmatpush1.bf16.msra.mxu0 0
    %2667 = vmatprep.subr.bf16.mxu0 0
    %2668 = vmatpush1.bf16.msra.mxu0 0
    %2669 = vmatprep.mubr.bf16.mxu0 0
    %2670 = vmatmul.mubr.bf16.gmra.mrb[0].mxu0 %v2595
    %v2671 = vpop.f32.mrb[0].mxu0
    %v2672 = vadd.f32 %v2479, %v2671
    %v2673 = vpop.f32.mrb[0].mxu0
    %v2674 = vadd.f32 %v2481, %v2673
    %v2675 = vpop.f32.mrb[0].mxu0
    %v2676 = vpop.f32.mrb[0].mxu0
    %2677 = vdwg.mxu0
    %v2678 = vadd.f32 %v2631, %v649
    %v2679 = vadd.f32 %v2633, %v653
    %v2680 = vadd.f32 %v2672, %v657
    %v2681 = vadd.f32 %v2674, %v661
    %v2682 = vxor.u32 %v2678, 2147483648
    %v2683 = vmul.f32 %v2682, 1.442695
    %v2684 = vpow.pop %v2683
    %v2685 = vadd.f32 %v2684, 1.0
    %v2686 = vrcp.pop %v2685
    %v2687 = vmul.f32 1.0, %v2686
    %v2688 = vxor.u32 %v2679, 2147483648
    %v2689 = vmul.f32 %v2688, 1.442695
    %v2690 = vpow.pop %v2689
    %v2691 = vadd.f32 %v2690, 1.0
    %v2692 = vrcp.pop %v2691
    %v2693 = vmul.f32 1.0, %v2692
    %v2694 = vtanh.pop %v2680
    %v2695 = vxor.u32 %v2681, 2147483648
    %v2696 = vmul.f32 %v2695, 1.442695
    %v2697 = vpow.pop %v2696
    %v2698 = vadd.f32 %v2697, 1.0
    %v2699 = vrcp.pop %v2698
    %v2700 = vmul.f32 1.0, %v2699
    %v2701 = vmul.f32 %v2693, %v2392
    %v2702 = vmul.f32 %v2687, %v2694
    %v2703 = vadd.f32 %v2701, %v2702
    %v2704 = vtanh.pop %v2703
    %v2705 = vmul.f32 %v2700, %v2704
    %s2706 = smul.u32 5, 4
    %s2707 = smul.addr %s2706, 8
    %s2708 = scalar_lea.vmem [#allocation6], %s2707
    %v2709 = vld [vmem:[%s2708] sm:$0xff]
    %v2710 = vld [vmem:[%s2708 + $0x8] sm:$0xff]
    %v2711 = vld [vmem:[%s2708 + $0x10] sm:$0xff]
    %v2712 = vld [vmem:[%s2708 + $0x18] sm:$0xff]
    %v2713 = vpack.c.bf16 %v2705, %v2705
    %2714 = vmatprep.subr.bf16.mxu0 %v775
    %2715 = vmatpush1.bf16.msra.mxu0 %v774
    %2716 = vmatprep.subr.bf16.mxu0 %v779
    %2717 = vmatpush1.bf16.msra.mxu0 %v778
    %2718 = vmatprep.subr.bf16.mxu0 %v783
    %2719 = vmatpush1.bf16.msra.mxu0 %v782
    %2720 = vmatprep.subr.bf16.mxu0 %v787
    %2721 = vmatpush1.bf16.msra.mxu0 %v786
    %2722 = vmatprep.subr.bf16.mxu0 %v791
    %2723 = vmatpush1.bf16.msra.mxu0 %v790
    %2724 = vmatprep.subr.bf16.mxu0 %v795
    %2725 = vmatpush1.bf16.msra.mxu0 %v794
    %2726 = vmatprep.subr.bf16.mxu0 %v799
    %2727 = vmatpush1.bf16.msra.mxu0 %v798
    %2728 = vmatprep.subr.bf16.mxu0 %v803
    %2729 = vmatpush1.bf16.msra.mxu0 %v802
    %2730 = vmatprep.subr.bf16.mxu0 0
    %2731 = vmatpush1.bf16.msra.mxu0 0
    %2732 = vmatprep.subr.bf16.mxu0 0
    %2733 = vmatpush1.bf16.msra.mxu0 0
    %2734 = vmatprep.subr.bf16.mxu0 0
    %2735 = vmatpush1.bf16.msra.mxu0 0
    %2736 = vmatprep.subr.bf16.mxu0 0
    %2737 = vmatpush1.bf16.msra.mxu0 0
    %2738 = vmatprep.subr.bf16.mxu0 0
    %2739 = vmatpush1.bf16.msra.mxu0 0
    %2740 = vmatprep.subr.bf16.mxu0 0
    %2741 = vmatpush1.bf16.msra.mxu0 0
    %2742 = vmatprep.subr.bf16.mxu0 0
    %2743 = vmatpush1.bf16.msra.mxu0 0
    %2744 = vmatprep.subr.bf16.mxu0 0
    %2745 = vmatpush1.bf16.msra.mxu0 0
    %2746 = vmatprep.mubr.bf16.mxu0 0
    %2747 = vmatmul.mubr.bf16.gmra.mrb[0].mxu0 %v2713
    %v2748 = vpop.f32.mrb[0].mxu0
    %v2749 = vadd.f32 0.0, %v2748
    %v2750 = vpop.f32.mrb[0].mxu0
    %v2751 = vadd.f32 0.0, %v2750
    %v2752 = vpop.f32.mrb[0].mxu0
    %v2753 = vpop.f32.mrb[0].mxu0
    %2754 = vdwg.mxu0
    %2755 = vmatprep.subr.bf16.mxu0 %v777
    %2756 = vmatpush1.bf16.msra.mxu0 %v776
    %2757 = vmatprep.subr.bf16.mxu0 %v781
    %2758 = vmatpush1.bf16.msra.mxu0 %v780
    %2759 = vmatprep.subr.bf16.mxu0 %v785
    %2760 = vmatpush1.bf16.msra.mxu0 %v784
    %2761 = vmatprep.subr.bf16.mxu0 %v789
    %2762 = vmatpush1.bf16.msra.mxu0 %v788
    %2763 = vmatprep.subr.bf16.mxu0 %v793
    %2764 = vmatpush1.bf16.msra.mxu0 %v792
    %2765 = vmatprep.subr.bf16.mxu0 %v797
    %2766 = vmatpush1.bf16.msra.mxu0 %v796
    %2767 = vmatprep.subr.bf16.mxu0 %v801
    %2768 = vmatpush1.bf16.msra.mxu0 %v800
    %2769 = vmatprep.subr.bf16.mxu0 %v805
    %2770 = vmatpush1.bf16.msra.mxu0 %v804
    %2771 = vmatprep.subr.bf16.mxu0 0
    %2772 = vmatpush1.bf16.msra.mxu0 0
    %2773 = vmatprep.subr.bf16.mxu0 0
    %2774 = vmatpush1.bf16.msra.mxu0 0
    %2775 = vmatprep.subr.bf16.mxu0 0
    %2776 = vmatpush1.bf16.msra.mxu0 0
    %2777 = vmatprep.subr.bf16.mxu0 0
    %2778 = vmatpush1.bf16.msra.mxu0 0
    %2779 = vmatprep.subr.bf16.mxu0 0
    %2780 = vmatpush1.bf16.msra.mxu0 0
    %2781 = vmatprep.subr.bf16.mxu0 0
    %2782 = vmatpush1.bf16.msra.mxu0 0
    %2783 = vmatprep.subr.bf16.mxu0 0
    %2784 = vmatpush1.bf16.msra.mxu0 0
    %2785 = vmatprep.subr.bf16.mxu0 0
    %2786 = vmatpush1.bf16.msra.mxu0 0
    %2787 = vmatprep.mubr.bf16.mxu0 0
    %2788 = vmatmul.mubr.bf16.gmra.mrb[0].mxu0 %v2713
    %v2789 = vpop.f32.mrb[0].mxu0
    %v2790 = vadd.f32 0.0, %v2789
    %v2791 = vpop.f32.mrb[0].mxu0
    %v2792 = vadd.f32 0.0, %v2791
    %v2793 = vpop.f32.mrb[0].mxu0
    %v2794 = vpop.f32.mrb[0].mxu0
    %2795 = vdwg.mxu0
    %2796 = vmatprep.subr.bf16.mxu0 %v1018
    %2797 = vmatpush1.bf16.msra.mxu0 %v1017
    %2798 = vmatprep.subr.bf16.mxu0 %v1022
    %2799 = vmatpush1.bf16.msra.mxu0 %v1021
    %2800 = vmatprep.subr.bf16.mxu0 %v1026
    %2801 = vmatpush1.bf16.msra.mxu0 %v1025
    %2802 = vmatprep.subr.bf16.mxu0 %v1030
    %2803 = vmatpush1.bf16.msra.mxu0 %v1029
    %2804 = vmatprep.subr.bf16.mxu0 %v1034
    %2805 = vmatpush1.bf16.msra.mxu0 %v1033
    %2806 = vmatprep.subr.bf16.mxu0 %v1038
    %2807 = vmatpush1.bf16.msra.mxu0 %v1037
    %2808 = vmatprep.subr.bf16.mxu0 %v1042
    %2809 = vmatpush1.bf16.msra.mxu0 %v1041
    %2810 = vmatprep.subr.bf16.mxu0 %v1046
    %2811 = vmatpush1.bf16.msra.mxu0 %v1045
    %2812 = vmatprep.subr.bf16.mxu0 0
    %2813 = vmatpush1.bf16.msra.mxu0 0
    %2814 = vmatprep.subr.bf16.mxu0 0
    %2815 = vmatpush1.bf16.msra.mxu0 0
    %2816 = vmatprep.subr.bf16.mxu0 0
    %2817 = vmatpush1.bf16.msra.mxu0 0
    %2818 = vmatprep.subr.bf16.mxu0 0
    %2819 = vmatpush1.bf16.msra.mxu0 0
    %2820 = vmatprep.subr.bf16.mxu0 0
    %2821 = vmatpush1.bf16.msra.mxu0 0
    %2822 = vmatprep.subr.bf16.mxu0 0
    %2823 = vmatpush1.bf16.msra.mxu0 0
    %2824 = vmatprep.subr.bf16.mxu0 0
    %2825 = vmatpush1.bf16.msra.mxu0 0
    %2826 = vmatprep.subr.bf16.mxu0 0
    %2827 = vmatpush1.bf16.msra.mxu0 0
    %2828 = vmatprep.mubr.bf16.mxu0 0
    %2829 = vmatmul.mubr.bf16.gmra.mrb[0].mxu0 %v2595
    %v2830 = vpop.f32.mrb[0].mxu0
    %v2831 = vadd.f32 0.0, %v2830
    %v2832 = vpop.f32.mrb[0].mxu0
    %v2833 = vadd.f32 0.0, %v2832
    %v2834 = vpop.f32.mrb[0].mxu0
    %v2835 = vpop.f32.mrb[0].mxu0
    %2836 = vdwg.mxu0
    %2837 = vmatprep.subr.bf16.mxu0 %v1020
    %2838 = vmatpush1.bf16.msra.mxu0 %v1019
    %2839 = vmatprep.subr.bf16.mxu0 %v1024
    %2840 = vmatpush1.bf16.msra.mxu0 %v1023
    %2841 = vmatprep.subr.bf16.mxu0 %v1028
    %2842 = vmatpush1.bf16.msra.mxu0 %v1027
    %2843 = vmatprep.subr.bf16.mxu0 %v1032
    %2844 = vmatpush1.bf16.msra.mxu0 %v1031
    %2845 = vmatprep.subr.bf16.mxu0 %v1036
    %2846 = vmatpush1.bf16.msra.mxu0 %v1035
    %2847 = vmatprep.subr.bf16.mxu0 %v1040
    %2848 = vmatpush1.bf16.msra.mxu0 %v1039
    %2849 = vmatprep.subr.bf16.mxu0 %v1044
    %2850 = vmatpush1.bf16.msra.mxu0 %v1043
    %2851 = vmatprep.subr.bf16.mxu0 %v1048
    %2852 = vmatpush1.bf16.msra.mxu0 %v1047
    %2853 = vmatprep.subr.bf16.mxu0 0
    %2854 = vmatpush1.bf16.msra.mxu0 0
    %2855 = vmatprep.subr.bf16.mxu0 0
    %2856 = vmatpush1.bf16.msra.mxu0 0
    %2857 = vmatprep.subr.bf16.mxu0 0
    %2858 = vmatpush1.bf16.msra.mxu0 0
    %2859 = vmatprep.subr.bf16.mxu0 0
    %2860 = vmatpush1.bf16.msra.mxu0 0
    %2861 = vmatprep.subr.bf16.mxu0 0
    %2862 = vmatpush1.bf16.msra.mxu0 0
    %2863 = vmatprep.subr.bf16.mxu0 0
    %2864 = vmatpush1.bf16.msra.mxu0 0
    %2865 = vmatprep.subr.bf16.mxu0 0
    %2866 = vmatpush1.bf16.msra.mxu0 0
    %2867 = vmatprep.subr.bf16.mxu0 0
    %2868 = vmatpush1.bf16.msra.mxu0 0
    %2869 = vmatprep.mubr.bf16.mxu0 0
    %2870 = vmatmul.mubr.bf16.gmra.mrb[0].mxu0 %v2595
    %v2871 = vpop.f32.mrb[0].mxu0
    %v2872 = vadd.f32 0.0, %v2871
    %v2873 = vpop.f32.mrb[0].mxu0
    %v2874 = vadd.f32 0.0, %v2873
    %v2875 = vpop.f32.mrb[0].mxu0
    %v2876 = vpop.f32.mrb[0].mxu0
    %2877 = vdwg.mxu0
    %v2878 = vadd.f32 %v2709, %v2831
    %v2879 = vadd.f32 %v2710, %v2833
    %v2880 = vadd.f32 %v2711, %v2872
    %v2881 = vadd.f32 %v2712, %v2874
    %v2882 = vxor.u32 %v2878, 2147483648
    %v2883 = vmul.f32 %v2882, 1.442695
    %v2884 = vpow.pop %v2883
    %v2885 = vadd.f32 %v2884, 1.0
    %v2886 = vrcp.pop %v2885
    %v2887 = vmul.f32 1.0, %v2886
    %v2888 = vxor.u32 %v2879, 2147483648
    %v2889 = vmul.f32 %v2888, 1.442695
    %v2890 = vpow.pop %v2889
    %v2891 = vadd.f32 %v2890, 1.0
    %v2892 = vrcp.pop %v2891
    %v2893 = vmul.f32 1.0, %v2892
    %v2894 = vtanh.pop %v2880
    %v2895 = vxor.u32 %v2881, 2147483648
    %v2896 = vmul.f32 %v2895, 1.442695
    %v2897 = vpow.pop %v2896
    %v2898 = vadd.f32 %v2897, 1.0
    %v2899 = vrcp.pop %v2898
    %v2900 = vmul.f32 1.0, %v2899
    %v2901 = vmul.f32 %v2893, %v2592
    %v2902 = vmul.f32 %v2887, %v2894
    %v2903 = vadd.f32 %v2901, %v2902
    %v2904 = vtanh.pop %v2903
    %v2905 = vmul.f32 %v2900, %v2904
    %v2906 = vpack.c.bf16 %v2905, %v2905
    %2907 = vmatprep.subr.bf16.mxu0 %v1289
    %2908 = vmatpush1.bf16.msra.mxu0 %v1288
    %2909 = vmatprep.subr.bf16.mxu0 %v1293
    %2910 = vmatpush1.bf16.msra.mxu0 %v1292
    %2911 = vmatprep.subr.bf16.mxu0 %v1297
    %2912 = vmatpush1.bf16.msra.mxu0 %v1296
    %2913 = vmatprep.subr.bf16.mxu0 %v1301
    %2914 = vmatpush1.bf16.msra.mxu0 %v1300
    %2915 = vmatprep.subr.bf16.mxu0 %v1305
    %2916 = vmatpush1.bf16.msra.mxu0 %v1304
    %2917 = vmatprep.subr.bf16.mxu0 %v1309
    %2918 = vmatpush1.bf16.msra.mxu0 %v1308
    %2919 = vmatprep.subr.bf16.mxu0 %v1313
    %2920 = vmatpush1.bf16.msra.mxu0 %v1312
    %2921 = vmatprep.subr.bf16.mxu0 %v1317
    %2922 = vmatpush1.bf16.msra.mxu0 %v1316
    %2923 = vmatprep.subr.bf16.mxu0 0
    %2924 = vmatpush1.bf16.msra.mxu0 0
    %2925 = vmatprep.subr.bf16.mxu0 0
    %2926 = vmatpush1.bf16.msra.mxu0 0
    %2927 = vmatprep.subr.bf16.mxu0 0
    %2928 = vmatpush1.bf16.msra.mxu0 0
    %2929 = vmatprep.subr.bf16.mxu0 0
    %2930 = vmatpush1.bf16.msra.mxu0 0
    %2931 = vmatprep.subr.bf16.mxu0 0
    %2932 = vmatpush1.bf16.msra.mxu0 0
    %2933 = vmatprep.subr.bf16.mxu0 0
    %2934 = vmatpush1.bf16.msra.mxu0 0
    %2935 = vmatprep.subr.bf16.mxu0 0
    %2936 = vmatpush1.bf16.msra.mxu0 0
    %2937 = vmatprep.subr.bf16.mxu0 0
    %2938 = vmatpush1.bf16.msra.mxu0 0
    %2939 = vmatprep.mubr.bf16.mxu0 0
    %2940 = vmatmul.mubr.bf16.gmra.mrb[0].mxu0 %v2906
    %v2941 = vpop.f32.mrb[0].mxu0
    %v2942 = vadd.f32 %v2749, %v2941
    %v2943 = vpop.f32.mrb[0].mxu0
    %v2944 = vadd.f32 %v2751, %v2943
    %v2945 = vpop.f32.mrb[0].mxu0
    %v2946 = vpop.f32.mrb[0].mxu0
    %2947 = vdwg.mxu0
    %2948 = vmatprep.subr.bf16.mxu0 %v1291
    %2949 = vmatpush1.bf16.msra.mxu0 %v1290
    %2950 = vmatprep.subr.bf16.mxu0 %v1295
    %2951 = vmatpush1.bf16.msra.mxu0 %v1294
    %2952 = vmatprep.subr.bf16.mxu0 %v1299
    %2953 = vmatpush1.bf16.msra.mxu0 %v1298
    %2954 = vmatprep.subr.bf16.mxu0 %v1303
    %2955 = vmatpush1.bf16.msra.mxu0 %v1302
    %2956 = vmatprep.subr.bf16.mxu0 %v1307
    %2957 = vmatpush1.bf16.msra.mxu0 %v1306
    %2958 = vmatprep.subr.bf16.mxu0 %v1311
    %2959 = vmatpush1.bf16.msra.mxu0 %v1310
    %2960 = vmatprep.subr.bf16.mxu0 %v1315
    %2961 = vmatpush1.bf16.msra.mxu0 %v1314
    %2962 = vmatprep.subr.bf16.mxu0 %v1319
    %2963 = vmatpush1.bf16.msra.mxu0 %v1318
    %2964 = vmatprep.subr.bf16.mxu0 0
    %2965 = vmatpush1.bf16.msra.mxu0 0
    %2966 = vmatprep.subr.bf16.mxu0 0
    %2967 = vmatpush1.bf16.msra.mxu0 0
    %2968 = vmatprep.subr.bf16.mxu0 0
    %2969 = vmatpush1.bf16.msra.mxu0 0
    %2970 = vmatprep.subr.bf16.mxu0 0
    %2971 = vmatpush1.bf16.msra.mxu0 0
    %2972 = vmatprep.subr.bf16.mxu0 0
    %2973 = vmatpush1.bf16.msra.mxu0 0
    %2974 = vmatprep.subr.bf16.mxu0 0
    %2975 = vmatpush1.bf16.msra.mxu0 0
    %2976 = vmatprep.subr.bf16.mxu0 0
    %2977 = vmatpush1.bf16.msra.mxu0 0
    %2978 = vmatprep.subr.bf16.mxu0 0
    %2979 = vmatpush1.bf16.msra.mxu0 0
    %2980 = vmatprep.mubr.bf16.mxu0 0
    %2981 = vmatmul.mubr.bf16.gmra.mrb[0].mxu0 %v2906
    %v2982 = vpop.f32.mrb[0].mxu0
    %v2983 = vadd.f32 %v2790, %v2982
    %v2984 = vpop.f32.mrb[0].mxu0
    %v2985 = vadd.f32 %v2792, %v2984
    %v2986 = vpop.f32.mrb[0].mxu0
    %v2987 = vpop.f32.mrb[0].mxu0
    %2988 = vdwg.mxu0
    %v2989 = vadd.f32 %v2942, %v649
    %v2990 = vadd.f32 %v2944, %v653
    %v2991 = vadd.f32 %v2983, %v657
    %v2992 = vadd.f32 %v2985, %v661
    %v2993 = vxor.u32 %v2989, 2147483648
    %v2994 = vmul.f32 %v2993, 1.442695
    %v2995 = vpow.pop %v2994
    %v2996 = vadd.f32 %v2995, 1.0
    %v2997 = vrcp.pop %v2996
    %v2998 = vmul.f32 1.0, %v2997
    %v2999 = vxor.u32 %v2990, 2147483648
    %v3000 = vmul.f32 %v2999, 1.442695
    %v3001 = vpow.pop %v3000
    %v3002 = vadd.f32 %v3001, 1.0
    %v3003 = vrcp.pop %v3002
    %v3004 = vmul.f32 1.0, %v3003
    %v3005 = vtanh.pop %v2991
    %v3006 = vxor.u32 %v2992, 2147483648
    %v3007 = vmul.f32 %v3006, 1.442695
    %v3008 = vpow.pop %v3007
    %v3009 = vadd.f32 %v3008, 1.0
    %v3010 = vrcp.pop %v3009
    %v3011 = vmul.f32 1.0, %v3010
    %v3012 = vmul.f32 %v3004, %v2703
    %v3013 = vmul.f32 %v2998, %v3005
    %v3014 = vadd.f32 %v3012, %v3013
    %v3015 = vtanh.pop %v3014
    %v3016 = vmul.f32 %v3011, %v3015
    %s3017 = smul.u32 6, 4
    %s3018 = smul.addr %s3017, 8
    %s3019 = scalar_lea.vmem [#allocation6], %s3018
    %v3020 = vld [vmem:[%s3019] sm:$0xff]
    %v3021 = vld [vmem:[%s3019 + $0x8] sm:$0xff]
    %v3022 = vld [vmem:[%s3019 + $0x10] sm:$0xff]
    %v3023 = vld [vmem:[%s3019 + $0x18] sm:$0xff]
    %v3024 = vpack.c.bf16 %v3016, %v3016
    %3025 = vmatprep.subr.bf16.mxu0 %v775
    %3026 = vmatpush1.bf16.msra.mxu0 %v774
    %3027 = vmatprep.subr.bf16.mxu0 %v779
    %3028 = vmatpush1.bf16.msra.mxu0 %v778
    %3029 = vmatprep.subr.bf16.mxu0 %v783
    %3030 = vmatpush1.bf16.msra.mxu0 %v782
    %3031 = vmatprep.subr.bf16.mxu0 %v787
    %3032 = vmatpush1.bf16.msra.mxu0 %v786
    %3033 = vmatprep.subr.bf16.mxu0 %v791
    %3034 = vmatpush1.bf16.msra.mxu0 %v790
    %3035 = vmatprep.subr.bf16.mxu0 %v795
    %3036 = vmatpush1.bf16.msra.mxu0 %v794
    %3037 = vmatprep.subr.bf16.mxu0 %v799
    %3038 = vmatpush1.bf16.msra.mxu0 %v798
    %3039 = vmatprep.subr.bf16.mxu0 %v803
    %3040 = vmatpush1.bf16.msra.mxu0 %v802
    %3041 = vmatprep.subr.bf16.mxu0 0
    %3042 = vmatpush1.bf16.msra.mxu0 0
    %3043 = vmatprep.subr.bf16.mxu0 0
    %3044 = vmatpush1.bf16.msra.mxu0 0
    %3045 = vmatprep.subr.bf16.mxu0 0
    %3046 = vmatpush1.bf16.msra.mxu0 0
    %3047 = vmatprep.subr.bf16.mxu0 0
    %3048 = vmatpush1.bf16.msra.mxu0 0
    %3049 = vmatprep.subr.bf16.mxu0 0
    %3050 = vmatpush1.bf16.msra.mxu0 0
    %3051 = vmatprep.subr.bf16.mxu0 0
    %3052 = vmatpush1.bf16.msra.mxu0 0
    %3053 = vmatprep.subr.bf16.mxu0 0
    %3054 = vmatpush1.bf16.msra.mxu0 0
    %3055 = vmatprep.subr.bf16.mxu0 0
    %3056 = vmatpush1.bf16.msra.mxu0 0
    %3057 = vmatprep.mubr.bf16.mxu0 0
    %3058 = vmatmul.mubr.bf16.gmra.mrb[0].mxu0 %v3024
    %v3059 = vpop.f32.mrb[0].mxu0
    %v3060 = vadd.f32 0.0, %v3059
    %v3061 = vpop.f32.mrb[0].mxu0
    %v3062 = vadd.f32 0.0, %v3061
    %v3063 = vpop.f32.mrb[0].mxu0
    %v3064 = vpop.f32.mrb[0].mxu0
    %3065 = vdwg.mxu0
    %3066 = vmatprep.subr.bf16.mxu0 %v777
    %3067 = vmatpush1.bf16.msra.mxu0 %v776
    %3068 = vmatprep.subr.bf16.mxu0 %v781
    %3069 = vmatpush1.bf16.msra.mxu0 %v780
    %3070 = vmatprep.subr.bf16.mxu0 %v785
    %3071 = vmatpush1.bf16.msra.mxu0 %v784
    %3072 = vmatprep.subr.bf16.mxu0 %v789
    %3073 = vmatpush1.bf16.msra.mxu0 %v788
    %3074 = vmatprep.subr.bf16.mxu0 %v793
    %3075 = vmatpush1.bf16.msra.mxu0 %v792
    %3076 = vmatprep.subr.bf16.mxu0 %v797
    %3077 = vmatpush1.bf16.msra.mxu0 %v796
    %3078 = vmatprep.subr.bf16.mxu0 %v801
    %3079 = vmatpush1.bf16.msra.mxu0 %v800
    %3080 = vmatprep.subr.bf16.mxu0 %v805
    %3081 = vmatpush1.bf16.msra.mxu0 %v804
    %3082 = vmatprep.subr.bf16.mxu0 0
    %3083 = vmatpush1.bf16.msra.mxu0 0
    %3084 = vmatprep.subr.bf16.mxu0 0
    %3085 = vmatpush1.bf16.msra.mxu0 0
    %3086 = vmatprep.subr.bf16.mxu0 0
    %3087 = vmatpush1.bf16.msra.mxu0 0
    %3088 = vmatprep.subr.bf16.mxu0 0
    %3089 = vmatpush1.bf16.msra.mxu0 0
    %3090 = vmatprep.subr.bf16.mxu0 0
    %3091 = vmatpush1.bf16.msra.mxu0 0
    %3092 = vmatprep.subr.bf16.mxu0 0
    %3093 = vmatpush1.bf16.msra.mxu0 0
    %3094 = vmatprep.subr.bf16.mxu0 0
    %3095 = vmatpush1.bf16.msra.mxu0 0
    %3096 = vmatprep.subr.bf16.mxu0 0
    %3097 = vmatpush1.bf16.msra.mxu0 0
    %3098 = vmatprep.mubr.bf16.mxu0 0
    %3099 = vmatmul.mubr.bf16.gmra.mrb[0].mxu0 %v3024
    %v3100 = vpop.f32.mrb[0].mxu0
    %v3101 = vadd.f32 0.0, %v3100
    %v3102 = vpop.f32.mrb[0].mxu0
    %v3103 = vadd.f32 0.0, %v3102
    %v3104 = vpop.f32.mrb[0].mxu0
    %v3105 = vpop.f32.mrb[0].mxu0
    %3106 = vdwg.mxu0
    %3107 = vmatprep.subr.bf16.mxu0 %v1018
    %3108 = vmatpush1.bf16.msra.mxu0 %v1017
    %3109 = vmatprep.subr.bf16.mxu0 %v1022
    %3110 = vmatpush1.bf16.msra.mxu0 %v1021
    %3111 = vmatprep.subr.bf16.mxu0 %v1026
    %3112 = vmatpush1.bf16.msra.mxu0 %v1025
    %3113 = vmatprep.subr.bf16.mxu0 %v1030
    %3114 = vmatpush1.bf16.msra.mxu0 %v1029
    %3115 = vmatprep.subr.bf16.mxu0 %v1034
    %3116 = vmatpush1.bf16.msra.mxu0 %v1033
    %3117 = vmatprep.subr.bf16.mxu0 %v1038
    %3118 = vmatpush1.bf16.msra.mxu0 %v1037
    %3119 = vmatprep.subr.bf16.mxu0 %v1042
    %3120 = vmatpush1.bf16.msra.mxu0 %v1041
    %3121 = vmatprep.subr.bf16.mxu0 %v1046
    %3122 = vmatpush1.bf16.msra.mxu0 %v1045
    %3123 = vmatprep.subr.bf16.mxu0 0
    %3124 = vmatpush1.bf16.msra.mxu0 0
    %3125 = vmatprep.subr.bf16.mxu0 0
    %3126 = vmatpush1.bf16.msra.mxu0 0
    %3127 = vmatprep.subr.bf16.mxu0 0
    %3128 = vmatpush1.bf16.msra.mxu0 0
    %3129 = vmatprep.subr.bf16.mxu0 0
    %3130 = vmatpush1.bf16.msra.mxu0 0
    %3131 = vmatprep.subr.bf16.mxu0 0
    %3132 = vmatpush1.bf16.msra.mxu0 0
    %3133 = vmatprep.subr.bf16.mxu0 0
    %3134 = vmatpush1.bf16.msra.mxu0 0
    %3135 = vmatprep.subr.bf16.mxu0 0
    %3136 = vmatpush1.bf16.msra.mxu0 0
    %3137 = vmatprep.subr.bf16.mxu0 0
    %3138 = vmatpush1.bf16.msra.mxu0 0
    %3139 = vmatprep.mubr.bf16.mxu0 0
    %3140 = vmatmul.mubr.bf16.gmra.mrb[0].mxu0 %v2906
    %v3141 = vpop.f32.mrb[0].mxu0
    %v3142 = vadd.f32 0.0, %v3141
    %v3143 = vpop.f32.mrb[0].mxu0
    %v3144 = vadd.f32 0.0, %v3143
    %v3145 = vpop.f32.mrb[0].mxu0
    %v3146 = vpop.f32.mrb[0].mxu0
    %3147 = vdwg.mxu0
    %3148 = vmatprep.subr.bf16.mxu0 %v1020
    %3149 = vmatpush1.bf16.msra.mxu0 %v1019
    %3150 = vmatprep.subr.bf16.mxu0 %v1024
    %3151 = vmatpush1.bf16.msra.mxu0 %v1023
    %3152 = vmatprep.subr.bf16.mxu0 %v1028
    %3153 = vmatpush1.bf16.msra.mxu0 %v1027
    %3154 = vmatprep.subr.bf16.mxu0 %v1032
    %3155 = vmatpush1.bf16.msra.mxu0 %v1031
    %3156 = vmatprep.subr.bf16.mxu0 %v1036
    %3157 = vmatpush1.bf16.msra.mxu0 %v1035
    %3158 = vmatprep.subr.bf16.mxu0 %v1040
    %3159 = vmatpush1.bf16.msra.mxu0 %v1039
    %3160 = vmatprep.subr.bf16.mxu0 %v1044
    %3161 = vmatpush1.bf16.msra.mxu0 %v1043
    %3162 = vmatprep.subr.bf16.mxu0 %v1048
    %3163 = vmatpush1.bf16.msra.mxu0 %v1047
    %3164 = vmatprep.subr.bf16.mxu0 0
    %3165 = vmatpush1.bf16.msra.mxu0 0
    %3166 = vmatprep.subr.bf16.mxu0 0
    %3167 = vmatpush1.bf16.msra.mxu0 0
    %3168 = vmatprep.subr.bf16.mxu0 0
    %3169 = vmatpush1.bf16.msra.mxu0 0
    %3170 = vmatprep.subr.bf16.mxu0 0
    %3171 = vmatpush1.bf16.msra.mxu0 0
    %3172 = vmatprep.subr.bf16.mxu0 0
    %3173 = vmatpush1.bf16.msra.mxu0 0
    %3174 = vmatprep.subr.bf16.mxu0 0
    %3175 = vmatpush1.bf16.msra.mxu0 0
    %3176 = vmatprep.subr.bf16.mxu0 0
    %3177 = vmatpush1.bf16.msra.mxu0 0
    %3178 = vmatprep.subr.bf16.mxu0 0
    %3179 = vmatpush1.bf16.msra.mxu0 0
    %3180 = vmatprep.mubr.bf16.mxu0 0
    %3181 = vmatmul.mubr.bf16.gmra.mrb[0].mxu0 %v2906
    %v3182 = vpop.f32.mrb[0].mxu0
    %v3183 = vadd.f32 0.0, %v3182
    %v3184 = vpop.f32.mrb[0].mxu0
    %v3185 = vadd.f32 0.0, %v3184
    %v3186 = vpop.f32.mrb[0].mxu0
    %v3187 = vpop.f32.mrb[0].mxu0
    %3188 = vdwg.mxu0
    %v3189 = vadd.f32 %v3020, %v3142
    %v3190 = vadd.f32 %v3021, %v3144
    %v3191 = vadd.f32 %v3022, %v3183
    %v3192 = vadd.f32 %v3023, %v3185
    %v3193 = vxor.u32 %v3189, 2147483648
    %v3194 = vmul.f32 %v3193, 1.442695
    %v3195 = vpow.pop %v3194
    %v3196 = vadd.f32 %v3195, 1.0
    %v3197 = vrcp.pop %v3196
    %v3198 = vmul.f32 1.0, %v3197
    %v3199 = vxor.u32 %v3190, 2147483648
    %v3200 = vmul.f32 %v3199, 1.442695
    %v3201 = vpow.pop %v3200
    %v3202 = vadd.f32 %v3201, 1.0
    %v3203 = vrcp.pop %v3202
    %v3204 = vmul.f32 1.0, %v3203
    %v3205 = vtanh.pop %v3191
    %v3206 = vxor.u32 %v3192, 2147483648
    %v3207 = vmul.f32 %v3206, 1.442695
    %v3208 = vpow.pop %v3207
    %v3209 = vadd.f32 %v3208, 1.0
    %v3210 = vrcp.pop %v3209
    %v3211 = vmul.f32 1.0, %v3210
    %v3212 = vmul.f32 %v3204, %v2903
    %v3213 = vmul.f32 %v3198, %v3205
    %v3214 = vadd.f32 %v3212, %v3213
    %v3215 = vtanh.pop %v3214
    %v3216 = vmul.f32 %v3211, %v3215
    %v3217 = vpack.c.bf16 %v3216, %v3216
    %3218 = vmatprep.subr.bf16.mxu0 %v1289
    %3219 = vmatpush1.bf16.msra.mxu0 %v1288
    %3220 = vmatprep.subr.bf16.mxu0 %v1293
    %3221 = vmatpush1.bf16.msra.mxu0 %v1292
    %3222 = vmatprep.subr.bf16.mxu0 %v1297
    %3223 = vmatpush1.bf16.msra.mxu0 %v1296
    %3224 = vmatprep.subr.bf16.mxu0 %v1301
    %3225 = vmatpush1.bf16.msra.mxu0 %v1300
    %3226 = vmatprep.subr.bf16.mxu0 %v1305
    %3227 = vmatpush1.bf16.msra.mxu0 %v1304
    %3228 = vmatprep.subr.bf16.mxu0 %v1309
    %3229 = vmatpush1.bf16.msra.mxu0 %v1308
    %3230 = vmatprep.subr.bf16.mxu0 %v1313
    %3231 = vmatpush1.bf16.msra.mxu0 %v1312
    %3232 = vmatprep.subr.bf16.mxu0 %v1317
    %3233 = vmatpush1.bf16.msra.mxu0 %v1316
    %3234 = vmatprep.subr.bf16.mxu0 0
    %3235 = vmatpush1.bf16.msra.mxu0 0
    %3236 = vmatprep.subr.bf16.mxu0 0
    %3237 = vmatpush1.bf16.msra.mxu0 0
    %3238 = vmatprep.subr.bf16.mxu0 0
    %3239 = vmatpush1.bf16.msra.mxu0 0
    %3240 = vmatprep.subr.bf16.mxu0 0
    %3241 = vmatpush1.bf16.msra.mxu0 0
    %3242 = vmatprep.subr.bf16.mxu0 0
    %3243 = vmatpush1.bf16.msra.mxu0 0
    %3244 = vmatprep.subr.bf16.mxu0 0
    %3245 = vmatpush1.bf16.msra.mxu0 0
    %3246 = vmatprep.subr.bf16.mxu0 0
    %3247 = vmatpush1.bf16.msra.mxu0 0
    %3248 = vmatprep.subr.bf16.mxu0 0
    %3249 = vmatpush1.bf16.msra.mxu0 0
    %3250 = vmatprep.mubr.bf16.mxu0 0
    %3251 = vmatmul.mubr.bf16.gmra.mrb[0].mxu0 %v3217
    %v3252 = vpop.f32.mrb[0].mxu0
    %v3253 = vadd.f32 %v3060, %v3252
    %v3254 = vpop.f32.mrb[0].mxu0
    %v3255 = vadd.f32 %v3062, %v3254
    %v3256 = vpop.f32.mrb[0].mxu0
    %v3257 = vpop.f32.mrb[0].mxu0
    %3258 = vdwg.mxu0
    %3259 = vmatprep.subr.bf16.mxu0 %v1291
    %3260 = vmatpush1.bf16.msra.mxu0 %v1290
    %3261 = vmatprep.subr.bf16.mxu0 %v1295
    %3262 = vmatpush1.bf16.msra.mxu0 %v1294
    %3263 = vmatprep.subr.bf16.mxu0 %v1299
    %3264 = vmatpush1.bf16.msra.mxu0 %v1298
    %3265 = vmatprep.subr.bf16.mxu0 %v1303
    %3266 = vmatpush1.bf16.msra.mxu0 %v1302
    %3267 = vmatprep.subr.bf16.mxu0 %v1307
    %3268 = vmatpush1.bf16.msra.mxu0 %v1306
    %3269 = vmatprep.subr.bf16.mxu0 %v1311
    %3270 = vmatpush1.bf16.msra.mxu0 %v1310
    %3271 = vmatprep.subr.bf16.mxu0 %v1315
    %3272 = vmatpush1.bf16.msra.mxu0 %v1314
    %3273 = vmatprep.subr.bf16.mxu0 %v1319
    %3274 = vmatpush1.bf16.msra.mxu0 %v1318
    %3275 = vmatprep.subr.bf16.mxu0 0
    %3276 = vmatpush1.bf16.msra.mxu0 0
    %3277 = vmatprep.subr.bf16.mxu0 0
    %3278 = vmatpush1.bf16.msra.mxu0 0
    %3279 = vmatprep.subr.bf16.mxu0 0
    %3280 = vmatpush1.bf16.msra.mxu0 0
    %3281 = vmatprep.subr.bf16.mxu0 0
    %3282 = vmatpush1.bf16.msra.mxu0 0
    %3283 = vmatprep.subr.bf16.mxu0 0
    %3284 = vmatpush1.bf16.msra.mxu0 0
    %3285 = vmatprep.subr.bf16.mxu0 0
    %3286 = vmatpush1.bf16.msra.mxu0 0
    %3287 = vmatprep.subr.bf16.mxu0 0
    %3288 = vmatpush1.bf16.msra.mxu0 0
    %3289 = vmatprep.subr.bf16.mxu0 0
    %3290 = vmatpush1.bf16.msra.mxu0 0
    %3291 = vmatprep.mubr.bf16.mxu0 0
    %3292 = vmatmul.mubr.bf16.gmra.mrb[0].mxu0 %v3217
    %v3293 = vpop.f32.mrb[0].mxu0
    %v3294 = vadd.f32 %v3101, %v3293
    %v3295 = vpop.f32.mrb[0].mxu0
    %v3296 = vadd.f32 %v3103, %v3295
    %v3297 = vpop.f32.mrb[0].mxu0
    %v3298 = vpop.f32.mrb[0].mxu0
    %3299 = vdwg.mxu0
    %v3300 = vadd.f32 %v3253, %v649
    %v3301 = vadd.f32 %v3255, %v653
    %v3302 = vadd.f32 %v3294, %v657
    %v3303 = vadd.f32 %v3296, %v661
    %v3304 = vxor.u32 %v3300, 2147483648
    %v3305 = vmul.f32 %v3304, 1.442695
    %v3306 = vpow.pop %v3305
    %v3307 = vadd.f32 %v3306, 1.0
    %v3308 = vrcp.pop %v3307
    %v3309 = vmul.f32 1.0, %v3308
    %v3310 = vxor.u32 %v3301, 2147483648
    %v3311 = vmul.f32 %v3310, 1.442695
    %v3312 = vpow.pop %v3311
    %v3313 = vadd.f32 %v3312, 1.0
    %v3314 = vrcp.pop %v3313
    %v3315 = vmul.f32 1.0, %v3314
    %v3316 = vtanh.pop %v3302
    %v3317 = vxor.u32 %v3303, 2147483648
    %v3318 = vmul.f32 %v3317, 1.442695
    %v3319 = vpow.pop %v3318
    %v3320 = vadd.f32 %v3319, 1.0
    %v3321 = vrcp.pop %v3320
    %v3322 = vmul.f32 1.0, %v3321
    %v3323 = vmul.f32 %v3315, %v3014
    %v3324 = vmul.f32 %v3309, %v3316
    %v3325 = vadd.f32 %v3323, %v3324
    %v3326 = vtanh.pop %v3325
    %v3327 = vmul.f32 %v3322, %v3326
    %s3328 = smul.u32 7, 4
    %s3329 = smul.addr %s3328, 8
    %s3330 = scalar_lea.vmem [#allocation6], %s3329
    %v3331 = vld [vmem:[%s3330] sm:$0xff]
    %v3332 = vld [vmem:[%s3330 + $0x8] sm:$0xff]
    %v3333 = vld [vmem:[%s3330 + $0x10] sm:$0xff]
    %v3334 = vld [vmem:[%s3330 + $0x18] sm:$0xff]
    %v3335 = vpack.c.bf16 %v3327, %v3327
    %3336 = vmatprep.subr.bf16.mxu0 %v775
    %3337 = vmatpush1.bf16.msra.mxu0 %v774
    %3338 = vmatprep.subr.bf16.mxu0 %v779
    %3339 = vmatpush1.bf16.msra.mxu0 %v778
    %3340 = vmatprep.subr.bf16.mxu0 %v783
    %3341 = vmatpush1.bf16.msra.mxu0 %v782
    %3342 = vmatprep.subr.bf16.mxu0 %v787
    %3343 = vmatpush1.bf16.msra.mxu0 %v786
    %3344 = vmatprep.subr.bf16.mxu0 %v791
    %3345 = vmatpush1.bf16.msra.mxu0 %v790
    %3346 = vmatprep.subr.bf16.mxu0 %v795
    %3347 = vmatpush1.bf16.msra.mxu0 %v794
    %3348 = vmatprep.subr.bf16.mxu0 %v799
    %3349 = vmatpush1.bf16.msra.mxu0 %v798
    %3350 = vmatprep.subr.bf16.mxu0 %v803
    %3351 = vmatpush1.bf16.msra.mxu0 %v802
    %3352 = vmatprep.subr.bf16.mxu0 0
    %3353 = vmatpush1.bf16.msra.mxu0 0
    %3354 = vmatprep.subr.bf16.mxu0 0
    %3355 = vmatpush1.bf16.msra.mxu0 0
    %3356 = vmatprep.subr.bf16.mxu0 0
    %3357 = vmatpush1.bf16.msra.mxu0 0
    %3358 = vmatprep.subr.bf16.mxu0 0
    %3359 = vmatpush1.bf16.msra.mxu0 0
    %3360 = vmatprep.subr.bf16.mxu0 0
    %3361 = vmatpush1.bf16.msra.mxu0 0
    %3362 = vmatprep.subr.bf16.mxu0 0
    %3363 = vmatpush1.bf16.msra.mxu0 0
    %3364 = vmatprep.subr.bf16.mxu0 0
    %3365 = vmatpush1.bf16.msra.mxu0 0
    %3366 = vmatprep.subr.bf16.mxu0 0
    %3367 = vmatpush1.bf16.msra.mxu0 0
    %3368 = vmatprep.mubr.bf16.mxu0 0
    %3369 = vmatmul.mubr.bf16.gmra.mrb[0].mxu0 %v3335
    %v3370 = vpop.f32.mrb[0].mxu0
    %v3371 = vadd.f32 0.0, %v3370
    %v3372 = vpop.f32.mrb[0].mxu0
    %v3373 = vadd.f32 0.0, %v3372
    %v3374 = vpop.f32.mrb[0].mxu0
    %v3375 = vpop.f32.mrb[0].mxu0
    %3376 = vdwg.mxu0
    %3377 = vmatprep.subr.bf16.mxu0 %v777
    %3378 = vmatpush1.bf16.msra.mxu0 %v776
    %3379 = vmatprep.subr.bf16.mxu0 %v781
    %3380 = vmatpush1.bf16.msra.mxu0 %v780
    %3381 = vmatprep.subr.bf16.mxu0 %v785
    %3382 = vmatpush1.bf16.msra.mxu0 %v784
    %3383 = vmatprep.subr.bf16.mxu0 %v789
    %3384 = vmatpush1.bf16.msra.mxu0 %v788
    %3385 = vmatprep.subr.bf16.mxu0 %v793
    %3386 = vmatpush1.bf16.msra.mxu0 %v792
    %3387 = vmatprep.subr.bf16.mxu0 %v797
    %3388 = vmatpush1.bf16.msra.mxu0 %v796
    %3389 = vmatprep.subr.bf16.mxu0 %v801
    %3390 = vmatpush1.bf16.msra.mxu0 %v800
    %3391 = vmatprep.subr.bf16.mxu0 %v805
    %3392 = vmatpush1.bf16.msra.mxu0 %v804
    %3393 = vmatprep.subr.bf16.mxu0 0
    %3394 = vmatpush1.bf16.msra.mxu0 0
    %3395 = vmatprep.subr.bf16.mxu0 0
    %3396 = vmatpush1.bf16.msra.mxu0 0
    %3397 = vmatprep.subr.bf16.mxu0 0
    %3398 = vmatpush1.bf16.msra.mxu0 0
    %3399 = vmatprep.subr.bf16.mxu0 0
    %3400 = vmatpush1.bf16.msra.mxu0 0
    %3401 = vmatprep.subr.bf16.mxu0 0
    %3402 = vmatpush1.bf16.msra.mxu0 0
    %3403 = vmatprep.subr.bf16.mxu0 0
    %3404 = vmatpush1.bf16.msra.mxu0 0
    %3405 = vmatprep.subr.bf16.mxu0 0
    %3406 = vmatpush1.bf16.msra.mxu0 0
    %3407 = vmatprep.subr.bf16.mxu0 0
    %3408 = vmatpush1.bf16.msra.mxu0 0
    %3409 = vmatprep.mubr.bf16.mxu0 0
    %3410 = vmatmul.mubr.bf16.gmra.mrb[0].mxu0 %v3335
    %v3411 = vpop.f32.mrb[0].mxu0
    %v3412 = vadd.f32 0.0, %v3411
    %v3413 = vpop.f32.mrb[0].mxu0
    %v3414 = vadd.f32 0.0, %v3413
    %v3415 = vpop.f32.mrb[0].mxu0
    %v3416 = vpop.f32.mrb[0].mxu0
    %3417 = vdwg.mxu0
    %3418 = vmatprep.subr.bf16.mxu0 %v1018
    %3419 = vmatpush1.bf16.msra.mxu0 %v1017
    %3420 = vmatprep.subr.bf16.mxu0 %v1022
    %3421 = vmatpush1.bf16.msra.mxu0 %v1021
    %3422 = vmatprep.subr.bf16.mxu0 %v1026
    %3423 = vmatpush1.bf16.msra.mxu0 %v1025
    %3424 = vmatprep.subr.bf16.mxu0 %v1030
    %3425 = vmatpush1.bf16.msra.mxu0 %v1029
    %3426 = vmatprep.subr.bf16.mxu0 %v1034
    %3427 = vmatpush1.bf16.msra.mxu0 %v1033
    %3428 = vmatprep.subr.bf16.mxu0 %v1038
    %3429 = vmatpush1.bf16.msra.mxu0 %v1037
    %3430 = vmatprep.subr.bf16.mxu0 %v1042
    %3431 = vmatpush1.bf16.msra.mxu0 %v1041
    %3432 = vmatprep.subr.bf16.mxu0 %v1046
    %3433 = vmatpush1.bf16.msra.mxu0 %v1045
    %3434 = vmatprep.subr.bf16.mxu0 0
    %3435 = vmatpush1.bf16.msra.mxu0 0
    %3436 = vmatprep.subr.bf16.mxu0 0
    %3437 = vmatpush1.bf16.msra.mxu0 0
    %3438 = vmatprep.subr.bf16.mxu0 0
    %3439 = vmatpush1.bf16.msra.mxu0 0
    %3440 = vmatprep.subr.bf16.mxu0 0
    %3441 = vmatpush1.bf16.msra.mxu0 0
    %3442 = vmatprep.subr.bf16.mxu0 0
    %3443 = vmatpush1.bf16.msra.mxu0 0
    %3444 = vmatprep.subr.bf16.mxu0 0
    %3445 = vmatpush1.bf16.msra.mxu0 0
    %3446 = vmatprep.subr.bf16.mxu0 0
    %3447 = vmatpush1.bf16.msra.mxu0 0
    %3448 = vmatprep.subr.bf16.mxu0 0
    %3449 = vmatpush1.bf16.msra.mxu0 0
    %3450 = vmatprep.mubr.bf16.mxu0 0
    %3451 = vmatmul.mubr.bf16.gmra.mrb[0].mxu0 %v3217
    %v3452 = vpop.f32.mrb[0].mxu0
    %v3453 = vadd.f32 0.0, %v3452
    %v3454 = vpop.f32.mrb[0].mxu0
    %v3455 = vadd.f32 0.0, %v3454
    %v3456 = vpop.f32.mrb[0].mxu0
    %v3457 = vpop.f32.mrb[0].mxu0
    %3458 = vdwg.mxu0
    %3459 = vmatprep.subr.bf16.mxu0 %v1020
    %3460 = vmatpush1.bf16.msra.mxu0 %v1019
    %3461 = vmatprep.subr.bf16.mxu0 %v1024
    %3462 = vmatpush1.bf16.msra.mxu0 %v1023
    %3463 = vmatprep.subr.bf16.mxu0 %v1028
    %3464 = vmatpush1.bf16.msra.mxu0 %v1027
    %3465 = vmatprep.subr.bf16.mxu0 %v1032
    %3466 = vmatpush1.bf16.msra.mxu0 %v1031
    %3467 = vmatprep.subr.bf16.mxu0 %v1036
    %3468 = vmatpush1.bf16.msra.mxu0 %v1035
    %3469 = vmatprep.subr.bf16.mxu0 %v1040
    %3470 = vmatpush1.bf16.msra.mxu0 %v1039
    %3471 = vmatprep.subr.bf16.mxu0 %v1044
    %3472 = vmatpush1.bf16.msra.mxu0 %v1043
    %3473 = vmatprep.subr.bf16.mxu0 %v1048
    %3474 = vmatpush1.bf16.msra.mxu0 %v1047
    %3475 = vmatprep.subr.bf16.mxu0 0
    %3476 = vmatpush1.bf16.msra.mxu0 0
    %3477 = vmatprep.subr.bf16.mxu0 0
    %3478 = vmatpush1.bf16.msra.mxu0 0
    %3479 = vmatprep.subr.bf16.mxu0 0
    %3480 = vmatpush1.bf16.msra.mxu0 0
    %3481 = vmatprep.subr.bf16.mxu0 0
    %3482 = vmatpush1.bf16.msra.mxu0 0
    %3483 = vmatprep.subr.bf16.mxu0 0
    %3484 = vmatpush1.bf16.msra.mxu0 0
    %3485 = vmatprep.subr.bf16.mxu0 0
    %3486 = vmatpush1.bf16.msra.mxu0 0
    %3487 = vmatprep.subr.bf16.mxu0 0
    %3488 = vmatpush1.bf16.msra.mxu0 0
    %3489 = vmatprep.subr.bf16.mxu0 0
    %3490 = vmatpush1.bf16.msra.mxu0 0
    %3491 = vmatprep.mubr.bf16.mxu0 0
    %3492 = vmatmul.mubr.bf16.gmra.mrb[0].mxu0 %v3217
    %v3493 = vpop.f32.mrb[0].mxu0
    %v3494 = vadd.f32 0.0, %v3493
    %v3495 = vpop.f32.mrb[0].mxu0
    %v3496 = vadd.f32 0.0, %v3495
    %v3497 = vpop.f32.mrb[0].mxu0
    %v3498 = vpop.f32.mrb[0].mxu0
    %3499 = vdwg.mxu0
    %v3500 = vadd.f32 %v3331, %v3453
    %v3501 = vadd.f32 %v3332, %v3455
    %v3502 = vadd.f32 %v3333, %v3494
    %v3503 = vadd.f32 %v3334, %v3496
    %v3504 = vxor.u32 %v3500, 2147483648
    %v3505 = vmul.f32 %v3504, 1.442695
    %v3506 = vpow.pop %v3505
    %v3507 = vadd.f32 %v3506, 1.0
    %v3508 = vrcp.pop %v3507
    %v3509 = vmul.f32 1.0, %v3508
    %v3510 = vxor.u32 %v3501, 2147483648
    %v3511 = vmul.f32 %v3510, 1.442695
    %v3512 = vpow.pop %v3511
    %v3513 = vadd.f32 %v3512, 1.0
    %v3514 = vrcp.pop %v3513
    %v3515 = vmul.f32 1.0, %v3514
    %v3516 = vtanh.pop %v3502
    %v3517 = vxor.u32 %v3503, 2147483648
    %v3518 = vmul.f32 %v3517, 1.442695
    %v3519 = vpow.pop %v3518
    %v3520 = vadd.f32 %v3519, 1.0
    %v3521 = vrcp.pop %v3520
    %v3522 = vmul.f32 1.0, %v3521
    %v3523 = vmul.f32 %v3515, %v3214
    %v3524 = vmul.f32 %v3509, %v3516
    %v3525 = vadd.f32 %v3523, %v3524
    %v3526 = vtanh.pop %v3525
    %v3527 = vmul.f32 %v3522, %v3526
    %v3528 = vpack.c.bf16 %v3527, %v3527
    %3529 = vmatprep.subr.bf16.mxu0 %v1289
    %3530 = vmatpush1.bf16.msra.mxu0 %v1288
    %3531 = vmatprep.subr.bf16.mxu0 %v1293
    %3532 = vmatpush1.bf16.msra.mxu0 %v1292
    %3533 = vmatprep.subr.bf16.mxu0 %v1297
    %3534 = vmatpush1.bf16.msra.mxu0 %v1296
    %3535 = vmatprep.subr.bf16.mxu0 %v1301
    %3536 = vmatpush1.bf16.msra.mxu0 %v1300
    %3537 = vmatprep.subr.bf16.mxu0 %v1305
    %3538 = vmatpush1.bf16.msra.mxu0 %v1304
    %3539 = vmatprep.subr.bf16.mxu0 %v1309
    %3540 = vmatpush1.bf16.msra.mxu0 %v1308
    %3541 = vmatprep.subr.bf16.mxu0 %v1313
    %3542 = vmatpush1.bf16.msra.mxu0 %v1312
    %3543 = vmatprep.subr.bf16.mxu0 %v1317
    %3544 = vmatpush1.bf16.msra.mxu0 %v1316
    %3545 = vmatprep.subr.bf16.mxu0 0
    %3546 = vmatpush1.bf16.msra.mxu0 0
    %3547 = vmatprep.subr.bf16.mxu0 0
    %3548 = vmatpush1.bf16.msra.mxu0 0
    %3549 = vmatprep.subr.bf16.mxu0 0
    %3550 = vmatpush1.bf16.msra.mxu0 0
    %3551 = vmatprep.subr.bf16.mxu0 0
    %3552 = vmatpush1.bf16.msra.mxu0 0
    %3553 = vmatprep.subr.bf16.mxu0 0
    %3554 = vmatpush1.bf16.msra.mxu0 0
    %3555 = vmatprep.subr.bf16.mxu0 0
    %3556 = vmatpush1.bf16.msra.mxu0 0
    %3557 = vmatprep.subr.bf16.mxu0 0
    %3558 = vmatpush1.bf16.msra.mxu0 0
    %3559 = vmatprep.subr.bf16.mxu0 0
    %3560 = vmatpush1.bf16.msra.mxu0 0
    %3561 = vmatprep.mubr.bf16.mxu0 0
    %3562 = vmatmul.mubr.bf16.gmra.mrb[0].mxu0 %v3528
    %v3563 = vpop.f32.mrb[0].mxu0
    %v3564 = vadd.f32 %v3371, %v3563
    %v3565 = vpop.f32.mrb[0].mxu0
    %v3566 = vadd.f32 %v3373, %v3565
    %v3567 = vpop.f32.mrb[0].mxu0
    %v3568 = vpop.f32.mrb[0].mxu0
    %3569 = vdwg.mxu0
    %3570 = vmatprep.subr.bf16.mxu0 %v1291
    %3571 = vmatpush1.bf16.msra.mxu0 %v1290
    %3572 = vmatprep.subr.bf16.mxu0 %v1295
    %3573 = vmatpush1.bf16.msra.mxu0 %v1294
    %3574 = vmatprep.subr.bf16.mxu0 %v1299
    %3575 = vmatpush1.bf16.msra.mxu0 %v1298
    %3576 = vmatprep.subr.bf16.mxu0 %v1303
    %3577 = vmatpush1.bf16.msra.mxu0 %v1302
    %3578 = vmatprep.subr.bf16.mxu0 %v1307
    %3579 = vmatpush1.bf16.msra.mxu0 %v1306
    %3580 = vmatprep.subr.bf16.mxu0 %v1311
    %3581 = vmatpush1.bf16.msra.mxu0 %v1310
    %3582 = vmatprep.subr.bf16.mxu0 %v1315
    %3583 = vmatpush1.bf16.msra.mxu0 %v1314
    %3584 = vmatprep.subr.bf16.mxu0 %v1319
    %3585 = vmatpush1.bf16.msra.mxu0 %v1318
    %3586 = vmatprep.subr.bf16.mxu0 0
    %3587 = vmatpush1.bf16.msra.mxu0 0
    %3588 = vmatprep.subr.bf16.mxu0 0
    %3589 = vmatpush1.bf16.msra.mxu0 0
    %3590 = vmatprep.subr.bf16.mxu0 0
    %3591 = vmatpush1.bf16.msra.mxu0 0
    %3592 = vmatprep.subr.bf16.mxu0 0
    %3593 = vmatpush1.bf16.msra.mxu0 0
    %3594 = vmatprep.subr.bf16.mxu0 0
    %3595 = vmatpush1.bf16.msra.mxu0 0
    %3596 = vmatprep.subr.bf16.mxu0 0
    %3597 = vmatpush1.bf16.msra.mxu0 0
    %3598 = vmatprep.subr.bf16.mxu0 0
    %3599 = vmatpush1.bf16.msra.mxu0 0
    %3600 = vmatprep.subr.bf16.mxu0 0
    %3601 = vmatpush1.bf16.msra.mxu0 0
    %3602 = vmatprep.mubr.bf16.mxu0 0
    %3603 = vmatmul.mubr.bf16.gmra.mrb[0].mxu0 %v3528
    %v3604 = vpop.f32.mrb[0].mxu0
    %v3605 = vadd.f32 %v3412, %v3604
    %v3606 = vpop.f32.mrb[0].mxu0
    %v3607 = vadd.f32 %v3414, %v3606
    %v3608 = vpop.f32.mrb[0].mxu0
    %v3609 = vpop.f32.mrb[0].mxu0
    %3610 = vdwg.mxu0
    %v3611 = vadd.f32 %v3564, %v649
    %v3612 = vadd.f32 %v3566, %v653
    %v3613 = vadd.f32 %v3605, %v657
    %v3614 = vadd.f32 %v3607, %v661
    %v3615 = vxor.u32 %v3611, 2147483648
    %v3616 = vmul.f32 %v3615, 1.442695
    %v3617 = vpow.pop %v3616
    %v3618 = vadd.f32 %v3617, 1.0
    %v3619 = vrcp.pop %v3618
    %v3620 = vmul.f32 1.0, %v3619
    %v3621 = vxor.u32 %v3612, 2147483648
    %v3622 = vmul.f32 %v3621, 1.442695
    %v3623 = vpow.pop %v3622
    %v3624 = vadd.f32 %v3623, 1.0
    %v3625 = vrcp.pop %v3624
    %v3626 = vmul.f32 1.0, %v3625
    %v3627 = vtanh.pop %v3613
    %v3628 = vxor.u32 %v3614, 2147483648
    %v3629 = vmul.f32 %v3628, 1.442695
    %v3630 = vpow.pop %v3629
    %v3631 = vadd.f32 %v3630, 1.0
    %v3632 = vrcp.pop %v3631
    %v3633 = vmul.f32 1.0, %v3632
    %v3634 = vmul.f32 %v3626, %v3325
    %v3635 = vmul.f32 %v3620, %v3627
    %v3636 = vadd.f32 %v3634, %v3635
    %v3637 = vtanh.pop %v3636
    %v3638 = vmul.f32 %v3633, %v3637
    %3639 = vst [vmem:[#allocation2] sm:$0xff] %v3527
    %3640 = vst [vmem:[#allocation3] sm:$0xff] %v3525
    %3641 = vst [vmem:[#allocation4] sm:$0xff] %v3638
    %3642 = vst [vmem:[#allocation5] sm:$0xff] %v3636
    // Predicated region
    $region66: #{tpu_custom_call.1} parent=1 // pred_check
      %p3643 = pneg %p116
    $region67: #{tpu_custom_call.1} parent=1 // pred_check_branch
      %3645 = sbr.rel (%p3643) target = $region69
    $region68: #{tpu_custom_call.1} parent=1 // pred_region
      %v3646 = vld [vmem:[#allocation4] sm:$0xff]
      %v3647 = vpack.c.bf16 %v3646, %v3646
      %v3648 = vld [vmem:[#allocation16] sm:$0xf]
      %v3649 = vld [vmem:[#allocation16 + $0x4] sm:$0xf]
      %v3650 = vld [vmem:[#allocation16 + $0x8] sm:$0xf]
      %v3651 = vld [vmem:[#allocation16 + $0xc] sm:$0xf]
      %v3652 = vld [vmem:[#allocation16 + $0x10] sm:$0xf]
      %v3653 = vld [vmem:[#allocation16 + $0x14] sm:$0xf]
      %v3654 = vld [vmem:[#allocation16 + $0x18] sm:$0xf]
      %v3655 = vld [vmem:[#allocation16 + $0x1c] sm:$0xf]
      %v3656 = vld [vmem:[#allocation16 + $0x20] sm:$0xf]
      %v3657 = vld [vmem:[#allocation16 + $0x24] sm:$0xf]
      %v3658 = vld [vmem:[#allocation16 + $0x28] sm:$0xf]
      %v3659 = vld [vmem:[#allocation16 + $0x2c] sm:$0xf]
      %v3660 = vld [vmem:[#allocation16 + $0x30] sm:$0xf]
      %v3661 = vld [vmem:[#allocation16 + $0x34] sm:$0xf]
      %v3662 = vld [vmem:[#allocation16 + $0x38] sm:$0xf]
      %v3663 = vld [vmem:[#allocation16 + $0x3c] sm:$0xf]
      %v3664 = vld [vmem:[%s8] sm:$0x1]
      %v3666 = vlaneseq
      %v3667 = vshrl.u32 %v3666, 7
      %v3668 = vsub.s32 0, %v3667
      %v3669 = vrot.slane %v3664, %v3668
      %v3687 = vunpack.c.l.b16 %v3648
      %v3688 = vunpack.c.l.b16 %v3649
      %v3689 = vunpack.c.l.b16 %v3650
      %v3690 = vunpack.c.l.b16 %v3651
      %v3691 = vunpack.c.l.b16 %v3652
      %v3692 = vunpack.c.l.b16 %v3653
      %v3693 = vunpack.c.l.b16 %v3654
      %v3694 = vunpack.c.l.b16 %v3655
      %v3695 = vunpack.c.l.b16 %v3656
      %v3696 = vunpack.c.l.b16 %v3657
      %v3697 = vunpack.c.l.b16 %v3658
      %v3698 = vunpack.c.l.b16 %v3659
      %v3699 = vunpack.c.l.b16 %v3660
      %v3700 = vunpack.c.l.b16 %v3661
      %v3701 = vunpack.c.l.b16 %v3662
      %v3702 = vunpack.c.l.b16 %v3663
      %v3703 = vpack.c.b16 %v3688, %v3687
      %v3704 = vpack.c.b16 %v3690, %v3689
      %v3705 = vpack.c.b16 %v3692, %v3691
      %v3706 = vpack.c.b16 %v3694, %v3693
      %v3707 = vpack.c.b16 %v3696, %v3695
      %v3708 = vpack.c.b16 %v3698, %v3697
      %v3709 = vpack.c.b16 %v3700, %v3699
      %v3710 = vpack.c.b16 %v3702, %v3701
      %3719 = vmatprep.subr.bf16.mxu0 0
      %3720 = vmatpush1.bf16.msra.mxu0 %v3703
      %3721 = vmatprep.subr.bf16.mxu0 0
      %3722 = vmatpush1.bf16.msra.mxu0 %v3704
      %3723 = vmatprep.subr.bf16.mxu0 0
      %3724 = vmatpush1.bf16.msra.mxu0 %v3705
      %3725 = vmatprep.subr.bf16.mxu0 0
      %3726 = vmatpush1.bf16.msra.mxu0 %v3706
      %3727 = vmatprep.subr.bf16.mxu0 0
      %3728 = vmatpush1.bf16.msra.mxu0 %v3707
      %3729 = vmatprep.subr.bf16.mxu0 0
      %3730 = vmatpush1.bf16.msra.mxu0 %v3708
      %3731 = vmatprep.subr.bf16.mxu0 0
      %3732 = vmatpush1.bf16.msra.mxu0 %v3709
      %3733 = vmatprep.subr.bf16.mxu0 0
      %3734 = vmatpush1.bf16.msra.mxu0 %v3710
      %3735 = vmatprep.subr.bf16.mxu0 0
      %3736 = vmatpush1.bf16.msra.mxu0 0
      %3737 = vmatprep.subr.bf16.mxu0 0
      %3738 = vmatpush1.bf16.msra.mxu0 0
      %3739 = vmatprep.subr.bf16.mxu0 0
      %3740 = vmatpush1.bf16.msra.mxu0 0
      %3741 = vmatprep.subr.bf16.mxu0 0
      %3742 = vmatpush1.bf16.msra.mxu0 0
      %3743 = vmatprep.subr.bf16.mxu0 0
      %3744 = vmatpush1.bf16.msra.mxu0 0
      %3745 = vmatprep.subr.bf16.mxu0 0
      %3746 = vmatpush1.bf16.msra.mxu0 0
      %3747 = vmatprep.subr.bf16.mxu0 0
      %3748 = vmatpush1.bf16.msra.mxu0 0
      %3749 = vmatprep.subr.bf16.mxu0 0
      %3750 = vmatpush1.bf16.msra.mxu0 0
      %3751 = vmatprep.mubr.bf16.mxu0 0
      %3752 = vmatmul.mubr.bf16.gmra.mrb[0].mxu0 %v3647
      %v3753 = vpop.f32.mrb[0].mxu0
      %v3754 = vadd.f32 %v3669, %v3753
      %v3755 = vpop.f32.mrb[0].mxu0
      %v3756 = vpop.f32.mrb[0].mxu0
      %v3757 = vpop.f32.mrb[0].mxu0
      %3758 = vdwg.mxu0
      %3759 = vst [vmem:[#allocation18] sm:$0xff] %v3754
    $region69: #{tpu_custom_call.1} parent=1 // pred_fallthru
      _
    // Predicated region
    $region70: #{tpu_custom_call.1} parent=1 // pred_check
      _
    $region71: #{tpu_custom_call.1} parent=1 // pred_check_branch
      %3761 = sbr.rel (0) target = $region73
    $region72: #{tpu_custom_call.1} parent=1 // pred_region
      %s3763 = ssub.s32 128, 128
      %3764 = vsyncadd [#allocation9], %s3763
      %s3766 = sshll.u32 [#allocation18], 4
      %s3767 = int_to_ptr.vmem [resolvable:$true] %s3766
      %3769 = dma.vmem_to_hbm [thread:$0]  %s3767, 128, %s9, [#allocation9]
    $region73: #{tpu_custom_call.1} parent=1 // pred_fallthru
      _
    // Predicated region
    $region74: #{tpu_custom_call.1} parent=1 // pred_check
      _
    $region75: #{tpu_custom_call.1} parent=1 // pred_check_branch
      %3771 = sbr.rel (0) target = $region77
    $region76: #{tpu_custom_call.1} parent=1 // pred_region
      %3772 = dma.done [#allocation9], 128
    $region77: #{tpu_custom_call.1} parent=1 // pred_fallthru
      _
    %3773 = vsyncpa [#allocation8], 1
    %3774 = vsyncpa [#allocation11], 1
    %3775 = vsyncpa [#allocation14], 1
    %3776 = vsyncpa [#allocation17], 1
    %3777 = vsyncpa [#allocation9], 1

</llo_original>
